<compile_context>
chip_gen: v7x
topology: tpu7x:2x2x1
jax: 0.10.0
libtpu: 0.0.40
codegen_flags: <defaults>
</compile_context>

<pallas_src>
import jax
import jax.numpy as jnp
from jax.experimental import pallas as pl
from jax.experimental.pallas import tpu as pltpu


# ----------------------------- Pallas kernel --------------------------------

def _matmul_bias_relu_kernel(p_ref, w_ref, b_ref, o_ref, acc_ref):
    # p_ref: (tm, tk) bf16 patches, w_ref: (tk, tn) bf16 (BN scale pre-folded),
    # b_ref: (1, tn) f32 bias, acc_ref: (tm, tn) f32 accumulator scratch.
    @pl.when(pl.program_id(2) == 0)
    def _():
        acc_ref[...] = jnp.zeros_like(acc_ref)

    acc_ref[...] += jnp.dot(p_ref[...], w_ref[...],
                            preferred_element_type=jnp.float32)

    @pl.when(pl.program_id(2) == pl.num_programs(2) - 1)
    def _():
        o_ref[...] = jnp.maximum(acc_ref[...] + b_ref[...],
                                 0.0).astype(o_ref.dtype)


def _round_up(x, m):
    return (x + m - 1) // m * m


def _pick_tk(kpad):
    for cand in (512, 256, 128):
        if kpad % cand == 0:
            return cand
    return kpad


def _matmul_bias_relu(patches, w_mat, bias, *, tm=256, tn=128):
    """(M,K) x (K,Cout) MXU matmul with fused bias-add + ReLU.

    Pads M to tm, K to 128, Cout to tn so every tile is (8,128)-aligned and the
    output lane dim is dense; slices the padding off afterwards.
    """
    m, k = patches.shape
    cout = w_mat.shape[1]
    mpad = _round_up(m, tm)
    kpad = _round_up(k, 128)
    npad = _round_up(cout, tn)
    tk = _pick_tk(kpad)

    p_pad = jnp.pad(patches.astype(jnp.bfloat16), ((0, mpad - m), (0, kpad - k)))
    w_pad = jnp.pad(w_mat.astype(jnp.bfloat16), ((0, kpad - k), (0, npad - cout)))
    b_pad = jnp.pad(bias.reshape(1, -1).astype(jnp.float32),
                    ((0, 0), (0, npad - cout)))

    grid = (mpad // tm, npad // tn, kpad // tk)
    flops = 2 * mpad * kpad * npad
    bytes_accessed = mpad * kpad * 2 + kpad * npad * 2 + mpad * npad * 4

    out = pl.pallas_call(
        _matmul_bias_relu_kernel,
        out_shape=jax.ShapeDtypeStruct((mpad, npad), jnp.float32),
        grid_spec=pltpu.PrefetchScalarGridSpec(
            num_scalar_prefetch=0,
            grid=grid,
            in_specs=[
                pl.BlockSpec((tm, tk), lambda i, j, kk: (i, kk)),
                pl.BlockSpec((tk, tn), lambda i, j, kk: (kk, j)),
                pl.BlockSpec((1, tn), lambda i, j, kk: (0, j)),
            ],
            out_specs=pl.BlockSpec((tm, tn), lambda i, j, kk: (i, j)),
            scratch_shapes=[pltpu.VMEM((tm, tn), jnp.float32)],
        ),
        compiler_params=pltpu.CompilerParams(
            dimension_semantics=("parallel", "parallel", "arbitrary")),
        cost_estimate=pl.CostEstimate(flops=flops, transcendentals=0,
                                      bytes_accessed=bytes_accessed),
    )(p_pad, w_pad, b_pad)
    return out[:m, :cout]


# ------------------------------- JAX glue ------------------------------------

def _im2col(x, kh, kw, stride, padding):
    """x: (N,H,W,C) NHWC -> patches (N*OH*OW, kh*kw*C), plus OH, OW."""
    n, h, w, c = x.shape
    if padding:
        x = jnp.pad(x, ((0, 0), (padding, padding), (padding, padding), (0, 0)))
        h += 2 * padding
        w += 2 * padding
    oh = (h - kh) // stride + 1
    ow = (w - kw) // stride + 1
    cols = []
    for i in range(kh):
        for j in range(kw):
            cols.append(x[:, i:i + stride * (oh - 1) + 1:stride,
                            j:j + stride * (ow - 1) + 1:stride, :])
    p = jnp.stack(cols, axis=3)                       # (N, OH, OW, kh*kw, C)
    return p.reshape(n * oh * ow, kh * kw * c), oh, ow


def conv_bn_relu(x, weight, scale, bias, *, stride=1, padding=0):
    """BasicConv2d forward.  x: NHWC, weight: (Cout,Cin,KH,KW) torch layout."""
    cout, cin, kh, kw = weight.shape
    n = x.shape[0]
    if kh == 1 and kw == 1 and stride == 1 and padding == 0:
        patches = x.reshape(-1, cin)                  # 1x1 conv: no im2col
        oh, ow = x.shape[1], x.shape[2]
    else:
        patches, oh, ow = _im2col(x, kh, kw, stride, padding)
    # flat ordering (kh, kw, Cin) matches the (2,3,1,0) weight transpose
    w_mat = jnp.transpose(weight, (2, 3, 1, 0)).reshape(kh * kw * cin, cout)
    w_mat = w_mat * scale[None, :]                    # fold BN scale into weights
    out = _matmul_bias_relu(patches, w_mat, bias)
    return out.reshape(n, oh, ow, cout)


def avgpool3x3_conv_bn_relu(x, weight, scale, bias):
    """F.avg_pool2d(x, 3, stride=1, padding=1) (count_include_pad=True) followed
    by a 1x1 BasicConv2d.  Both ops are linear, so this equals a single 3x3 conv
    (padding=1) whose taps are all weight/9 — one MXU matmul, no pool kernel."""
    cout, cin, _, _ = weight.shape
    w3 = jnp.broadcast_to(weight, (cout, cin, 3, 3)) / 9.0
    return conv_bn_relu(x, w3, scale, bias, stride=1, padding=1)


# --------------------------- parameters / module -----------------------------

def _fold_bn(gamma, beta, mean, var, eps=1e-3):
    scale = gamma / jnp.sqrt(var + eps)
    return scale, beta - mean * scale


def _init_basic_conv(key, cin, cout, kh, kw):
    k1, k2, k3, k4, k5 = jax.random.split(key, 5)
    w = 0.1 * jax.random.normal(k1, (cout, cin, kh, kw), jnp.float32)
    gamma = 1.0 + 0.1 * jax.random.normal(k2, (cout,), jnp.float32)
    beta = 0.1 * jax.random.normal(k3, (cout,), jnp.float32)
    mean = 0.1 * jax.random.normal(k4, (cout,), jnp.float32)
    var = 1.0 + 0.5 * jnp.abs(jax.random.normal(k5, (cout,), jnp.float32))
    scale, bias = _fold_bn(gamma, beta, mean, var)
    return w, scale, bias


def init_inception_a_params(key, in_channels, pool_features):
    ks = jax.random.split(key, 7)
    return {
        "branch1x1": _init_basic_conv(ks[0], in_channels, 64, 1, 1),
        "branch5x5_1": _init_basic_conv(ks[1], in_channels, 48, 1, 1),
        "branch5x5_2": _init_basic_conv(ks[2], 48, 64, 5, 5),
        "branch3x3dbl_1": _init_basic_conv(ks[3], in_channels, 64, 1, 1),
        "branch3x3dbl_2": _init_basic_conv(ks[4], 64, 96, 3, 3),
        "branch3x3dbl_3": _init_basic_conv(ks[5], 96, 96, 3, 3),
        "branch_pool": _init_basic_conv(ks[6], in_channels, pool_features, 1, 1),
    }


def inception_a(x_nchw, params):
    """InceptionA.forward.  x: (N,Cin,H,W) -> (N, 64+64+96+pool_features, H, W)."""
    x = jnp.transpose(x_nchw, (0, 2, 3, 1))            # NCHW -> NHWC
    b1 = conv_bn_relu(x, *params["branch1x1"])
    b5 = conv_bn_relu(x, *params["branch5x5_1"])
    b5 = conv_bn_relu(b5, *params["branch5x5_2"], padding=2)
    bd = conv_bn_relu(x, *params["branch3x3dbl_1"])
    bd = conv_bn_relu(bd, *params["branch3x3dbl_2"], padding=1)
    bd = conv_bn_relu(bd, *params["branch3x3dbl_3"], padding=1)
    bp = avgpool3x3_conv_bn_relu(x, *params["branch_pool"])
    out = jnp.concatenate([b1, b5, bd, bp], axis=-1)   # matches torch.cat(dim=1)
    return jnp.transpose(out, (0, 3, 1, 2))            # NHWC -> NCHW


# ------------------------------ pure-JAX reference ----------------------------

def _ref_conv_bn_relu(x, w, scale, bias, stride=1, padding=0):
    out = jax.lax.conv_general_dilated(
        x, w, (stride, stride), [(padding, padding), (padding, padding)],
        dimension_numbers=("NCHW", "OIHW", "NCHW"))
    out = out * scale[None, :, None, None] + bias[None, :, None, None]
    return jnp.maximum(out, 0.0)


def _ref_inception_a(x, params):
    b1 = _ref_conv_bn_relu(x, *params["branch1x1"])
    b5 = _ref_conv_bn_relu(x, *params["branch5x5_1"])
    b5 = _ref_conv_bn_relu(b5, *params["branch5x5_2"], padding=2)
    bd = _ref_conv_bn_relu(x, *params["branch3x3dbl_1"])
    bd = _ref_conv_bn_relu(bd, *params["branch3x3dbl_2"], padding=1)
    bd = _ref_conv_bn_relu(bd, *params["branch3x3dbl_3"], padding=1)
    # F.avg_pool2d(kernel=3, stride=1, padding=1), count_include_pad=True (/9)
    s = jax.lax.reduce_window(x, 0.0, jax.lax.add, (1, 1, 3, 3), (1, 1, 1, 1),
                              [(0, 0), (0, 0), (1, 1), (1, 1)])
    bp = _ref_conv_bn_relu(s / 9.0, *params["branch_pool"])
    return jnp.concatenate([b1, b5, bd, bp], axis=1)


if __name__ == "__main__":
    key = jax.random.PRNGKey(0)
    kx, kparam = jax.random.split(key)
    N, CIN, H, W = 2, 4, 16, 16
    POOL_FEATURES = 32
    x = jax.random.normal(kx, (N, CIN, H, W), jnp.float32)
    params = init_inception_a_params(kparam, CIN, POOL_FEATURES)

    out = jax.block_until_ready(jax.jit(inception_a)(x, params))
    assert out.shape == (N, 64 + 64 + 96 + POOL_FEATURES, H, W), out.shape

    ref = jax.block_until_ready(_ref_inception_a(x, params))
    # bf16 MXU inputs (f32 accumulation/epilogue) vs f32 reference -> relaxed
    # tolerance; structural errors (tap order, BN fold, padding) would be O(0.1+).
    assert jnp.allclose(out, ref, atol=5e-2, rtol=5e-2), (
        float(jnp.max(jnp.abs(out - ref))))

    print("KERNEL_OK")
</pallas_src>

<mosaic_0001>
module attributes {stable_mosaic.version = 11 : i64} {
  func.func @_matmul_bias_relu_kernel(%arg0: i32, %arg1: i32, %arg2: i32, %arg3: memref<256x128xbf16, #tpu.memory_space<vmem>>, %arg4: memref<128x128xbf16, #tpu.memory_space<vmem>>, %arg5: memref<1x128xf32, #tpu.memory_space<vmem>>, %arg6: memref<256x128xf32, #tpu.memory_space<vmem>>, %arg7: memref<256x128xf32, #tpu.memory_space<vmem>>) attributes {dimension_semantics = [#tpu.dimension_semantics<parallel>, #tpu.dimension_semantics<parallel>, #tpu.dimension_semantics<arbitrary>], iteration_bounds = array<i64: 2, 1, 1>, scalar_prefetch = 0 : i64, scratch_operands = 1 : i64, tpu.core_type = #tpu.core_type<tc>, window_params = [{transform_indices = @transform_0, window_bounds = array<i64: 256, 128>}, {transform_indices = @transform_1, window_bounds = array<i64: 128, 128>}, {transform_indices = @transform_2, window_bounds = array<i64: 1, 128>}, {transform_indices = @transform_3, window_bounds = array<i64: 256, 128>}]} {
    %c0_i32 = arith.constant 0 : i32
    %0 = arith.cmpi eq, %arg2, %c0_i32 : i32
    %1 = arith.extui %0 : i1 to i32
    %c0_i32_0 = arith.constant 0 : i32
    %2 = arith.cmpi ne, %1, %c0_i32_0 : i32
    scf.if %2 {
      %cst_10 = arith.constant 0.000000e+00 : f32
      %12 = vector.broadcast %cst_10 : f32 to vector<256x128xf32>
      %c0_11 = arith.constant 0 : index
      %c0_12 = arith.constant 0 : index
      %13 = vector.load %arg7[%c0_11, %c0_12] : memref<256x128xf32, #tpu.memory_space<vmem>>, vector<256x128xf32>
      tpu.vector_store %arg7[%c0_11, %c0_12], %12 {strides = array<i32>} : memref<256x128xf32, #tpu.memory_space<vmem>>, vector<256x128xf32>,
    } else {
    }
    %c0 = arith.constant 0 : index
    %c0_1 = arith.constant 0 : index
    %3 = vector.load %arg7[%c0, %c0_1] : memref<256x128xf32, #tpu.memory_space<vmem>>, vector<256x128xf32>
    %c0_2 = arith.constant 0 : index
    %c0_3 = arith.constant 0 : index
    %4 = vector.load %arg3[%c0_2, %c0_3] : memref<256x128xbf16, #tpu.memory_space<vmem>>, vector<256x128xbf16>
    %c0_4 = arith.constant 0 : index
    %c0_5 = arith.constant 0 : index
    %5 = vector.load %arg4[%c0_4, %c0_5] : memref<128x128xbf16, #tpu.memory_space<vmem>>, vector<128x128xbf16>
    %cst = arith.constant dense<0.000000e+00> : vector<256x128xf32>
    %6 = tpu.matmul %4, %5, %cst {dimension_numbers = #tpu.dot_dimension_numbers<[1], [0], [0], [1], [0, 0, 1, 1], [], []>} : vector<256x128xbf16>, vector<128x128xbf16>, vector<256x128xf32> -> vector<256x128xf32>
    %7 = arith.addf %3, %6 : vector<256x128xf32>
    %c0_6 = arith.constant 0 : index
    %c0_7 = arith.constant 0 : index
    %8 = vector.load %arg7[%c0_6, %c0_7] : memref<256x128xf32, #tpu.memory_space<vmem>>, vector<256x128xf32>
    tpu.vector_store %arg7[%c0_6, %c0_7], %7 {strides = array<i32>} : memref<256x128xf32, #tpu.memory_space<vmem>>, vector<256x128xf32>,
    %c0_i32_8 = arith.constant 0 : i32
    %9 = arith.cmpi eq, %arg2, %c0_i32_8 : i32
    %10 = arith.extui %9 : i1 to i32
    %c0_i32_9 = arith.constant 0 : i32
    %11 = arith.cmpi ne, %10, %c0_i32_9 : i32
    scf.if %11 {
      %c0_10 = arith.constant 0 : index
      %c0_11 = arith.constant 0 : index
      %12 = vector.load %arg7[%c0_10, %c0_11] : memref<256x128xf32, #tpu.memory_space<vmem>>, vector<256x128xf32>
      %c0_12 = arith.constant 0 : index
      %c0_13 = arith.constant 0 : index
      %13 = vector.load %arg5[%c0_12, %c0_13] : memref<1x128xf32, #tpu.memory_space<vmem>>, vector<1x128xf32>
      %14 = vector.broadcast %13 : vector<1x128xf32> to vector<256x128xf32>
      %15 = arith.addf %12, %14 : vector<256x128xf32>
      %cst_14 = arith.constant 0.000000e+00 : f32
      %16 = vector.broadcast %cst_14 : f32 to vector<256x128xf32>
      %17 = arith.maximumf %15, %16 : vector<256x128xf32>
      %c0_15 = arith.constant 0 : index
      %c0_16 = arith.constant 0 : index
      %18 = vector.load %arg6[%c0_15, %c0_16] : memref<256x128xf32, #tpu.memory_space<vmem>>, vector<256x128xf32>
      tpu.vector_store %arg6[%c0_15, %c0_16], %17 {strides = array<i32>} : memref<256x128xf32, #tpu.memory_space<vmem>>, vector<256x128xf32>,
    } else {
    }
    return
  }
  func.func @transform_0(%arg0: i32, %arg1: i32, %arg2: i32) -> (i32, i32) {
    %c0_i32 = arith.constant 0 : i32
    return %arg0, %arg2 : i32, i32
  }
  func.func @transform_1(%arg0: i32, %arg1: i32, %arg2: i32) -> (i32, i32) {
    %c0_i32 = arith.constant 0 : i32
    return %arg2, %arg1 : i32, i32
  }
  func.func @transform_2(%arg0: i32, %arg1: i32, %arg2: i32) -> (i32, i32) {
    %c0_i32 = arith.constant 0 : i32
    %c0_i32_0 = arith.constant 0 : i32
    return %c0_i32, %arg1 : i32, i32
  }
  func.func @transform_3(%arg0: i32, %arg1: i32, %arg2: i32) -> (i32, i32) {
    %c0_i32 = arith.constant 0 : i32
    return %arg0, %arg1 : i32, i32
  }
}

module attributes {stable_mosaic.version = 11 : i64} {
  func.func @_matmul_bias_relu_kernel(%arg0: i32, %arg1: i32, %arg2: i32, %arg3: memref<256x256xbf16, #tpu.memory_space<vmem>>, %arg4: memref<256x128xbf16, #tpu.memory_space<vmem>>, %arg5: memref<1x128xf32, #tpu.memory_space<vmem>>, %arg6: memref<256x128xf32, #tpu.memory_space<vmem>>, %arg7: memref<256x128xf32, #tpu.memory_space<vmem>>) attributes {dimension_semantics = [#tpu.dimension_semantics<parallel>, #tpu.dimension_semantics<parallel>, #tpu.dimension_semantics<arbitrary>], iteration_bounds = array<i64: 2, 1, 5>, scalar_prefetch = 0 : i64, scratch_operands = 1 : i64, tpu.core_type = #tpu.core_type<tc>, window_params = [{transform_indices = @transform_0, window_bounds = array<i64: 256, 256>}, {transform_indices = @transform_1, window_bounds = array<i64: 256, 128>}, {transform_indices = @transform_2, window_bounds = array<i64: 1, 128>}, {transform_indices = @transform_3, window_bounds = array<i64: 256, 128>}]} {
    %c0_i32 = arith.constant 0 : i32
    %0 = arith.cmpi eq, %arg2, %c0_i32 : i32
    %1 = arith.extui %0 : i1 to i32
    %c0_i32_0 = arith.constant 0 : i32
    %2 = arith.cmpi ne, %1, %c0_i32_0 : i32
    scf.if %2 {
      %cst_9 = arith.constant 0.000000e+00 : f32
      %12 = vector.broadcast %cst_9 : f32 to vector<256x128xf32>
      %c0_10 = arith.constant 0 : index
      %c0_11 = arith.constant 0 : index
      %13 = vector.load %arg7[%c0_10, %c0_11] : memref<256x128xf32, #tpu.memory_space<vmem>>, vector<256x128xf32>
      tpu.vector_store %arg7[%c0_10, %c0_11], %12 {strides = array<i32>} : memref<256x128xf32, #tpu.memory_space<vmem>>, vector<256x128xf32>,
    } else {
    }
    %c0 = arith.constant 0 : index
    %c0_1 = arith.constant 0 : index
    %3 = vector.load %arg7[%c0, %c0_1] : memref<256x128xf32, #tpu.memory_space<vmem>>, vector<256x128xf32>
    %c0_2 = arith.constant 0 : index
    %c0_3 = arith.constant 0 : index
    %4 = vector.load %arg3[%c0_2, %c0_3] : memref<256x256xbf16, #tpu.memory_space<vmem>>, vector<256x256xbf16>
    %c0_4 = arith.constant 0 : index
    %c0_5 = arith.constant 0 : index
    %5 = vector.load %arg4[%c0_4, %c0_5] : memref<256x128xbf16, #tpu.memory_space<vmem>>, vector<256x128xbf16>
    %cst = arith.constant dense<0.000000e+00> : vector<256x128xf32>
    %6 = tpu.matmul %4, %5, %cst {dimension_numbers = #tpu.dot_dimension_numbers<[1], [0], [0], [1], [0, 0, 1, 1], [], []>} : vector<256x256xbf16>, vector<256x128xbf16>, vector<256x128xf32> -> vector<256x128xf32>
    %7 = arith.addf %3, %6 : vector<256x128xf32>
    %c0_6 = arith.constant 0 : index
    %c0_7 = arith.constant 0 : index
    %8 = vector.load %arg7[%c0_6, %c0_7] : memref<256x128xf32, #tpu.memory_space<vmem>>, vector<256x128xf32>
    tpu.vector_store %arg7[%c0_6, %c0_7], %7 {strides = array<i32>} : memref<256x128xf32, #tpu.memory_space<vmem>>, vector<256x128xf32>,
    %c4_i32 = arith.constant 4 : i32
    %9 = arith.cmpi eq, %arg2, %c4_i32 : i32
    %10 = arith.extui %9 : i1 to i32
    %c0_i32_8 = arith.constant 0 : i32
    %11 = arith.cmpi ne, %10, %c0_i32_8 : i32
    scf.if %11 {
      %c0_9 = arith.constant 0 : index
      %c0_10 = arith.constant 0 : index
      %12 = vector.load %arg7[%c0_9, %c0_10] : memref<256x128xf32, #tpu.memory_space<vmem>>, vector<256x128xf32>
      %c0_11 = arith.constant 0 : index
      %c0_12 = arith.constant 0 : index
      %13 = vector.load %arg5[%c0_11, %c0_12] : memref<1x128xf32, #tpu.memory_space<vmem>>, vector<1x128xf32>
      %14 = vector.broadcast %13 : vector<1x128xf32> to vector<256x128xf32>
      %15 = arith.addf %12, %14 : vector<256x128xf32>
      %cst_13 = arith.constant 0.000000e+00 : f32
      %16 = vector.broadcast %cst_13 : f32 to vector<256x128xf32>
      %17 = arith.maximumf %15, %16 : vector<256x128xf32>
      %c0_14 = arith.constant 0 : index
      %c0_15 = arith.constant 0 : index
      %18 = vector.load %arg6[%c0_14, %c0_15] : memref<256x128xf32, #tpu.memory_space<vmem>>, vector<256x128xf32>
      tpu.vector_store %arg6[%c0_14, %c0_15], %17 {strides = array<i32>} : memref<256x128xf32, #tpu.memory_space<vmem>>, vector<256x128xf32>,
    } else {
    }
    return
  }
  func.func @transform_0(%arg0: i32, %arg1: i32, %arg2: i32) -> (i32, i32) {
    %c0_i32 = arith.constant 0 : i32
    return %arg0, %arg2 : i32, i32
  }
  func.func @transform_1(%arg0: i32, %arg1: i32, %arg2: i32) -> (i32, i32) {
    %c0_i32 = arith.constant 0 : i32
    return %arg2, %arg1 : i32, i32
  }
  func.func @transform_2(%arg0: i32, %arg1: i32, %arg2: i32) -> (i32, i32) {
    %c0_i32 = arith.constant 0 : i32
    %c0_i32_0 = arith.constant 0 : i32
    return %c0_i32, %arg1 : i32, i32
  }
  func.func @transform_3(%arg0: i32, %arg1: i32, %arg2: i32) -> (i32, i32) {
    %c0_i32 = arith.constant 0 : i32
    return %arg0, %arg1 : i32, i32
  }
}

module attributes {stable_mosaic.version = 11 : i64} {
  func.func @_matmul_bias_relu_kernel(%arg0: i32, %arg1: i32, %arg2: i32, %arg3: memref<256x128xbf16, #tpu.memory_space<vmem>>, %arg4: memref<128x128xbf16, #tpu.memory_space<vmem>>, %arg5: memref<1x128xf32, #tpu.memory_space<vmem>>, %arg6: memref<256x128xf32, #tpu.memory_space<vmem>>, %arg7: memref<256x128xf32, #tpu.memory_space<vmem>>) attributes {dimension_semantics = [#tpu.dimension_semantics<parallel>, #tpu.dimension_semantics<parallel>, #tpu.dimension_semantics<arbitrary>], iteration_bounds = array<i64: 2, 1, 5>, scalar_prefetch = 0 : i64, scratch_operands = 1 : i64, tpu.core_type = #tpu.core_type<tc>, window_params = [{transform_indices = @transform_0, window_bounds = array<i64: 256, 128>}, {transform_indices = @transform_1, window_bounds = array<i64: 128, 128>}, {transform_indices = @transform_2, window_bounds = array<i64: 1, 128>}, {transform_indices = @transform_3, window_bounds = array<i64: 256, 128>}]} {
    %c0_i32 = arith.constant 0 : i32
    %0 = arith.cmpi eq, %arg2, %c0_i32 : i32
    %1 = arith.extui %0 : i1 to i32
    %c0_i32_0 = arith.constant 0 : i32
    %2 = arith.cmpi ne, %1, %c0_i32_0 : i32
    scf.if %2 {
      %cst_9 = arith.constant 0.000000e+00 : f32
      %12 = vector.broadcast %cst_9 : f32 to vector<256x128xf32>
      %c0_10 = arith.constant 0 : index
      %c0_11 = arith.constant 0 : index
      %13 = vector.load %arg7[%c0_10, %c0_11] : memref<256x128xf32, #tpu.memory_space<vmem>>, vector<256x128xf32>
      tpu.vector_store %arg7[%c0_10, %c0_11], %12 {strides = array<i32>} : memref<256x128xf32, #tpu.memory_space<vmem>>, vector<256x128xf32>,
    } else {
    }
    %c0 = arith.constant 0 : index
    %c0_1 = arith.constant 0 : index
    %3 = vector.load %arg7[%c0, %c0_1] : memref<256x128xf32, #tpu.memory_space<vmem>>, vector<256x128xf32>
    %c0_2 = arith.constant 0 : index
    %c0_3 = arith.constant 0 : index
    %4 = vector.load %arg3[%c0_2, %c0_3] : memref<256x128xbf16, #tpu.memory_space<vmem>>, vector<256x128xbf16>
    %c0_4 = arith.constant 0 : index
    %c0_5 = arith.constant 0 : index
    %5 = vector.load %arg4[%c0_4, %c0_5] : memref<128x128xbf16, #tpu.memory_space<vmem>>, vector<128x128xbf16>
    %cst = arith.constant dense<0.000000e+00> : vector<256x128xf32>
    %6 = tpu.matmul %4, %5, %cst {dimension_numbers = #tpu.dot_dimension_numbers<[1], [0], [0], [1], [0, 0, 1, 1], [], []>} : vector<256x128xbf16>, vector<128x128xbf16>, vector<256x128xf32> -> vector<256x128xf32>
    %7 = arith.addf %3, %6 : vector<256x128xf32>
    %c0_6 = arith.constant 0 : index
    %c0_7 = arith.constant 0 : index
    %8 = vector.load %arg7[%c0_6, %c0_7] : memref<256x128xf32, #tpu.memory_space<vmem>>, vector<256x128xf32>
    tpu.vector_store %arg7[%c0_6, %c0_7], %7 {strides = array<i32>} : memref<256x128xf32, #tpu.memory_space<vmem>>, vector<256x128xf32>,
    %c4_i32 = arith.constant 4 : i32
    %9 = arith.cmpi eq, %arg2, %c4_i32 : i32
    %10 = arith.extui %9 : i1 to i32
    %c0_i32_8 = arith.constant 0 : i32
    %11 = arith.cmpi ne, %10, %c0_i32_8 : i32
    scf.if %11 {
      %c0_9 = arith.constant 0 : index
      %c0_10 = arith.constant 0 : index
      %12 = vector.load %arg7[%c0_9, %c0_10] : memref<256x128xf32, #tpu.memory_space<vmem>>, vector<256x128xf32>
      %c0_11 = arith.constant 0 : index
      %c0_12 = arith.constant 0 : index
      %13 = vector.load %arg5[%c0_11, %c0_12] : memref<1x128xf32, #tpu.memory_space<vmem>>, vector<1x128xf32>
      %14 = vector.broadcast %13 : vector<1x128xf32> to vector<256x128xf32>
      %15 = arith.addf %12, %14 : vector<256x128xf32>
      %cst_13 = arith.constant 0.000000e+00 : f32
      %16 = vector.broadcast %cst_13 : f32 to vector<256x128xf32>
      %17 = arith.maximumf %15, %16 : vector<256x128xf32>
      %c0_14 = arith.constant 0 : index
      %c0_15 = arith.constant 0 : index
      %18 = vector.load %arg6[%c0_14, %c0_15] : memref<256x128xf32, #tpu.memory_space<vmem>>, vector<256x128xf32>
      tpu.vector_store %arg6[%c0_14, %c0_15], %17 {strides = array<i32>} : memref<256x128xf32, #tpu.memory_space<vmem>>, vector<256x128xf32>,
    } else {
    }
    return
  }
  func.func @transform_0(%arg0: i32, %arg1: i32, %arg2: i32) -> (i32, i32) {
    %c0_i32 = arith.constant 0 : i32
    return %arg0, %arg2 : i32, i32
  }
  func.func @transform_1(%arg0: i32, %arg1: i32, %arg2: i32) -> (i32, i32) {
    %c0_i32 = arith.constant 0 : i32
    return %arg2, %arg1 : i32, i32
  }
  func.func @transform_2(%arg0: i32, %arg1: i32, %arg2: i32) -> (i32, i32) {
    %c0_i32 = arith.constant 0 : i32
    %c0_i32_0 = arith.constant 0 : i32
    return %c0_i32, %arg1 : i32, i32
  }
  func.func @transform_3(%arg0: i32, %arg1: i32, %arg2: i32) -> (i32, i32) {
    %c0_i32 = arith.constant 0 : i32
    return %arg0, %arg1 : i32, i32
  }
}

module attributes {stable_mosaic.version = 11 : i64} {
  func.func @_matmul_bias_relu_kernel(%arg0: i32, %arg1: i32, %arg2: i32, %arg3: memref<256x128xbf16, #tpu.memory_space<vmem>>, %arg4: memref<128x128xbf16, #tpu.memory_space<vmem>>, %arg5: memref<1x128xf32, #tpu.memory_space<vmem>>, %arg6: memref<256x128xf32, #tpu.memory_space<vmem>>, %arg7: memref<256x128xf32, #tpu.memory_space<vmem>>) attributes {dimension_semantics = [#tpu.dimension_semantics<parallel>, #tpu.dimension_semantics<parallel>, #tpu.dimension_semantics<arbitrary>], iteration_bounds = array<i64: 2, 1, 7>, scalar_prefetch = 0 : i64, scratch_operands = 1 : i64, tpu.core_type = #tpu.core_type<tc>, window_params = [{transform_indices = @transform_0, window_bounds = array<i64: 256, 128>}, {transform_indices = @transform_1, window_bounds = array<i64: 128, 128>}, {transform_indices = @transform_2, window_bounds = array<i64: 1, 128>}, {transform_indices = @transform_3, window_bounds = array<i64: 256, 128>}]} {
    %c0_i32 = arith.constant 0 : i32
    %0 = arith.cmpi eq, %arg2, %c0_i32 : i32
    %1 = arith.extui %0 : i1 to i32
    %c0_i32_0 = arith.constant 0 : i32
    %2 = arith.cmpi ne, %1, %c0_i32_0 : i32
    scf.if %2 {
      %cst_9 = arith.constant 0.000000e+00 : f32
      %12 = vector.broadcast %cst_9 : f32 to vector<256x128xf32>
      %c0_10 = arith.constant 0 : index
      %c0_11 = arith.constant 0 : index
      %13 = vector.load %arg7[%c0_10, %c0_11] : memref<256x128xf32, #tpu.memory_space<vmem>>, vector<256x128xf32>
      tpu.vector_store %arg7[%c0_10, %c0_11], %12 {strides = array<i32>} : memref<256x128xf32, #tpu.memory_space<vmem>>, vector<256x128xf32>,
    } else {
    }
    %c0 = arith.constant 0 : index
    %c0_1 = arith.constant 0 : index
    %3 = vector.load %arg7[%c0, %c0_1] : memref<256x128xf32, #tpu.memory_space<vmem>>, vector<256x128xf32>
    %c0_2 = arith.constant 0 : index
    %c0_3 = arith.constant 0 : index
    %4 = vector.load %arg3[%c0_2, %c0_3] : memref<256x128xbf16, #tpu.memory_space<vmem>>, vector<256x128xbf16>
    %c0_4 = arith.constant 0 : index
    %c0_5 = arith.constant 0 : index
    %5 = vector.load %arg4[%c0_4, %c0_5] : memref<128x128xbf16, #tpu.memory_space<vmem>>, vector<128x128xbf16>
    %cst = arith.constant dense<0.000000e+00> : vector<256x128xf32>
    %6 = tpu.matmul %4, %5, %cst {dimension_numbers = #tpu.dot_dimension_numbers<[1], [0], [0], [1], [0, 0, 1, 1], [], []>} : vector<256x128xbf16>, vector<128x128xbf16>, vector<256x128xf32> -> vector<256x128xf32>
    %7 = arith.addf %3, %6 : vector<256x128xf32>
    %c0_6 = arith.constant 0 : index
    %c0_7 = arith.constant 0 : index
    %8 = vector.load %arg7[%c0_6, %c0_7] : memref<256x128xf32, #tpu.memory_space<vmem>>, vector<256x128xf32>
    tpu.vector_store %arg7[%c0_6, %c0_7], %7 {strides = array<i32>} : memref<256x128xf32, #tpu.memory_space<vmem>>, vector<256x128xf32>,
    %c6_i32 = arith.constant 6 : i32
    %9 = arith.cmpi eq, %arg2, %c6_i32 : i32
    %10 = arith.extui %9 : i1 to i32
    %c0_i32_8 = arith.constant 0 : i32
    %11 = arith.cmpi ne, %10, %c0_i32_8 : i32
    scf.if %11 {
      %c0_9 = arith.constant 0 : index
      %c0_10 = arith.constant 0 : index
      %12 = vector.load %arg7[%c0_9, %c0_10] : memref<256x128xf32, #tpu.memory_space<vmem>>, vector<256x128xf32>
      %c0_11 = arith.constant 0 : index
      %c0_12 = arith.constant 0 : index
      %13 = vector.load %arg5[%c0_11, %c0_12] : memref<1x128xf32, #tpu.memory_space<vmem>>, vector<1x128xf32>
      %14 = vector.broadcast %13 : vector<1x128xf32> to vector<256x128xf32>
      %15 = arith.addf %12, %14 : vector<256x128xf32>
      %cst_13 = arith.constant 0.000000e+00 : f32
      %16 = vector.broadcast %cst_13 : f32 to vector<256x128xf32>
      %17 = arith.maximumf %15, %16 : vector<256x128xf32>
      %c0_14 = arith.constant 0 : index
      %c0_15 = arith.constant 0 : index
      %18 = vector.load %arg6[%c0_14, %c0_15] : memref<256x128xf32, #tpu.memory_space<vmem>>, vector<256x128xf32>
      tpu.vector_store %arg6[%c0_14, %c0_15], %17 {strides = array<i32>} : memref<256x128xf32, #tpu.memory_space<vmem>>, vector<256x128xf32>,
    } else {
    }
    return
  }
  func.func @transform_0(%arg0: i32, %arg1: i32, %arg2: i32) -> (i32, i32) {
    %c0_i32 = arith.constant 0 : i32
    return %arg0, %arg2 : i32, i32
  }
  func.func @transform_1(%arg0: i32, %arg1: i32, %arg2: i32) -> (i32, i32) {
    %c0_i32 = arith.constant 0 : i32
    return %arg2, %arg1 : i32, i32
  }
  func.func @transform_2(%arg0: i32, %arg1: i32, %arg2: i32) -> (i32, i32) {
    %c0_i32 = arith.constant 0 : i32
    %c0_i32_0 = arith.constant 0 : i32
    return %c0_i32, %arg1 : i32, i32
  }
  func.func @transform_3(%arg0: i32, %arg1: i32, %arg2: i32) -> (i32, i32) {
    %c0_i32 = arith.constant 0 : i32
    return %arg0, %arg1 : i32, i32
  }
}

</mosaic_0001>

<llo_original>
// kernel: inception_a.8
$region0: #{inception_a.8}
  #allocation0 [shape = 'u32[]', space=smem, size = 0x4, offset = 0x4, fixed_abs, tag = 'smem constant byte address 0x4 - core index']
  #allocation1 [shape = 'u32[144,128]{1,0:T(1,128)}', space=vmem, size = 0x12000, scoped, tag = 'internal scratch']
  #allocation2 [shape = 'f32[256,128]{1,0:T(8,128)}', space=vmem, size = 0x20000, scoped, tag = 'scratch operand']
  %s0 = inlined_call_operand.vmem [shape: bf16[512,128], index: 0, kind: input, shape index: {}]
  %s1 = inlined_call_operand.vmem [shape: bf16[128,128], index: 1, kind: input, shape index: {}]
  %s2 = inlined_call_operand.vmem [shape: f32[1,128], index: 2, kind: input, shape index: {}]
  %s3 = inlined_call_operand.vmem [shape: f32[512,128], index: 3, kind: output, shape index: {}]
  %s4 = sld [smem:[#allocation0]]
  $region53: #{inception_a.8} parent=0
    _
  %s6 = ssub.s32 1, %s4
  %s7 = scalar_select 0, %s6, %s4
  loop: start=0, step=1, limit=4
  $region2: #{inception_a.8} parent=0 // loop_pre_header
    _
  $region3: #{inception_a.8} parent=0 // loop_header
    %s9 = sphi 0, %s13
    %p10 = scmp.ge.s32.totalorder %s9, 4
    %s16 = sphi 0, %s35
    %s17 = sphi 0, %s31
    %s18 = sphi 0, %s27
    %s19 = sphi 0, %s16
    %s20 = sphi 0, %s17
    %s21 = sphi 0, %s18
    %s22 = sphi 0, %s19
    %s23 = sphi 0, %s20
    %s24 = sphi 0, %s21
    %s40 = sphi 0, %s42
    %s43 = sphi 0, %s40
    %s44 = sphi 0, %s43
    %s60 = sphi 0, %s44
    %s68 = sphi 0, %s70
    %s71 = sphi 0, %s68
    %s72 = sphi 0, %s71
    %s88 = sphi 0, %s72
    %s94 = sphi 0, %s96
    %s97 = sphi 0, %s94
    %s98 = sphi 0, %s97
    %s114 = sphi 0, %s98
    %s122 = sphi 0, %s124
    %s125 = sphi 0, %s122
    %s126 = sphi 0, %s125
    %s142 = sphi 0, %s126
  $region4: #{inception_a.8} parent=0 // loop_header_branch
    %12 = sbr.rel (%p10) target = $region8
  $region5: #{inception_a.8} parent=0 // loop_body
    %s14 = ssub.s32 %s9, 1
    %s15 = ssub.s32 %s9, 2
    %s25 = sadd.s32 1, %s18
    %p26 = scmp.ge.s32.totalorder %s25, 1
    %s27 = scalar_select %p26, 0, %s25
    %s28 = sadd.s32 1, %s17
    %s29 = scalar_select %p26, %s28, %s17
    %p30 = scmp.ge.s32.totalorder %s29, 1
    %s31 = scalar_select %p30, 0, %s29
    %s32 = sadd.s32 1, %s16
    %s33 = scalar_select %p30, %s32, %s16
    %p34 = scmp.ge.s32.totalorder %s33, 2
    %s35 = scalar_select %p34, 0, %s33
    %s36 = ssub.s32 %s16, %s35
    %s37 = ssub.s32 %s18, %s27
    %s38 = sor.u32 %s36, %s37
    %p39 = scmp.eq.s32.totalorder %s38, 0
    %s41 = sadd.s32 %s40, 1
    %s42 = scalar_select %p39, %s40, %s41
    %p45 = pneg %p39
    %p46 = scmp.eq.s32.totalorder %s9, 1
    %p47 = por %p45, %p46
    %p48 = scmp.ne.s32.totalorder %s40, %s43
    %p49 = scmp.eq.s32.totalorder %s9, 0
    %p50 = por %p48, %p49
    %p51 = scmp.ne.s32.totalorder %s40, %s43
    %p52 = scmp.eq.s32.totalorder %s14, 1
    %p53 = por %p51, %p52
    %p54 = scmp.ne.s32.totalorder %s43, %s44
    %p55 = scmp.eq.s32.totalorder %s14, 0
    %p56 = por %p54, %p55
    %p57 = scmp.ne.s32.totalorder %s43, %s44
    %p58 = scmp.eq.s32.totalorder %s15, 1
    %p59 = por %p57, %p58
    %p61 = scmp.ne.s32.totalorder %s44, %s60
    %p62 = scmp.eq.s32.totalorder %s15, 0
    %p63 = por %p61, %p62
    %s64 = ssub.s32 %s18, %s27
    %s65 = ssub.s32 %s17, %s31
    %s66 = sor.u32 %s64, %s65
    %p67 = scmp.eq.s32.totalorder %s66, 0
    %s69 = sadd.s32 %s68, 1
    %s70 = scalar_select %p67, %s68, %s69
    %p73 = pneg %p67
    %p74 = scmp.eq.s32.totalorder %s9, 1
    %p75 = por %p73, %p74
    %p76 = scmp.ne.s32.totalorder %s68, %s71
    %p77 = scmp.eq.s32.totalorder %s9, 0
    %p78 = por %p76, %p77
    %p79 = scmp.ne.s32.totalorder %s68, %s71
    %p80 = scmp.eq.s32.totalorder %s14, 1
    %p81 = por %p79, %p80
    %p82 = scmp.ne.s32.totalorder %s71, %s72
    %p83 = scmp.eq.s32.totalorder %s14, 0
    %p84 = por %p82, %p83
    %p85 = scmp.ne.s32.totalorder %s71, %s72
    %p86 = scmp.eq.s32.totalorder %s15, 1
    %p87 = por %p85, %p86
    %p89 = scmp.ne.s32.totalorder %s72, %s88
    %p90 = scmp.eq.s32.totalorder %s15, 0
    %p91 = por %p89, %p90
    %s92 = ssub.s32 %s17, %s31
    %p93 = scmp.eq.s32.totalorder %s92, 0
    %s95 = sadd.s32 %s94, 1
    %s96 = scalar_select %p93, %s94, %s95
    %p99 = pneg %p93
    %p100 = scmp.eq.s32.totalorder %s9, 1
    %p101 = por %p99, %p100
    %p102 = scmp.ne.s32.totalorder %s94, %s97
    %p103 = scmp.eq.s32.totalorder %s9, 0
    %p104 = por %p102, %p103
    %p105 = scmp.ne.s32.totalorder %s94, %s97
    %p106 = scmp.eq.s32.totalorder %s14, 1
    %p107 = por %p105, %p106
    %p108 = scmp.ne.s32.totalorder %s97, %s98
    %p109 = scmp.eq.s32.totalorder %s14, 0
    %p110 = por %p108, %p109
    %p111 = scmp.ne.s32.totalorder %s97, %s98
    %p112 = scmp.eq.s32.totalorder %s15, 1
    %p113 = por %p111, %p112
    %p115 = scmp.ne.s32.totalorder %s98, %s114
    %p116 = scmp.eq.s32.totalorder %s15, 0
    %p117 = por %p115, %p116
    %s118 = ssub.s32 %s16, %s35
    %s119 = ssub.s32 %s17, %s31
    %s120 = sor.u32 %s118, %s119
    %p121 = scmp.eq.s32.totalorder %s120, 0
    %s123 = sadd.s32 %s122, 1
    %s124 = scalar_select %p121, %s122, %s123
    %p127 = pneg %p121
    %p128 = scmp.eq.s32.totalorder %s9, 1
    %p129 = por %p127, %p128
    %p130 = scmp.ne.s32.totalorder %s122, %s125
    %p131 = scmp.eq.s32.totalorder %s9, 0
    %p132 = por %p130, %p131
    %p133 = scmp.ne.s32.totalorder %s122, %s125
    %p134 = scmp.eq.s32.totalorder %s14, 1
    %p135 = por %p133, %p134
    %p136 = scmp.ne.s32.totalorder %s125, %s126
    %p137 = scmp.eq.s32.totalorder %s14, 0
    %p138 = por %p136, %p137
    %p139 = scmp.ne.s32.totalorder %s125, %s126
    %p140 = scmp.eq.s32.totalorder %s15, 1
    %p141 = por %p139, %p140
    %p143 = scmp.ne.s32.totalorder %s126, %s142
    %p144 = scmp.eq.s32.totalorder %s15, 0
    %p145 = por %p143, %p144
    %p146 = scmp.le.s32.totalorder 1, %s9
    %p147 = scmp.lt.s32.totalorder %s9, 3
    %p148 = pnand %p146, %p147
    %p149 = pneg %p148
    // Predicated region
    $region9: #{inception_a.8} parent=5 // pred_check
      _
    $region10: #{inception_a.8} parent=5 // pred_check_branch
      %151 = sbr.rel (%p148) target = $region12
    $region11: #{inception_a.8} parent=5 // pred_region
      %s152 = ssub.s32 %s9, 1
      // Predicated region
      $region13: #{inception_a.8} parent=11 // pred_check
        %p153 = pneg %p84
      $region14: #{inception_a.8} parent=11 // pred_check_branch
        %155 = sbr.rel (%p153) target = $region16
      $region15: #{inception_a.8} parent=11 // pred_region
        %s156 = smul.u32 16, %s21
        %p157 = scmp.lt.s32.totalorder %s156, 15
        %s158 = scalar_select %p157, %s156, 15
        %p159 = scmp.lt.s32.totalorder %s20, 0
        %s160 = scalar_select %p159, %s20, 0
        %s161 = sadd.s32 %s160, %s158
        %s162 = smul.addr %s161, 4
        %s163 = scalar_lea.vmem %s1, %s162
        %s164 = smul.u32 16, %s21
      $region16: #{inception_a.8} parent=11 // pred_fallthru
        _
      // Predicated region
      $region17: #{inception_a.8} parent=11 // pred_check
        %p165 = pneg %p110
      $region18: #{inception_a.8} parent=11 // pred_check_branch
        %167 = sbr.rel (%p165) target = $region20
      $region19: #{inception_a.8} parent=11 // pred_region
        %p168 = scmp.lt.s32.totalorder %s20, 0
        %s169 = scalar_select %p168, %s20, 0
        %s170 = scalar_lea.vmem %s2, %s169
      $region20: #{inception_a.8} parent=11 // pred_fallthru
        _
    $region12: #{inception_a.8} parent=5 // pred_fallthru
      _
    %p171 = scmp.lt.s32.totalorder %s9, 2
    // Predicated region
    $region21: #{inception_a.8} parent=5 // pred_check
      %p172 = pneg %p171
    $region22: #{inception_a.8} parent=5 // pred_check_branch
      %174 = sbr.rel (%p172) target = $region24
    $region23: #{inception_a.8} parent=5 // pred_region
      // Predicated region
      $region25: #{inception_a.8} parent=23 // pred_check
        %p175 = pneg %p50
      $region26: #{inception_a.8} parent=23 // pred_check_branch
        %177 = sbr.rel (%p175) target = $region28
      $region27: #{inception_a.8} parent=23 // pred_region
        %s178 = smul.u32 32, %s16
        %p179 = scmp.lt.s32.totalorder %s178, 63
        %s180 = scalar_select %p179, %s178, 63
        %p181 = scmp.lt.s32.totalorder %s18, 0
        %s182 = scalar_select %p181, %s18, 0
        %s183 = sadd.s32 %s182, %s180
        %s184 = smul.addr %s183, 4
        %s185 = scalar_lea.vmem %s0, %s184
        %s186 = smul.u32 32, %s16
      $region28: #{inception_a.8} parent=23 // pred_fallthru
        _
    $region24: #{inception_a.8} parent=5 // pred_fallthru
      _
    %p187 = scmp.le.s32.totalorder 1, %s9
    %p188 = scmp.lt.s32.totalorder %s9, 3
    %p189 = pnand %p187, %p188
    %p190 = pneg %p189
    // Predicated region
    $region29: #{inception_a.8} parent=5 // pred_check
      _
    $region30: #{inception_a.8} parent=5 // pred_check_branch
      %192 = sbr.rel (%p189) target = $region32
    $region31: #{inception_a.8} parent=5 // pred_region
      %s193 = ssub.s32 %s9, 1
      %s194 = smul.u32 32, %s19
      %p195 = scmp.lt.s32.totalorder %s194, 63
      %s196 = scalar_select %p195, %s194, 63
      %p197 = scmp.lt.s32.totalorder %s21, 0
      %s198 = scalar_select %p197, %s21, 0
      %s199 = sadd.s32 %s198, %s196
      %s200 = smul.addr %s199, 4
      %s201 = scalar_lea.vmem %s0, %s200
      %p202 = pneg %p56
      %p203 = pneg %p53
      %s204 = smul.u32 16, %s21
      %p205 = scmp.lt.s32.totalorder %s204, 15
      %s206 = scalar_select %p205, %s204, 15
      %p207 = scmp.lt.s32.totalorder %s20, 0
      %s208 = scalar_select %p207, %s20, 0
      %s209 = sadd.s32 %s208, %s206
      %s210 = smul.addr %s209, 4
      %s211 = scalar_lea.vmem %s1, %s210
      %p212 = pneg %p84
      %p213 = pneg %p81
      %p214 = scmp.lt.s32.totalorder %s20, 0
      %s215 = scalar_select %p214, %s20, 0
      %s216 = scalar_lea.vmem %s2, %s215
      %p217 = pneg %p110
      %p218 = pneg %p107
      %p219 = pneg %p138
      %p220 = pneg %p135
      %s221 = smul.u32 32, %s19
      %p222 = scmp.lt.s32.totalorder %s221, 63
      %s223 = scalar_select %p222, %s221, 63
      %p224 = scmp.lt.s32.totalorder %s20, 0
      %s225 = scalar_select %p224, %s20, 0
      %s226 = sadd.s32 %s225, %s223
      %s227 = smul.addr %s226, 8
      %s228 = scalar_lea.vmem %s3, %s227
      %s229 = smul.u32 32, %s19
      %p230 = scmp.lt.s32.totalorder %s229, 63
      %s231 = scalar_select %p230, %s229, 63
      %p232 = scmp.lt.s32.totalorder %s21, 0
      %s233 = scalar_select %p232, %s21, 0
      %s234 = sadd.s32 %s233, %s231
      %s235 = smul.addr %s234, 4
      %s236 = scalar_lea.vmem %s0, %s235
      %s237 = smul.u32 32, %s19
      %s238 = smul.u32 16, %s21
      %p239 = scmp.lt.s32.totalorder %s238, 15
      %s240 = scalar_select %p239, %s238, 15
      %p241 = scmp.lt.s32.totalorder %s20, 0
      %s242 = scalar_select %p241, %s20, 0
      %s243 = sadd.s32 %s242, %s240
      %s244 = smul.addr %s243, 4
      %s245 = scalar_lea.vmem %s1, %s244
      %s246 = smul.u32 16, %s21
      %p247 = scmp.lt.s32.totalorder %s20, 0
      %s248 = scalar_select %p247, %s20, 0
      %s249 = scalar_lea.vmem %s2, %s248
      %s250 = smul.u32 32, %s19
      %p251 = scmp.lt.s32.totalorder %s250, 63
      %s252 = scalar_select %p251, %s250, 63
      %p253 = scmp.lt.s32.totalorder %s20, 0
      %s254 = scalar_select %p253, %s20, 0
      %s255 = sadd.s32 %s254, %s252
      %s256 = smul.addr %s255, 8
      %s257 = scalar_lea.vmem %s3, %s256
      %s258 = smul.u32 32, %s19
      %p260 = scmp.eq.s32.totalorder %s21, 0
      // Predicated region
      $region33: #{inception_a.8} parent=31 // pred_check
        %p261 = pneg %p260
      $region34: #{inception_a.8} parent=31 // pred_check_branch
        %263 = sbr.rel (%p261) target = $region36
      $region35: #{inception_a.8} parent=31 // pred_region
        %264 = vst [vmem:[#allocation2] sm:$0xff] 0.0
        %265 = vst [vmem:[#allocation2 + $0x8] sm:$0xff] 0.0
        %266 = vst [vmem:[#allocation2 + $0x10] sm:$0xff] 0.0
        %267 = vst [vmem:[#allocation2 + $0x18] sm:$0xff] 0.0
        %268 = vst [vmem:[#allocation2 + $0x20] sm:$0xff] 0.0
        %269 = vst [vmem:[#allocation2 + $0x28] sm:$0xff] 0.0
        %270 = vst [vmem:[#allocation2 + $0x30] sm:$0xff] 0.0
        %271 = vst [vmem:[#allocation2 + $0x38] sm:$0xff] 0.0
        %272 = vst [vmem:[#allocation2 + $0x40] sm:$0xff] 0.0
        %273 = vst [vmem:[#allocation2 + $0x48] sm:$0xff] 0.0
        %274 = vst [vmem:[#allocation2 + $0x50] sm:$0xff] 0.0
        %275 = vst [vmem:[#allocation2 + $0x58] sm:$0xff] 0.0
        %276 = vst [vmem:[#allocation2 + $0x60] sm:$0xff] 0.0
        %277 = vst [vmem:[#allocation2 + $0x68] sm:$0xff] 0.0
        %278 = vst [vmem:[#allocation2 + $0x70] sm:$0xff] 0.0
        %279 = vst [vmem:[#allocation2 + $0x78] sm:$0xff] 0.0
        %280 = vst [vmem:[#allocation2 + $0x80] sm:$0xff] 0.0
        %281 = vst [vmem:[#allocation2 + $0x88] sm:$0xff] 0.0
        %282 = vst [vmem:[#allocation2 + $0x90] sm:$0xff] 0.0
        %283 = vst [vmem:[#allocation2 + $0x98] sm:$0xff] 0.0
        %284 = vst [vmem:[#allocation2 + $0xa0] sm:$0xff] 0.0
        %285 = vst [vmem:[#allocation2 + $0xa8] sm:$0xff] 0.0
        %286 = vst [vmem:[#allocation2 + $0xb0] sm:$0xff] 0.0
        %287 = vst [vmem:[#allocation2 + $0xb8] sm:$0xff] 0.0
        %288 = vst [vmem:[#allocation2 + $0xc0] sm:$0xff] 0.0
        %289 = vst [vmem:[#allocation2 + $0xc8] sm:$0xff] 0.0
        %290 = vst [vmem:[#allocation2 + $0xd0] sm:$0xff] 0.0
        %291 = vst [vmem:[#allocation2 + $0xd8] sm:$0xff] 0.0
        %292 = vst [vmem:[#allocation2 + $0xe0] sm:$0xff] 0.0
        %293 = vst [vmem:[#allocation2 + $0xe8] sm:$0xff] 0.0
        %294 = vst [vmem:[#allocation2 + $0xf0] sm:$0xff] 0.0
        %295 = vst [vmem:[#allocation2 + $0xf8] sm:$0xff] 0.0
      $region36: #{inception_a.8} parent=31 // pred_fallthru
        _
      %v296 = vld [vmem:[#allocation2] sm:$0xff]
      %v297 = vld [vmem:[#allocation2 + $0x8] sm:$0xff]
      %v298 = vld [vmem:[#allocation2 + $0x10] sm:$0xff]
      %v299 = vld [vmem:[#allocation2 + $0x18] sm:$0xff]
      %v300 = vld [vmem:[#allocation2 + $0x20] sm:$0xff]
      %v301 = vld [vmem:[#allocation2 + $0x28] sm:$0xff]
      %v302 = vld [vmem:[#allocation2 + $0x30] sm:$0xff]
      %v303 = vld [vmem:[#allocation2 + $0x38] sm:$0xff]
      %v304 = vld [vmem:[#allocation2 + $0x40] sm:$0xff]
      %v305 = vld [vmem:[#allocation2 + $0x48] sm:$0xff]
      %v306 = vld [vmem:[#allocation2 + $0x50] sm:$0xff]
      %v307 = vld [vmem:[#allocation2 + $0x58] sm:$0xff]
      %v308 = vld [vmem:[#allocation2 + $0x60] sm:$0xff]
      %v309 = vld [vmem:[#allocation2 + $0x68] sm:$0xff]
      %v310 = vld [vmem:[#allocation2 + $0x70] sm:$0xff]
      %v311 = vld [vmem:[#allocation2 + $0x78] sm:$0xff]
      %v312 = vld [vmem:[#allocation2 + $0x80] sm:$0xff]
      %v313 = vld [vmem:[#allocation2 + $0x88] sm:$0xff]
      %v314 = vld [vmem:[#allocation2 + $0x90] sm:$0xff]
      %v315 = vld [vmem:[#allocation2 + $0x98] sm:$0xff]
      %v316 = vld [vmem:[#allocation2 + $0xa0] sm:$0xff]
      %v317 = vld [vmem:[#allocation2 + $0xa8] sm:$0xff]
      %v318 = vld [vmem:[#allocation2 + $0xb0] sm:$0xff]
      %v319 = vld [vmem:[#allocation2 + $0xb8] sm:$0xff]
      %v320 = vld [vmem:[#allocation2 + $0xc0] sm:$0xff]
      %v321 = vld [vmem:[#allocation2 + $0xc8] sm:$0xff]
      %v322 = vld [vmem:[#allocation2 + $0xd0] sm:$0xff]
      %v323 = vld [vmem:[#allocation2 + $0xd8] sm:$0xff]
      %v324 = vld [vmem:[#allocation2 + $0xe0] sm:$0xff]
      %v325 = vld [vmem:[#allocation2 + $0xe8] sm:$0xff]
      %v326 = vld [vmem:[#allocation2 + $0xf0] sm:$0xff]
      %v327 = vld [vmem:[#allocation2 + $0xf8] sm:$0xff]
      %v328 = vld [vmem:[%s236] sm:$0xf]
      %v329 = vld [vmem:[%s236 + $0x4] sm:$0xf]
      %v330 = vld [vmem:[%s236 + $0x8] sm:$0xf]
      %v331 = vld [vmem:[%s236 + $0xc] sm:$0xf]
      %v332 = vld [vmem:[%s236 + $0x10] sm:$0xf]
      %v333 = vld [vmem:[%s236 + $0x14] sm:$0xf]
      %v334 = vld [vmem:[%s236 + $0x18] sm:$0xf]
      %v335 = vld [vmem:[%s236 + $0x1c] sm:$0xf]
      %v336 = vld [vmem:[%s236 + $0x20] sm:$0xf]
      %v337 = vld [vmem:[%s236 + $0x24] sm:$0xf]
      %v338 = vld [vmem:[%s236 + $0x28] sm:$0xf]
      %v339 = vld [vmem:[%s236 + $0x2c] sm:$0xf]
      %v340 = vld [vmem:[%s236 + $0x30] sm:$0xf]
      %v341 = vld [vmem:[%s236 + $0x34] sm:$0xf]
      %v342 = vld [vmem:[%s236 + $0x38] sm:$0xf]
      %v343 = vld [vmem:[%s236 + $0x3c] sm:$0xf]
      %v344 = vld [vmem:[%s236 + $0x40] sm:$0xf]
      %v345 = vld [vmem:[%s236 + $0x44] sm:$0xf]
      %v346 = vld [vmem:[%s236 + $0x48] sm:$0xf]
      %v347 = vld [vmem:[%s236 + $0x4c] sm:$0xf]
      %v348 = vld [vmem:[%s236 + $0x50] sm:$0xf]
      %v349 = vld [vmem:[%s236 + $0x54] sm:$0xf]
      %v350 = vld [vmem:[%s236 + $0x58] sm:$0xf]
      %v351 = vld [vmem:[%s236 + $0x5c] sm:$0xf]
      %v352 = vld [vmem:[%s236 + $0x60] sm:$0xf]
      %v353 = vld [vmem:[%s236 + $0x64] sm:$0xf]
      %v354 = vld [vmem:[%s236 + $0x68] sm:$0xf]
      %v355 = vld [vmem:[%s236 + $0x6c] sm:$0xf]
      %v356 = vld [vmem:[%s236 + $0x70] sm:$0xf]
      %v357 = vld [vmem:[%s236 + $0x74] sm:$0xf]
      %v358 = vld [vmem:[%s236 + $0x78] sm:$0xf]
      %v359 = vld [vmem:[%s236 + $0x7c] sm:$0xf]
      %v360 = vld [vmem:[%s245] sm:$0xf]
      %v361 = vld [vmem:[%s245 + $0x4] sm:$0xf]
      %v362 = vld [vmem:[%s245 + $0x8] sm:$0xf]
      %v363 = vld [vmem:[%s245 + $0xc] sm:$0xf]
      %v364 = vld [vmem:[%s245 + $0x10] sm:$0xf]
      %v365 = vld [vmem:[%s245 + $0x14] sm:$0xf]
      %v366 = vld [vmem:[%s245 + $0x18] sm:$0xf]
      %v367 = vld [vmem:[%s245 + $0x1c] sm:$0xf]
      %v368 = vld [vmem:[%s245 + $0x20] sm:$0xf]
      %v369 = vld [vmem:[%s245 + $0x24] sm:$0xf]
      %v370 = vld [vmem:[%s245 + $0x28] sm:$0xf]
      %v371 = vld [vmem:[%s245 + $0x2c] sm:$0xf]
      %v372 = vld [vmem:[%s245 + $0x30] sm:$0xf]
      %v373 = vld [vmem:[%s245 + $0x34] sm:$0xf]
      %v374 = vld [vmem:[%s245 + $0x38] sm:$0xf]
      %v375 = vld [vmem:[%s245 + $0x3c] sm:$0xf]
      %v408 = vunpack.c.l.b16 %v328
      %v409 = vunpack.c.l.b16 %v329
      %v410 = vunpack.c.l.b16 %v330
      %v411 = vunpack.c.l.b16 %v331
      %v412 = vunpack.c.l.b16 %v332
      %v413 = vunpack.c.l.b16 %v333
      %v414 = vunpack.c.l.b16 %v334
      %v415 = vunpack.c.l.b16 %v335
      %v416 = vunpack.c.l.b16 %v336
      %v417 = vunpack.c.l.b16 %v337
      %v418 = vunpack.c.l.b16 %v338
      %v419 = vunpack.c.l.b16 %v339
      %v420 = vunpack.c.l.b16 %v340
      %v421 = vunpack.c.l.b16 %v341
      %v422 = vunpack.c.l.b16 %v342
      %v423 = vunpack.c.l.b16 %v343
      %v424 = vunpack.c.l.b16 %v344
      %v425 = vunpack.c.l.b16 %v345
      %v426 = vunpack.c.l.b16 %v346
      %v427 = vunpack.c.l.b16 %v347
      %v428 = vunpack.c.l.b16 %v348
      %v429 = vunpack.c.l.b16 %v349
      %v430 = vunpack.c.l.b16 %v350
      %v431 = vunpack.c.l.b16 %v351
      %v432 = vunpack.c.l.b16 %v352
      %v433 = vunpack.c.l.b16 %v353
      %v434 = vunpack.c.l.b16 %v354
      %v435 = vunpack.c.l.b16 %v355
      %v436 = vunpack.c.l.b16 %v356
      %v437 = vunpack.c.l.b16 %v357
      %v438 = vunpack.c.l.b16 %v358
      %v439 = vunpack.c.l.b16 %v359
      %v440 = vpack.c.b16 %v409, %v408
      %v441 = vpack.c.b16 %v411, %v410
      %v442 = vpack.c.b16 %v413, %v412
      %v443 = vpack.c.b16 %v415, %v414
      %v444 = vpack.c.b16 %v417, %v416
      %v445 = vpack.c.b16 %v419, %v418
      %v446 = vpack.c.b16 %v421, %v420
      %v447 = vpack.c.b16 %v423, %v422
      %v448 = vpack.c.b16 %v425, %v424
      %v449 = vpack.c.b16 %v427, %v426
      %v450 = vpack.c.b16 %v429, %v428
      %v451 = vpack.c.b16 %v431, %v430
      %v452 = vpack.c.b16 %v433, %v432
      %v453 = vpack.c.b16 %v435, %v434
      %v454 = vpack.c.b16 %v437, %v436
      %v455 = vpack.c.b16 %v439, %v438
      %v488 = vunpack.c.l.b16 %v360
      %v489 = vunpack.c.l.b16 %v361
      %v490 = vunpack.c.l.b16 %v362
      %v491 = vunpack.c.l.b16 %v363
      %v492 = vunpack.c.l.b16 %v364
      %v493 = vunpack.c.l.b16 %v365
      %v494 = vunpack.c.l.b16 %v366
      %v495 = vunpack.c.l.b16 %v367
      %v496 = vunpack.c.l.b16 %v368
      %v497 = vunpack.c.l.b16 %v369
      %v498 = vunpack.c.l.b16 %v370
      %v499 = vunpack.c.l.b16 %v371
      %v500 = vunpack.c.l.b16 %v372
      %v501 = vunpack.c.l.b16 %v373
      %v502 = vunpack.c.l.b16 %v374
      %v503 = vunpack.c.l.b16 %v375
      %v504 = vpack.c.b16 %v489, %v488
      %v505 = vpack.c.b16 %v491, %v490
      %v506 = vpack.c.b16 %v493, %v492
      %v507 = vpack.c.b16 %v495, %v494
      %v508 = vpack.c.b16 %v497, %v496
      %v509 = vpack.c.b16 %v499, %v498
      %v510 = vpack.c.b16 %v501, %v500
      %v511 = vpack.c.b16 %v503, %v502
      %520 = vmatprep.subr.bf16.mxu0 0
      %521 = vmatpush1.bf16.msra.mxu0 %v504
      %522 = vmatprep.subr.bf16.mxu0 0
      %523 = vmatpush1.bf16.msra.mxu0 %v505
      %524 = vmatprep.subr.bf16.mxu0 0
      %525 = vmatpush1.bf16.msra.mxu0 %v506
      %526 = vmatprep.subr.bf16.mxu0 0
      %527 = vmatpush1.bf16.msra.mxu0 %v507
      %528 = vmatprep.subr.bf16.mxu0 0
      %529 = vmatpush1.bf16.msra.mxu0 %v508
      %530 = vmatprep.subr.bf16.mxu0 0
      %531 = vmatpush1.bf16.msra.mxu0 %v509
      %532 = vmatprep.subr.bf16.mxu0 0
      %533 = vmatpush1.bf16.msra.mxu0 %v510
      %534 = vmatprep.subr.bf16.mxu0 0
      %535 = vmatpush1.bf16.msra.mxu0 %v511
      %536 = vmatprep.subr.bf16.mxu0 0
      %537 = vmatpush1.bf16.msra.mxu0 0
      %538 = vmatprep.subr.bf16.mxu0 0
      %539 = vmatpush1.bf16.msra.mxu0 0
      %540 = vmatprep.subr.bf16.mxu0 0
      %541 = vmatpush1.bf16.msra.mxu0 0
      %542 = vmatprep.subr.bf16.mxu0 0
      %543 = vmatpush1.bf16.msra.mxu0 0
      %544 = vmatprep.subr.bf16.mxu0 0
      %545 = vmatpush1.bf16.msra.mxu0 0
      %546 = vmatprep.subr.bf16.mxu0 0
      %547 = vmatpush1.bf16.msra.mxu0 0
      %548 = vmatprep.subr.bf16.mxu0 0
      %549 = vmatpush1.bf16.msra.mxu0 0
      %550 = vmatprep.subr.bf16.mxu0 0
      %551 = vmatpush1.bf16.msra.mxu0 0
      %552 = vmatprep.mubr.bf16.mxu0 0
      %553 = vmatmul.mubr.bf16.gmra.mrb[0].mxu0 %v440
      %v554 = vpop.f32.mrb[0].mxu0
      %v555 = vadd.f32 0.0, %v554
      %v556 = vpop.f32.mrb[0].mxu0
      %v557 = vpop.f32.mrb[0].mxu0
      %v558 = vadd.f32 0.0, %v557
      %v559 = vpop.f32.mrb[0].mxu0
      %560 = vmatprep.mubr.bf16.mxu0 0
      %561 = vmatmul.mubr.bf16.gmra.mrb[0].mxu0 %v441
      %v562 = vpop.f32.mrb[0].mxu0
      %v563 = vadd.f32 0.0, %v562
      %v564 = vpop.f32.mrb[0].mxu0
      %v565 = vpop.f32.mrb[0].mxu0
      %v566 = vadd.f32 0.0, %v565
      %v567 = vpop.f32.mrb[0].mxu0
      %568 = vmatprep.mubr.bf16.mxu0 0
      %569 = vmatmul.mubr.bf16.gmra.mrb[0].mxu0 %v442
      %v570 = vpop.f32.mrb[0].mxu0
      %v571 = vadd.f32 0.0, %v570
      %v572 = vpop.f32.mrb[0].mxu0
      %v573 = vpop.f32.mrb[0].mxu0
      %v574 = vadd.f32 0.0, %v573
      %v575 = vpop.f32.mrb[0].mxu0
      %576 = vmatprep.mubr.bf16.mxu0 0
      %577 = vmatmul.mubr.bf16.gmra.mrb[0].mxu0 %v443
      %v578 = vpop.f32.mrb[0].mxu0
      %v579 = vadd.f32 0.0, %v578
      %v580 = vpop.f32.mrb[0].mxu0
      %v581 = vpop.f32.mrb[0].mxu0
      %v582 = vadd.f32 0.0, %v581
      %v583 = vpop.f32.mrb[0].mxu0
      %584 = vmatprep.mubr.bf16.mxu0 0
      %585 = vmatmul.mubr.bf16.gmra.mrb[0].mxu0 %v444
      %v586 = vpop.f32.mrb[0].mxu0
      %v587 = vadd.f32 0.0, %v586
      %v588 = vpop.f32.mrb[0].mxu0
      %v589 = vpop.f32.mrb[0].mxu0
      %v590 = vadd.f32 0.0, %v589
      %v591 = vpop.f32.mrb[0].mxu0
      %592 = vmatprep.mubr.bf16.mxu0 0
      %593 = vmatmul.mubr.bf16.gmra.mrb[0].mxu0 %v445
      %v594 = vpop.f32.mrb[0].mxu0
      %v595 = vadd.f32 0.0, %v594
      %v596 = vpop.f32.mrb[0].mxu0
      %v597 = vpop.f32.mrb[0].mxu0
      %v598 = vadd.f32 0.0, %v597
      %v599 = vpop.f32.mrb[0].mxu0
      %600 = vmatprep.mubr.bf16.mxu0 0
      %601 = vmatmul.mubr.bf16.gmra.mrb[0].mxu0 %v446
      %v602 = vpop.f32.mrb[0].mxu0
      %v603 = vadd.f32 0.0, %v602
      %v604 = vpop.f32.mrb[0].mxu0
      %v605 = vpop.f32.mrb[0].mxu0
      %v606 = vadd.f32 0.0, %v605
      %v607 = vpop.f32.mrb[0].mxu0
      %608 = vmatprep.mubr.bf16.mxu0 0
      %609 = vmatmul.mubr.bf16.gmra.mrb[0].mxu0 %v447
      %v610 = vpop.f32.mrb[0].mxu0
      %v611 = vadd.f32 0.0, %v610
      %v612 = vpop.f32.mrb[0].mxu0
      %v613 = vpop.f32.mrb[0].mxu0
      %v614 = vadd.f32 0.0, %v613
      %v615 = vpop.f32.mrb[0].mxu0
      %616 = vmatprep.mubr.bf16.mxu0 0
      %617 = vmatmul.mubr.bf16.gmra.mrb[0].mxu0 %v448
      %v618 = vpop.f32.mrb[0].mxu0
      %v619 = vadd.f32 0.0, %v618
      %v620 = vpop.f32.mrb[0].mxu0
      %v621 = vpop.f32.mrb[0].mxu0
      %v622 = vadd.f32 0.0, %v621
      %v623 = vpop.f32.mrb[0].mxu0
      %624 = vmatprep.mubr.bf16.mxu0 0
      %625 = vmatmul.mubr.bf16.gmra.mrb[0].mxu0 %v449
      %v626 = vpop.f32.mrb[0].mxu0
      %v627 = vadd.f32 0.0, %v626
      %v628 = vpop.f32.mrb[0].mxu0
      %v629 = vpop.f32.mrb[0].mxu0
      %v630 = vadd.f32 0.0, %v629
      %v631 = vpop.f32.mrb[0].mxu0
      %632 = vmatprep.mubr.bf16.mxu0 0
      %633 = vmatmul.mubr.bf16.gmra.mrb[0].mxu0 %v450
      %v634 = vpop.f32.mrb[0].mxu0
      %v635 = vadd.f32 0.0, %v634
      %v636 = vpop.f32.mrb[0].mxu0
      %v637 = vpop.f32.mrb[0].mxu0
      %v638 = vadd.f32 0.0, %v637
      %v639 = vpop.f32.mrb[0].mxu0
      %640 = vmatprep.mubr.bf16.mxu0 0
      %641 = vmatmul.mubr.bf16.gmra.mrb[0].mxu0 %v451
      %v642 = vpop.f32.mrb[0].mxu0
      %v643 = vadd.f32 0.0, %v642
      %v644 = vpop.f32.mrb[0].mxu0
      %v645 = vpop.f32.mrb[0].mxu0
      %v646 = vadd.f32 0.0, %v645
      %v647 = vpop.f32.mrb[0].mxu0
      %648 = vmatprep.mubr.bf16.mxu0 0
      %649 = vmatmul.mubr.bf16.gmra.mrb[0].mxu0 %v452
      %v650 = vpop.f32.mrb[0].mxu0
      %v651 = vadd.f32 0.0, %v650
      %v652 = vpop.f32.mrb[0].mxu0
      %v653 = vpop.f32.mrb[0].mxu0
      %v654 = vadd.f32 0.0, %v653
      %v655 = vpop.f32.mrb[0].mxu0
      %656 = vmatprep.mubr.bf16.mxu0 0
      %657 = vmatmul.mubr.bf16.gmra.mrb[0].mxu0 %v453
      %v658 = vpop.f32.mrb[0].mxu0
      %v659 = vadd.f32 0.0, %v658
      %v660 = vpop.f32.mrb[0].mxu0
      %v661 = vpop.f32.mrb[0].mxu0
      %v662 = vadd.f32 0.0, %v661
      %v663 = vpop.f32.mrb[0].mxu0
      %664 = vmatprep.mubr.bf16.mxu0 0
      %665 = vmatmul.mubr.bf16.gmra.mrb[0].mxu0 %v454
      %v666 = vpop.f32.mrb[0].mxu0
      %v667 = vadd.f32 0.0, %v666
      %v668 = vpop.f32.mrb[0].mxu0
      %v669 = vpop.f32.mrb[0].mxu0
      %v670 = vadd.f32 0.0, %v669
      %v671 = vpop.f32.mrb[0].mxu0
      %672 = vmatprep.mubr.bf16.mxu0 0
      %673 = vmatmul.mubr.bf16.gmra.mrb[0].mxu0 %v455
      %v674 = vpop.f32.mrb[0].mxu0
      %v675 = vadd.f32 0.0, %v674
      %v676 = vpop.f32.mrb[0].mxu0
      %v677 = vpop.f32.mrb[0].mxu0
      %v678 = vadd.f32 0.0, %v677
      %v679 = vpop.f32.mrb[0].mxu0
      %680 = vdwg.mxu0
      %v681 = vadd.f32 %v296, %v555
      %v682 = vadd.f32 %v297, %v558
      %v683 = vadd.f32 %v298, %v563
      %v684 = vadd.f32 %v299, %v566
      %v685 = vadd.f32 %v300, %v571
      %v686 = vadd.f32 %v301, %v574
      %v687 = vadd.f32 %v302, %v579
      %v688 = vadd.f32 %v303, %v582
      %v689 = vadd.f32 %v304, %v587
      %v690 = vadd.f32 %v305, %v590
      %v691 = vadd.f32 %v306, %v595
      %v692 = vadd.f32 %v307, %v598
      %v693 = vadd.f32 %v308, %v603
      %v694 = vadd.f32 %v309, %v606
      %v695 = vadd.f32 %v310, %v611
      %v696 = vadd.f32 %v311, %v614
      %v697 = vadd.f32 %v312, %v619
      %v698 = vadd.f32 %v313, %v622
      %v699 = vadd.f32 %v314, %v627
      %v700 = vadd.f32 %v315, %v630
      %v701 = vadd.f32 %v316, %v635
      %v702 = vadd.f32 %v317, %v638
      %v703 = vadd.f32 %v318, %v643
      %v704 = vadd.f32 %v319, %v646
      %v705 = vadd.f32 %v320, %v651
      %v706 = vadd.f32 %v321, %v654
      %v707 = vadd.f32 %v322, %v659
      %v708 = vadd.f32 %v323, %v662
      %v709 = vadd.f32 %v324, %v667
      %v710 = vadd.f32 %v325, %v670
      %v711 = vadd.f32 %v326, %v675
      %v712 = vadd.f32 %v327, %v678
      %713 = vst [vmem:[#allocation2] sm:$0xff] %v681
      %714 = vst [vmem:[#allocation2 + $0x8] sm:$0xff] %v682
      %715 = vst [vmem:[#allocation2 + $0x10] sm:$0xff] %v683
      %716 = vst [vmem:[#allocation2 + $0x18] sm:$0xff] %v684
      %717 = vst [vmem:[#allocation2 + $0x20] sm:$0xff] %v685
      %718 = vst [vmem:[#allocation2 + $0x28] sm:$0xff] %v686
      %719 = vst [vmem:[#allocation2 + $0x30] sm:$0xff] %v687
      %720 = vst [vmem:[#allocation2 + $0x38] sm:$0xff] %v688
      %721 = vst [vmem:[#allocation2 + $0x40] sm:$0xff] %v689
      %722 = vst [vmem:[#allocation2 + $0x48] sm:$0xff] %v690
      %723 = vst [vmem:[#allocation2 + $0x50] sm:$0xff] %v691
      %724 = vst [vmem:[#allocation2 + $0x58] sm:$0xff] %v692
      %725 = vst [vmem:[#allocation2 + $0x60] sm:$0xff] %v693
      %726 = vst [vmem:[#allocation2 + $0x68] sm:$0xff] %v694
      %727 = vst [vmem:[#allocation2 + $0x70] sm:$0xff] %v695
      %728 = vst [vmem:[#allocation2 + $0x78] sm:$0xff] %v696
      %729 = vst [vmem:[#allocation2 + $0x80] sm:$0xff] %v697
      %730 = vst [vmem:[#allocation2 + $0x88] sm:$0xff] %v698
      %731 = vst [vmem:[#allocation2 + $0x90] sm:$0xff] %v699
      %732 = vst [vmem:[#allocation2 + $0x98] sm:$0xff] %v700
      %733 = vst [vmem:[#allocation2 + $0xa0] sm:$0xff] %v701
      %734 = vst [vmem:[#allocation2 + $0xa8] sm:$0xff] %v702
      %735 = vst [vmem:[#allocation2 + $0xb0] sm:$0xff] %v703
      %736 = vst [vmem:[#allocation2 + $0xb8] sm:$0xff] %v704
      %737 = vst [vmem:[#allocation2 + $0xc0] sm:$0xff] %v705
      %738 = vst [vmem:[#allocation2 + $0xc8] sm:$0xff] %v706
      %739 = vst [vmem:[#allocation2 + $0xd0] sm:$0xff] %v707
      %740 = vst [vmem:[#allocation2 + $0xd8] sm:$0xff] %v708
      %741 = vst [vmem:[#allocation2 + $0xe0] sm:$0xff] %v709
      %742 = vst [vmem:[#allocation2 + $0xe8] sm:$0xff] %v710
      %743 = vst [vmem:[#allocation2 + $0xf0] sm:$0xff] %v711
      %744 = vst [vmem:[#allocation2 + $0xf8] sm:$0xff] %v712
      // Predicated region
      $region37: #{inception_a.8} parent=31 // pred_check
        %p745 = pneg %p260
      $region38: #{inception_a.8} parent=31 // pred_check_branch
        %747 = sbr.rel (%p745) target = $region40
      $region39: #{inception_a.8} parent=31 // pred_region
        %v748 = vld [vmem:[#allocation2] sm:$0xff]
        %v749 = vld [vmem:[#allocation2 + $0x8] sm:$0xff]
        %v750 = vld [vmem:[#allocation2 + $0x10] sm:$0xff]
        %v751 = vld [vmem:[#allocation2 + $0x18] sm:$0xff]
        %v752 = vld [vmem:[#allocation2 + $0x20] sm:$0xff]
        %v753 = vld [vmem:[#allocation2 + $0x28] sm:$0xff]
        %v754 = vld [vmem:[#allocation2 + $0x30] sm:$0xff]
        %v755 = vld [vmem:[#allocation2 + $0x38] sm:$0xff]
        %v756 = vld [vmem:[#allocation2 + $0x40] sm:$0xff]
        %v757 = vld [vmem:[#allocation2 + $0x48] sm:$0xff]
        %v758 = vld [vmem:[#allocation2 + $0x50] sm:$0xff]
        %v759 = vld [vmem:[#allocation2 + $0x58] sm:$0xff]
        %v760 = vld [vmem:[#allocation2 + $0x60] sm:$0xff]
        %v761 = vld [vmem:[#allocation2 + $0x68] sm:$0xff]
        %v762 = vld [vmem:[#allocation2 + $0x70] sm:$0xff]
        %v763 = vld [vmem:[#allocation2 + $0x78] sm:$0xff]
        %v764 = vld [vmem:[#allocation2 + $0x80] sm:$0xff]
        %v765 = vld [vmem:[#allocation2 + $0x88] sm:$0xff]
        %v766 = vld [vmem:[#allocation2 + $0x90] sm:$0xff]
        %v767 = vld [vmem:[#allocation2 + $0x98] sm:$0xff]
        %v768 = vld [vmem:[#allocation2 + $0xa0] sm:$0xff]
        %v769 = vld [vmem:[#allocation2 + $0xa8] sm:$0xff]
        %v770 = vld [vmem:[#allocation2 + $0xb0] sm:$0xff]
        %v771 = vld [vmem:[#allocation2 + $0xb8] sm:$0xff]
        %v772 = vld [vmem:[#allocation2 + $0xc0] sm:$0xff]
        %v773 = vld [vmem:[#allocation2 + $0xc8] sm:$0xff]
        %v774 = vld [vmem:[#allocation2 + $0xd0] sm:$0xff]
        %v775 = vld [vmem:[#allocation2 + $0xd8] sm:$0xff]
        %v776 = vld [vmem:[#allocation2 + $0xe0] sm:$0xff]
        %v777 = vld [vmem:[#allocation2 + $0xe8] sm:$0xff]
        %v778 = vld [vmem:[#allocation2 + $0xf0] sm:$0xff]
        %v779 = vld [vmem:[#allocation2 + $0xf8] sm:$0xff]
        %v780 = vld [vmem:[%s249] sm:$0x1]
        %v782 = vlaneseq
        %v783 = vshrl.u32 %v782, 7
        %v784 = vsub.s32 0, %v783
        %v785 = vrot.slane %v780, %v784
        %v787 = vadd.f32 %v748, %v785
        %v788 = vadd.f32 %v749, %v785
        %v789 = vadd.f32 %v750, %v785
        %v790 = vadd.f32 %v751, %v785
        %v791 = vadd.f32 %v752, %v785
        %v792 = vadd.f32 %v753, %v785
        %v793 = vadd.f32 %v754, %v785
        %v794 = vadd.f32 %v755, %v785
        %v795 = vadd.f32 %v756, %v785
        %v796 = vadd.f32 %v757, %v785
        %v797 = vadd.f32 %v758, %v785
        %v798 = vadd.f32 %v759, %v785
        %v799 = vadd.f32 %v760, %v785
        %v800 = vadd.f32 %v761, %v785
        %v801 = vadd.f32 %v762, %v785
        %v802 = vadd.f32 %v763, %v785
        %v803 = vadd.f32 %v764, %v785
        %v804 = vadd.f32 %v765, %v785
        %v805 = vadd.f32 %v766, %v785
        %v806 = vadd.f32 %v767, %v785
        %v807 = vadd.f32 %v768, %v785
        %v808 = vadd.f32 %v769, %v785
        %v809 = vadd.f32 %v770, %v785
        %v810 = vadd.f32 %v771, %v785
        %v811 = vadd.f32 %v772, %v785
        %v812 = vadd.f32 %v773, %v785
        %v813 = vadd.f32 %v774, %v785
        %v814 = vadd.f32 %v775, %v785
        %v815 = vadd.f32 %v776, %v785
        %v816 = vadd.f32 %v777, %v785
        %v817 = vadd.f32 %v778, %v785
        %v818 = vadd.f32 %v779, %v785
        %v819 = vmax.f32 %v787, 0.0
        %v820 = vmax.f32 %v788, 0.0
        %v821 = vmax.f32 %v789, 0.0
        %v822 = vmax.f32 %v790, 0.0
        %v823 = vmax.f32 %v791, 0.0
        %v824 = vmax.f32 %v792, 0.0
        %v825 = vmax.f32 %v793, 0.0
        %v826 = vmax.f32 %v794, 0.0
        %v827 = vmax.f32 %v795, 0.0
        %v828 = vmax.f32 %v796, 0.0
        %v829 = vmax.f32 %v797, 0.0
        %v830 = vmax.f32 %v798, 0.0
        %v831 = vmax.f32 %v799, 0.0
        %v832 = vmax.f32 %v800, 0.0
        %v833 = vmax.f32 %v801, 0.0
        %v834 = vmax.f32 %v802, 0.0
        %v835 = vmax.f32 %v803, 0.0
        %v836 = vmax.f32 %v804, 0.0
        %v837 = vmax.f32 %v805, 0.0
        %v838 = vmax.f32 %v806, 0.0
        %v839 = vmax.f32 %v807, 0.0
        %v840 = vmax.f32 %v808, 0.0
        %v841 = vmax.f32 %v809, 0.0
        %v842 = vmax.f32 %v810, 0.0
        %v843 = vmax.f32 %v811, 0.0
        %v844 = vmax.f32 %v812, 0.0
        %v845 = vmax.f32 %v813, 0.0
        %v846 = vmax.f32 %v814, 0.0
        %v847 = vmax.f32 %v815, 0.0
        %v848 = vmax.f32 %v816, 0.0
        %v849 = vmax.f32 %v817, 0.0
        %v850 = vmax.f32 %v818, 0.0
        %851 = vst [vmem:[%s257] sm:$0xff] %v819
        %852 = vst [vmem:[%s257 + $0x8] sm:$0xff] %v820
        %853 = vst [vmem:[%s257 + $0x10] sm:$0xff] %v821
        %854 = vst [vmem:[%s257 + $0x18] sm:$0xff] %v822
        %855 = vst [vmem:[%s257 + $0x20] sm:$0xff] %v823
        %856 = vst [vmem:[%s257 + $0x28] sm:$0xff] %v824
        %857 = vst [vmem:[%s257 + $0x30] sm:$0xff] %v825
        %858 = vst [vmem:[%s257 + $0x38] sm:$0xff] %v826
        %859 = vst [vmem:[%s257 + $0x40] sm:$0xff] %v827
        %860 = vst [vmem:[%s257 + $0x48] sm:$0xff] %v828
        %861 = vst [vmem:[%s257 + $0x50] sm:$0xff] %v829
        %862 = vst [vmem:[%s257 + $0x58] sm:$0xff] %v830
        %863 = vst [vmem:[%s257 + $0x60] sm:$0xff] %v831
        %864 = vst [vmem:[%s257 + $0x68] sm:$0xff] %v832
        %865 = vst [vmem:[%s257 + $0x70] sm:$0xff] %v833
        %866 = vst [vmem:[%s257 + $0x78] sm:$0xff] %v834
        %867 = vst [vmem:[%s257 + $0x80] sm:$0xff] %v835
        %868 = vst [vmem:[%s257 + $0x88] sm:$0xff] %v836
        %869 = vst [vmem:[%s257 + $0x90] sm:$0xff] %v837
        %870 = vst [vmem:[%s257 + $0x98] sm:$0xff] %v838
        %871 = vst [vmem:[%s257 + $0xa0] sm:$0xff] %v839
        %872 = vst [vmem:[%s257 + $0xa8] sm:$0xff] %v840
        %873 = vst [vmem:[%s257 + $0xb0] sm:$0xff] %v841
        %874 = vst [vmem:[%s257 + $0xb8] sm:$0xff] %v842
        %875 = vst [vmem:[%s257 + $0xc0] sm:$0xff] %v843
        %876 = vst [vmem:[%s257 + $0xc8] sm:$0xff] %v844
        %877 = vst [vmem:[%s257 + $0xd0] sm:$0xff] %v845
        %878 = vst [vmem:[%s257 + $0xd8] sm:$0xff] %v846
        %879 = vst [vmem:[%s257 + $0xe0] sm:$0xff] %v847
        %880 = vst [vmem:[%s257 + $0xe8] sm:$0xff] %v848
        %881 = vst [vmem:[%s257 + $0xf0] sm:$0xff] %v849
        %882 = vst [vmem:[%s257 + $0xf8] sm:$0xff] %v850
      $region40: #{inception_a.8} parent=31 // pred_fallthru
        _
      %s883 = smul.u32 32, %s19
      %p884 = scmp.lt.s32.totalorder %s883, 63
      %s885 = scalar_select %p884, %s883, 63
      %p886 = scmp.lt.s32.totalorder %s20, 0
      %s887 = scalar_select %p886, %s20, 0
      %s888 = sadd.s32 %s887, %s885
      %s889 = smul.addr %s888, 8
      %s890 = scalar_lea.vmem %s3, %s889
      // Predicated region
      $region41: #{inception_a.8} parent=31 // pred_check
        %p891 = pneg %p135
      $region42: #{inception_a.8} parent=31 // pred_check_branch
        %893 = sbr.rel (%p891) target = $region44
      $region43: #{inception_a.8} parent=31 // pred_region
        %s894 = smul.u32 32, %s19
      $region44: #{inception_a.8} parent=31 // pred_fallthru
        _
    $region32: #{inception_a.8} parent=5 // pred_fallthru
      _
    %p895 = scmp.le.s32.totalorder 2, %s9
    // Predicated region
    $region45: #{inception_a.8} parent=5 // pred_check
      %p896 = pneg %p895
    $region46: #{inception_a.8} parent=5 // pred_check_branch
      %898 = sbr.rel (%p896) target = $region48
    $region47: #{inception_a.8} parent=5 // pred_region
      %s899 = ssub.s32 %s9, 2
      // Predicated region
      $region49: #{inception_a.8} parent=47 // pred_check
        %p900 = pneg %p141
      $region50: #{inception_a.8} parent=47 // pred_check_branch
        %902 = sbr.rel (%p900) target = $region52
      $region51: #{inception_a.8} parent=47 // pred_region
        %s903 = smul.u32 32, %s22
        %p904 = scmp.lt.s32.totalorder %s903, 63
        %s905 = scalar_select %p904, %s903, 63
        %p906 = scmp.lt.s32.totalorder %s23, 0
        %s907 = scalar_select %p906, %s23, 0
        %s908 = sadd.s32 %s907, %s905
        %s909 = smul.addr %s908, 8
        %s910 = scalar_lea.vmem %s3, %s909
      $region52: #{inception_a.8} parent=47 // pred_fallthru
        _
    $region48: #{inception_a.8} parent=5 // pred_fallthru
      _
  $region6: #{inception_a.8} parent=0 // loop_footer
    %s13 = sadd.s32 1, %s9
  $region7: #{inception_a.8} parent=0 // loop_footer_branch
    %8 = sbr.rel target = $region3
  $region8: #{inception_a.8} parent=0 // loop_exit
    _

// kernel: inception_a.9
$region0: #{inception_a.9}
  #allocation0 [shape = 'u32[]', space=smem, size = 0x4, offset = 0x4, fixed_abs, tag = 'smem constant byte address 0x4 - core index']
  #allocation1 [shape = 'u32[144,128]{1,0:T(1,128)}', space=vmem, size = 0x12000, scoped, tag = 'internal scratch']
  #allocation2 [shape = 'f32[256,128]{1,0:T(8,128)}', space=vmem, size = 0x20000, scoped, tag = 'scratch operand']
  %s0 = inlined_call_operand.vmem [shape: bf16[512,1280], index: 0, kind: input, shape index: {}]
  %s1 = inlined_call_operand.vmem [shape: bf16[1280,128], index: 1, kind: input, shape index: {}]
  %s2 = inlined_call_operand.vmem [shape: f32[1,128], index: 2, kind: input, shape index: {}]
  %s3 = inlined_call_operand.vmem [shape: f32[512,128], index: 3, kind: output, shape index: {}]
  %s4 = sld [smem:[#allocation0]]
  $region91: #{inception_a.9} parent=0
    _
  %s6 = ssub.s32 1, %s4
  %s7 = scalar_select 0, %s6, %s4
  $region1: #{inception_a.9} parent=0
    #allocation3 [shape = 'u8[262144]{0}', space=vmem, size = 0x40000, scoped, tag = 'input window, operand 0']
    loop: start=0, step=1, limit=12
    $region2: #{inception_a.9} parent=1 // loop_pre_header
      _
    $region3: #{inception_a.9} parent=1 // loop_header
      %s9 = sphi 0, %s13
      %p10 = scmp.ge.s32.totalorder %s9, 12
      %s16 = sphi 0, %s35
      %s17 = sphi 0, %s31
      %s18 = sphi 0, %s27
      %s19 = sphi 0, %s16
      %s20 = sphi 0, %s17
      %s21 = sphi 0, %s18
      %s22 = sphi 0, %s19
      %s23 = sphi 0, %s20
      %s24 = sphi 0, %s21
      %s40 = sphi 0, %s42
      %s43 = sphi 0, %s40
      %s44 = sphi 0, %s43
      %s60 = sphi 0, %s44
      %s68 = sphi 0, %s70
      %s71 = sphi 0, %s68
      %s72 = sphi 0, %s71
      %s88 = sphi 0, %s72
      %s94 = sphi 0, %s96
      %s97 = sphi 0, %s94
      %s98 = sphi 0, %s97
      %s114 = sphi 0, %s98
      %s122 = sphi 0, %s124
      %s125 = sphi 0, %s122
      %s126 = sphi 0, %s125
      %s142 = sphi 0, %s126
    $region4: #{inception_a.9} parent=1 // loop_header_branch
      %12 = sbr.rel (%p10) target = $region8
    $region5: #{inception_a.9} parent=1 // loop_body
      %s14 = ssub.s32 %s9, 1
      %s15 = ssub.s32 %s9, 2
      %s25 = sadd.s32 1, %s18
      %p26 = scmp.ge.s32.totalorder %s25, 5
      %s27 = scalar_select %p26, 0, %s25
      %s28 = sadd.s32 1, %s17
      %s29 = scalar_select %p26, %s28, %s17
      %p30 = scmp.ge.s32.totalorder %s29, 1
      %s31 = scalar_select %p30, 0, %s29
      %s32 = sadd.s32 1, %s16
      %s33 = scalar_select %p30, %s32, %s16
      %p34 = scmp.ge.s32.totalorder %s33, 2
      %s35 = scalar_select %p34, 0, %s33
      %s36 = ssub.s32 %s16, %s35
      %s37 = ssub.s32 %s18, %s27
      %s38 = sor.u32 %s36, %s37
      %p39 = scmp.eq.s32.totalorder %s38, 0
      %s41 = sadd.s32 %s40, 1
      %s42 = scalar_select %p39, %s40, %s41
      %p45 = pneg %p39
      %p46 = scmp.eq.s32.totalorder %s9, 9
      %p47 = por %p45, %p46
      %p48 = scmp.ne.s32.totalorder %s40, %s43
      %p49 = scmp.eq.s32.totalorder %s9, 0
      %p50 = por %p48, %p49
      %p51 = scmp.ne.s32.totalorder %s40, %s43
      %p52 = scmp.eq.s32.totalorder %s14, 9
      %p53 = por %p51, %p52
      %p54 = scmp.ne.s32.totalorder %s43, %s44
      %p55 = scmp.eq.s32.totalorder %s14, 0
      %p56 = por %p54, %p55
      %p57 = scmp.ne.s32.totalorder %s43, %s44
      %p58 = scmp.eq.s32.totalorder %s15, 9
      %p59 = por %p57, %p58
      %p61 = scmp.ne.s32.totalorder %s44, %s60
      %p62 = scmp.eq.s32.totalorder %s15, 0
      %p63 = por %p61, %p62
      %s64 = ssub.s32 %s18, %s27
      %s65 = ssub.s32 %s17, %s31
      %s66 = sor.u32 %s64, %s65
      %p67 = scmp.eq.s32.totalorder %s66, 0
      %s69 = sadd.s32 %s68, 1
      %s70 = scalar_select %p67, %s68, %s69
      %p73 = pneg %p67
      %p74 = scmp.eq.s32.totalorder %s9, 9
      %p75 = por %p73, %p74
      %p76 = scmp.ne.s32.totalorder %s68, %s71
      %p77 = scmp.eq.s32.totalorder %s9, 0
      %p78 = por %p76, %p77
      %p79 = scmp.ne.s32.totalorder %s68, %s71
      %p80 = scmp.eq.s32.totalorder %s14, 9
      %p81 = por %p79, %p80
      %p82 = scmp.ne.s32.totalorder %s71, %s72
      %p83 = scmp.eq.s32.totalorder %s14, 0
      %p84 = por %p82, %p83
      %p85 = scmp.ne.s32.totalorder %s71, %s72
      %p86 = scmp.eq.s32.totalorder %s15, 9
      %p87 = por %p85, %p86
      %p89 = scmp.ne.s32.totalorder %s72, %s88
      %p90 = scmp.eq.s32.totalorder %s15, 0
      %p91 = por %p89, %p90
      %s92 = ssub.s32 %s17, %s31
      %p93 = scmp.eq.s32.totalorder %s92, 0
      %s95 = sadd.s32 %s94, 1
      %s96 = scalar_select %p93, %s94, %s95
      %p99 = pneg %p93
      %p100 = scmp.eq.s32.totalorder %s9, 9
      %p101 = por %p99, %p100
      %p102 = scmp.ne.s32.totalorder %s94, %s97
      %p103 = scmp.eq.s32.totalorder %s9, 0
      %p104 = por %p102, %p103
      %p105 = scmp.ne.s32.totalorder %s94, %s97
      %p106 = scmp.eq.s32.totalorder %s14, 9
      %p107 = por %p105, %p106
      %p108 = scmp.ne.s32.totalorder %s97, %s98
      %p109 = scmp.eq.s32.totalorder %s14, 0
      %p110 = por %p108, %p109
      %p111 = scmp.ne.s32.totalorder %s97, %s98
      %p112 = scmp.eq.s32.totalorder %s15, 9
      %p113 = por %p111, %p112
      %p115 = scmp.ne.s32.totalorder %s98, %s114
      %p116 = scmp.eq.s32.totalorder %s15, 0
      %p117 = por %p115, %p116
      %s118 = ssub.s32 %s16, %s35
      %s119 = ssub.s32 %s17, %s31
      %s120 = sor.u32 %s118, %s119
      %p121 = scmp.eq.s32.totalorder %s120, 0
      %s123 = sadd.s32 %s122, 1
      %s124 = scalar_select %p121, %s122, %s123
      %p127 = pneg %p121
      %p128 = scmp.eq.s32.totalorder %s9, 9
      %p129 = por %p127, %p128
      %p130 = scmp.ne.s32.totalorder %s122, %s125
      %p131 = scmp.eq.s32.totalorder %s9, 0
      %p132 = por %p130, %p131
      %p133 = scmp.ne.s32.totalorder %s122, %s125
      %p134 = scmp.eq.s32.totalorder %s14, 9
      %p135 = por %p133, %p134
      %p136 = scmp.ne.s32.totalorder %s125, %s126
      %p137 = scmp.eq.s32.totalorder %s14, 0
      %p138 = por %p136, %p137
      %p139 = scmp.ne.s32.totalorder %s125, %s126
      %p140 = scmp.eq.s32.totalorder %s15, 9
      %p141 = por %p139, %p140
      %p143 = scmp.ne.s32.totalorder %s126, %s142
      %p144 = scmp.eq.s32.totalorder %s15, 0
      %p145 = por %p143, %p144
      %p146 = scmp.le.s32.totalorder 1, %s9
      %p147 = scmp.lt.s32.totalorder %s9, 11
      %p148 = pnand %p146, %p147
      %p149 = pneg %p148
      // Predicated region
      $region9: #{inception_a.9} parent=5 // pred_check
        _
      $region10: #{inception_a.9} parent=5 // pred_check_branch
        %151 = sbr.rel (%p148) target = $region12
      $region11: #{inception_a.9} parent=5 // pred_region
        %s152 = ssub.s32 %s9, 1
        // Predicated region
        $region13: #{inception_a.9} parent=11 // pred_check
          %p153 = pneg %p110
        $region14: #{inception_a.9} parent=11 // pred_check_branch
          %155 = sbr.rel (%p153) target = $region16
        $region15: #{inception_a.9} parent=11 // pred_region
          %p156 = scmp.lt.s32.totalorder %s20, 0
          %s157 = scalar_select %p156, %s20, 0
          %s158 = scalar_lea.vmem %s2, %s157
        $region16: #{inception_a.9} parent=11 // pred_fallthru
          _
      $region12: #{inception_a.9} parent=5 // pred_fallthru
        _
      %p159 = scmp.lt.s32.totalorder %s9, 10
      // Predicated region
      $region17: #{inception_a.9} parent=5 // pred_check
        %p160 = pneg %p159
      $region18: #{inception_a.9} parent=5 // pred_check_branch
        %162 = sbr.rel (%p160) target = $region20
      $region19: #{inception_a.9} parent=5 // pred_region
        // Predicated region
        $region21: #{inception_a.9} parent=19 // pred_check
          %p163 = pneg %p50
        $region22: #{inception_a.9} parent=19 // pred_check_branch
          %165 = sbr.rel (%p163) target = $region24
        $region23: #{inception_a.9} parent=19 // pred_region
          %s166 = sand.u32 %s40, 1
          %s167 = sand.u32 %s40, 1
          %s168 = smul.addr %s167, 256
          %s169 = scalar_lea.vmem [#allocation3], %s168
          %s170 = smul.u32 32, %s16
          %s171 = smul.u32 2, %s18
          %s172 = smul.addr %s170, 10
          %s173 = sadd.s32 %s171, %s172
          %s174 = smul.addr %s173, 4
          %s175 = scalar_lea.vmem %s0, %s174
          // Predicated region
          $region25: #{inception_a.9} parent=23 // pred_check
            _
          $region26: #{inception_a.9} parent=23 // pred_check_branch
            %177 = sbr.rel (0) target = $region28
          $region27: #{inception_a.9} parent=23 // pred_region
            // Predicated region
            $region29: #{inception_a.9} parent=27 // pred_check
              _
            $region30: #{inception_a.9} parent=27 // pred_check_branch
              %179 = sbr.rel (0) target = $region32
            $region31: #{inception_a.9} parent=27 // pred_region
              // Predicated region
              $region44: #{inception_a.9} parent=31 // pred_check
                _
              $region45: #{inception_a.9} parent=31 // pred_check_branch
                %256 = sbr.rel (0) target = $region47
              $region46: #{inception_a.9} parent=31 // pred_region
                loop: start=0, step=1, limit=1
                $region48: #{inception_a.9} parent=46 // loop_pre_header
                  _
                $region49: #{inception_a.9} parent=46 // loop_header
                  %s258 = sphi 0, %s262
                  %p259 = scmp.ge.s32.totalorder %s258, 1
                  %s263 = sphi %s175, %s175
                  %s264 = sphi %s169, %s169
                $region50: #{inception_a.9} parent=46 // loop_header_branch
                  %261 = sbr.rel (%p259) target = $region54
                $region51: #{inception_a.9} parent=46 // loop_body
                  %v265 = vld [vmem:[%s263] sm:$0xff]
                  %266 = vst [vmem:[%s264] sm:$0xff] %v265
                  %v267 = vld [vmem:[%s263 + $0x28] sm:$0xff]
                  %268 = vst [vmem:[%s264 + $0x8] sm:$0xff] %v267
                  %v269 = vld [vmem:[%s263 + $0x50] sm:$0xff]
                  %270 = vst [vmem:[%s264 + $0x10] sm:$0xff] %v269
                  %v271 = vld [vmem:[%s263 + $0x78] sm:$0xff]
                  %272 = vst [vmem:[%s264 + $0x18] sm:$0xff] %v271
                  %v273 = vld [vmem:[%s263 + $0xa0] sm:$0xff]
                  %274 = vst [vmem:[%s264 + $0x20] sm:$0xff] %v273
                  %v275 = vld [vmem:[%s263 + $0xc8] sm:$0xff]
                  %276 = vst [vmem:[%s264 + $0x28] sm:$0xff] %v275
                  %v277 = vld [vmem:[%s263 + $0xf0] sm:$0xff]
                  %278 = vst [vmem:[%s264 + $0x30] sm:$0xff] %v277
                  %v279 = vld [vmem:[%s263 + $0x118] sm:$0xff]
                  %280 = vst [vmem:[%s264 + $0x38] sm:$0xff] %v279
                  %v281 = vld [vmem:[%s263 + $0x140] sm:$0xff]
                  %282 = vst [vmem:[%s264 + $0x40] sm:$0xff] %v281
                  %v283 = vld [vmem:[%s263 + $0x168] sm:$0xff]
                  %284 = vst [vmem:[%s264 + $0x48] sm:$0xff] %v283
                  %v285 = vld [vmem:[%s263 + $0x190] sm:$0xff]
                  %286 = vst [vmem:[%s264 + $0x50] sm:$0xff] %v285
                  %v287 = vld [vmem:[%s263 + $0x1b8] sm:$0xff]
                  %288 = vst [vmem:[%s264 + $0x58] sm:$0xff] %v287
                  %v289 = vld [vmem:[%s263 + $0x1e0] sm:$0xff]
                  %290 = vst [vmem:[%s264 + $0x60] sm:$0xff] %v289
                  %v291 = vld [vmem:[%s263 + $0x208] sm:$0xff]
                  %292 = vst [vmem:[%s264 + $0x68] sm:$0xff] %v291
                  %v293 = vld [vmem:[%s263 + $0x230] sm:$0xff]
                  %294 = vst [vmem:[%s264 + $0x70] sm:$0xff] %v293
                  %v295 = vld [vmem:[%s263 + $0x258] sm:$0xff]
                  %296 = vst [vmem:[%s264 + $0x78] sm:$0xff] %v295
                  %v297 = vld [vmem:[%s263 + $0x280] sm:$0xff]
                  %298 = vst [vmem:[%s264 + $0x80] sm:$0xff] %v297
                  %v299 = vld [vmem:[%s263 + $0x2a8] sm:$0xff]
                  %300 = vst [vmem:[%s264 + $0x88] sm:$0xff] %v299
                  %v301 = vld [vmem:[%s263 + $0x2d0] sm:$0xff]
                  %302 = vst [vmem:[%s264 + $0x90] sm:$0xff] %v301
                  %v303 = vld [vmem:[%s263 + $0x2f8] sm:$0xff]
                  %304 = vst [vmem:[%s264 + $0x98] sm:$0xff] %v303
                  %v305 = vld [vmem:[%s263 + $0x320] sm:$0xff]
                  %306 = vst [vmem:[%s264 + $0xa0] sm:$0xff] %v305
                  %v307 = vld [vmem:[%s263 + $0x348] sm:$0xff]
                  %308 = vst [vmem:[%s264 + $0xa8] sm:$0xff] %v307
                  %v309 = vld [vmem:[%s263 + $0x370] sm:$0xff]
                  %310 = vst [vmem:[%s264 + $0xb0] sm:$0xff] %v309
                  %v311 = vld [vmem:[%s263 + $0x398] sm:$0xff]
                  %312 = vst [vmem:[%s264 + $0xb8] sm:$0xff] %v311
                  %v313 = vld [vmem:[%s263 + $0x3c0] sm:$0xff]
                  %314 = vst [vmem:[%s264 + $0xc0] sm:$0xff] %v313
                  %v315 = vld [vmem:[%s263 + $0x3e8] sm:$0xff]
                  %316 = vst [vmem:[%s264 + $0xc8] sm:$0xff] %v315
                  %v317 = vld [vmem:[%s263 + $0x410] sm:$0xff]
                  %318 = vst [vmem:[%s264 + $0xd0] sm:$0xff] %v317
                  %v319 = vld [vmem:[%s263 + $0x438] sm:$0xff]
                  %320 = vst [vmem:[%s264 + $0xd8] sm:$0xff] %v319
                  %v321 = vld [vmem:[%s263 + $0x460] sm:$0xff]
                  %322 = vst [vmem:[%s264 + $0xe0] sm:$0xff] %v321
                  %v323 = vld [vmem:[%s263 + $0x488] sm:$0xff]
                  %324 = vst [vmem:[%s264 + $0xe8] sm:$0xff] %v323
                  %v325 = vld [vmem:[%s263 + $0x4b0] sm:$0xff]
                  %326 = vst [vmem:[%s264 + $0xf0] sm:$0xff] %v325
                  %v327 = vld [vmem:[%s263 + $0x4d8] sm:$0xff]
                  %328 = vst [vmem:[%s264 + $0xf8] sm:$0xff] %v327
                $region52: #{inception_a.9} parent=46 // loop_footer
                  %s262 = sadd.s32 1, %s258
                $region53: #{inception_a.9} parent=46 // loop_footer_branch
                  %257 = sbr.rel target = $region49
                $region54: #{inception_a.9} parent=46 // loop_exit
                  _
              $region47: #{inception_a.9} parent=31 // pred_fallthru
                _
              // Predicated region
              $region55: #{inception_a.9} parent=31 // pred_check
                _
              $region56: #{inception_a.9} parent=31 // pred_check_branch
                %330 = sbr.rel target = $region58
              $region57: #{inception_a.9} parent=31 // pred_region
                _
              $region58: #{inception_a.9} parent=31 // pred_fallthru
                _
            $region32: #{inception_a.9} parent=27 // pred_fallthru
              _
            // Predicated region
            $region33: #{inception_a.9} parent=27 // pred_check
              _
            $region34: #{inception_a.9} parent=27 // pred_check_branch
              %181 = sbr.rel target = $region36
            $region35: #{inception_a.9} parent=27 // pred_region
              loop: start=0, step=1, limit=1
              $region37: #{inception_a.9} parent=35 // loop_pre_header
                _
              $region38: #{inception_a.9} parent=35 // loop_header
                %s184 = sphi 0, %s188
                %p185 = scmp.ge.s32.totalorder %s184, 1
                %s189 = sphi %s175, %s175
                %s190 = sphi %s169, %s169
              $region39: #{inception_a.9} parent=35 // loop_header_branch
                %187 = sbr.rel (%p185) target = $region43
              $region40: #{inception_a.9} parent=35 // loop_body
                %v191 = vld [vmem:[%s189] sm:$0xff]
                %192 = vst [vmem:[%s190] sm:$0xff] %v191
                %v193 = vld [vmem:[%s189 + $0x28] sm:$0xff]
                %194 = vst [vmem:[%s190 + $0x8] sm:$0xff] %v193
                %v195 = vld [vmem:[%s189 + $0x50] sm:$0xff]
                %196 = vst [vmem:[%s190 + $0x10] sm:$0xff] %v195
                %v197 = vld [vmem:[%s189 + $0x78] sm:$0xff]
                %198 = vst [vmem:[%s190 + $0x18] sm:$0xff] %v197
                %v199 = vld [vmem:[%s189 + $0xa0] sm:$0xff]
                %200 = vst [vmem:[%s190 + $0x20] sm:$0xff] %v199
                %v201 = vld [vmem:[%s189 + $0xc8] sm:$0xff]
                %202 = vst [vmem:[%s190 + $0x28] sm:$0xff] %v201
                %v203 = vld [vmem:[%s189 + $0xf0] sm:$0xff]
                %204 = vst [vmem:[%s190 + $0x30] sm:$0xff] %v203
                %v205 = vld [vmem:[%s189 + $0x118] sm:$0xff]
                %206 = vst [vmem:[%s190 + $0x38] sm:$0xff] %v205
                %v207 = vld [vmem:[%s189 + $0x140] sm:$0xff]
                %208 = vst [vmem:[%s190 + $0x40] sm:$0xff] %v207
                %v209 = vld [vmem:[%s189 + $0x168] sm:$0xff]
                %210 = vst [vmem:[%s190 + $0x48] sm:$0xff] %v209
                %v211 = vld [vmem:[%s189 + $0x190] sm:$0xff]
                %212 = vst [vmem:[%s190 + $0x50] sm:$0xff] %v211
                %v213 = vld [vmem:[%s189 + $0x1b8] sm:$0xff]
                %214 = vst [vmem:[%s190 + $0x58] sm:$0xff] %v213
                %v215 = vld [vmem:[%s189 + $0x1e0] sm:$0xff]
                %216 = vst [vmem:[%s190 + $0x60] sm:$0xff] %v215
                %v217 = vld [vmem:[%s189 + $0x208] sm:$0xff]
                %218 = vst [vmem:[%s190 + $0x68] sm:$0xff] %v217
                %v219 = vld [vmem:[%s189 + $0x230] sm:$0xff]
                %220 = vst [vmem:[%s190 + $0x70] sm:$0xff] %v219
                %v221 = vld [vmem:[%s189 + $0x258] sm:$0xff]
                %222 = vst [vmem:[%s190 + $0x78] sm:$0xff] %v221
                %v223 = vld [vmem:[%s189 + $0x280] sm:$0xff]
                %224 = vst [vmem:[%s190 + $0x80] sm:$0xff] %v223
                %v225 = vld [vmem:[%s189 + $0x2a8] sm:$0xff]
                %226 = vst [vmem:[%s190 + $0x88] sm:$0xff] %v225
                %v227 = vld [vmem:[%s189 + $0x2d0] sm:$0xff]
                %228 = vst [vmem:[%s190 + $0x90] sm:$0xff] %v227
                %v229 = vld [vmem:[%s189 + $0x2f8] sm:$0xff]
                %230 = vst [vmem:[%s190 + $0x98] sm:$0xff] %v229
                %v231 = vld [vmem:[%s189 + $0x320] sm:$0xff]
                %232 = vst [vmem:[%s190 + $0xa0] sm:$0xff] %v231
                %v233 = vld [vmem:[%s189 + $0x348] sm:$0xff]
                %234 = vst [vmem:[%s190 + $0xa8] sm:$0xff] %v233
                %v235 = vld [vmem:[%s189 + $0x370] sm:$0xff]
                %236 = vst [vmem:[%s190 + $0xb0] sm:$0xff] %v235
                %v237 = vld [vmem:[%s189 + $0x398] sm:$0xff]
                %238 = vst [vmem:[%s190 + $0xb8] sm:$0xff] %v237
                %v239 = vld [vmem:[%s189 + $0x3c0] sm:$0xff]
                %240 = vst [vmem:[%s190 + $0xc0] sm:$0xff] %v239
                %v241 = vld [vmem:[%s189 + $0x3e8] sm:$0xff]
                %242 = vst [vmem:[%s190 + $0xc8] sm:$0xff] %v241
                %v243 = vld [vmem:[%s189 + $0x410] sm:$0xff]
                %244 = vst [vmem:[%s190 + $0xd0] sm:$0xff] %v243
                %v245 = vld [vmem:[%s189 + $0x438] sm:$0xff]
                %246 = vst [vmem:[%s190 + $0xd8] sm:$0xff] %v245
                %v247 = vld [vmem:[%s189 + $0x460] sm:$0xff]
                %248 = vst [vmem:[%s190 + $0xe0] sm:$0xff] %v247
                %v249 = vld [vmem:[%s189 + $0x488] sm:$0xff]
                %250 = vst [vmem:[%s190 + $0xe8] sm:$0xff] %v249
                %v251 = vld [vmem:[%s189 + $0x4b0] sm:$0xff]
                %252 = vst [vmem:[%s190 + $0xf0] sm:$0xff] %v251
                %v253 = vld [vmem:[%s189 + $0x4d8] sm:$0xff]
                %254 = vst [vmem:[%s190 + $0xf8] sm:$0xff] %v253
              $region41: #{inception_a.9} parent=35 // loop_footer
                %s188 = sadd.s32 1, %s184
              $region42: #{inception_a.9} parent=35 // loop_footer_branch
                %183 = sbr.rel target = $region38
              $region43: #{inception_a.9} parent=35 // loop_exit
                _
            $region36: #{inception_a.9} parent=27 // pred_fallthru
              _
          $region28: #{inception_a.9} parent=23 // pred_fallthru
            _
          %331 = vnop
        $region24: #{inception_a.9} parent=19 // pred_fallthru
          _
        // Predicated region
        $region59: #{inception_a.9} parent=19 // pred_check
          %p332 = pneg %p78
        $region60: #{inception_a.9} parent=19 // pred_check_branch
          %334 = sbr.rel (%p332) target = $region62
        $region61: #{inception_a.9} parent=19 // pred_region
          %s335 = smul.u32 32, %s18
          %p336 = scmp.lt.s32.totalorder %s335, 159
          %s337 = scalar_select %p336, %s335, 159
          %p338 = scmp.lt.s32.totalorder %s17, 0
          %s339 = scalar_select %p338, %s17, 0
          %s340 = sadd.s32 %s339, %s337
          %s341 = smul.addr %s340, 4
          %s342 = scalar_lea.vmem %s1, %s341
          %s343 = smul.u32 32, %s18
        $region62: #{inception_a.9} parent=19 // pred_fallthru
          _
      $region20: #{inception_a.9} parent=5 // pred_fallthru
        _
      %p344 = scmp.le.s32.totalorder 1, %s9
      %p345 = scmp.lt.s32.totalorder %s9, 11
      %p346 = pnand %p344, %p345
      %p347 = pneg %p346
      // Predicated region
      $region63: #{inception_a.9} parent=5 // pred_check
        _
      $region64: #{inception_a.9} parent=5 // pred_check_branch
        %349 = sbr.rel (%p346) target = $region66
      $region65: #{inception_a.9} parent=5 // pred_region
        %s350 = ssub.s32 %s9, 1
        %s351 = sand.u32 %s43, 1
        %s352 = sand.u32 %s43, 1
        %s353 = smul.addr %s352, 256
        %s354 = scalar_lea.vmem [#allocation3], %s353
        // Predicated region
        $region67: #{inception_a.9} parent=65 // pred_check
          %p355 = pneg %p56
        $region68: #{inception_a.9} parent=65 // pred_check_branch
          %357 = sbr.rel (%p355) target = $region70
        $region69: #{inception_a.9} parent=65 // pred_region
          _
        $region70: #{inception_a.9} parent=65 // pred_fallthru
          _
        %s358 = sand.u32 %s43, 1
        %s359 = sand.u32 %s43, 1
        %s360 = smul.addr %s359, 256
        %s361 = scalar_lea.vmem [#allocation3], %s360
        %p362 = pneg %p56
        %p363 = pneg %p53
        %s364 = smul.u32 32, %s21
        %p365 = scmp.lt.s32.totalorder %s364, 159
        %s366 = scalar_select %p365, %s364, 159
        %p367 = scmp.lt.s32.totalorder %s20, 0
        %s368 = scalar_select %p367, %s20, 0
        %s369 = sadd.s32 %s368, %s366
        %s370 = smul.addr %s369, 4
        %s371 = scalar_lea.vmem %s1, %s370
        %p372 = pneg %p84
        %p373 = pneg %p81
        %p374 = scmp.lt.s32.totalorder %s20, 0
        %s375 = scalar_select %p374, %s20, 0
        %s376 = scalar_lea.vmem %s2, %s375
        %p377 = pneg %p110
        %p378 = pneg %p107
        %p379 = pneg %p138
        %p380 = pneg %p135
        %s381 = smul.u32 32, %s19
        %p382 = scmp.lt.s32.totalorder %s381, 63
        %s383 = scalar_select %p382, %s381, 63
        %p384 = scmp.lt.s32.totalorder %s20, 0
        %s385 = scalar_select %p384, %s20, 0
        %s386 = sadd.s32 %s385, %s383
        %s387 = smul.addr %s386, 8
        %s388 = scalar_lea.vmem %s3, %s387
        %s389 = smul.u32 32, %s19
        %s390 = smul.u32 2, %s21
        %s391 = smul.u32 32, %s21
        %p392 = scmp.lt.s32.totalorder %s391, 159
        %s393 = scalar_select %p392, %s391, 159
        %p394 = scmp.lt.s32.totalorder %s20, 0
        %s395 = scalar_select %p394, %s20, 0
        %s396 = sadd.s32 %s395, %s393
        %s397 = smul.addr %s396, 4
        %s398 = scalar_lea.vmem %s1, %s397
        %s399 = smul.u32 32, %s21
        %p400 = scmp.lt.s32.totalorder %s20, 0
        %s401 = scalar_select %p400, %s20, 0
        %s402 = scalar_lea.vmem %s2, %s401
        %s403 = smul.u32 32, %s19
        %p404 = scmp.lt.s32.totalorder %s403, 63
        %s405 = scalar_select %p404, %s403, 63
        %p406 = scmp.lt.s32.totalorder %s20, 0
        %s407 = scalar_select %p406, %s20, 0
        %s408 = sadd.s32 %s407, %s405
        %s409 = smul.addr %s408, 8
        %s410 = scalar_lea.vmem %s3, %s409
        %s411 = smul.u32 32, %s19
        %p413 = scmp.eq.s32.totalorder %s21, 0
        // Predicated region
        $region71: #{inception_a.9} parent=65 // pred_check
          %p414 = pneg %p413
        $region72: #{inception_a.9} parent=65 // pred_check_branch
          %416 = sbr.rel (%p414) target = $region74
        $region73: #{inception_a.9} parent=65 // pred_region
          %417 = vst [vmem:[#allocation2] sm:$0xff] 0.0
          %418 = vst [vmem:[#allocation2 + $0x8] sm:$0xff] 0.0
          %419 = vst [vmem:[#allocation2 + $0x10] sm:$0xff] 0.0
          %420 = vst [vmem:[#allocation2 + $0x18] sm:$0xff] 0.0
          %421 = vst [vmem:[#allocation2 + $0x20] sm:$0xff] 0.0
          %422 = vst [vmem:[#allocation2 + $0x28] sm:$0xff] 0.0
          %423 = vst [vmem:[#allocation2 + $0x30] sm:$0xff] 0.0
          %424 = vst [vmem:[#allocation2 + $0x38] sm:$0xff] 0.0
          %425 = vst [vmem:[#allocation2 + $0x40] sm:$0xff] 0.0
          %426 = vst [vmem:[#allocation2 + $0x48] sm:$0xff] 0.0
          %427 = vst [vmem:[#allocation2 + $0x50] sm:$0xff] 0.0
          %428 = vst [vmem:[#allocation2 + $0x58] sm:$0xff] 0.0
          %429 = vst [vmem:[#allocation2 + $0x60] sm:$0xff] 0.0
          %430 = vst [vmem:[#allocation2 + $0x68] sm:$0xff] 0.0
          %431 = vst [vmem:[#allocation2 + $0x70] sm:$0xff] 0.0
          %432 = vst [vmem:[#allocation2 + $0x78] sm:$0xff] 0.0
          %433 = vst [vmem:[#allocation2 + $0x80] sm:$0xff] 0.0
          %434 = vst [vmem:[#allocation2 + $0x88] sm:$0xff] 0.0
          %435 = vst [vmem:[#allocation2 + $0x90] sm:$0xff] 0.0
          %436 = vst [vmem:[#allocation2 + $0x98] sm:$0xff] 0.0
          %437 = vst [vmem:[#allocation2 + $0xa0] sm:$0xff] 0.0
          %438 = vst [vmem:[#allocation2 + $0xa8] sm:$0xff] 0.0
          %439 = vst [vmem:[#allocation2 + $0xb0] sm:$0xff] 0.0
          %440 = vst [vmem:[#allocation2 + $0xb8] sm:$0xff] 0.0
          %441 = vst [vmem:[#allocation2 + $0xc0] sm:$0xff] 0.0
          %442 = vst [vmem:[#allocation2 + $0xc8] sm:$0xff] 0.0
          %443 = vst [vmem:[#allocation2 + $0xd0] sm:$0xff] 0.0
          %444 = vst [vmem:[#allocation2 + $0xd8] sm:$0xff] 0.0
          %445 = vst [vmem:[#allocation2 + $0xe0] sm:$0xff] 0.0
          %446 = vst [vmem:[#allocation2 + $0xe8] sm:$0xff] 0.0
          %447 = vst [vmem:[#allocation2 + $0xf0] sm:$0xff] 0.0
          %448 = vst [vmem:[#allocation2 + $0xf8] sm:$0xff] 0.0
        $region74: #{inception_a.9} parent=65 // pred_fallthru
          _
        %v449 = vld [vmem:[#allocation2] sm:$0xff]
        %v450 = vld [vmem:[#allocation2 + $0x8] sm:$0xff]
        %v451 = vld [vmem:[#allocation2 + $0x10] sm:$0xff]
        %v452 = vld [vmem:[#allocation2 + $0x18] sm:$0xff]
        %v453 = vld [vmem:[#allocation2 + $0x20] sm:$0xff]
        %v454 = vld [vmem:[#allocation2 + $0x28] sm:$0xff]
        %v455 = vld [vmem:[#allocation2 + $0x30] sm:$0xff]
        %v456 = vld [vmem:[#allocation2 + $0x38] sm:$0xff]
        %v457 = vld [vmem:[#allocation2 + $0x40] sm:$0xff]
        %v458 = vld [vmem:[#allocation2 + $0x48] sm:$0xff]
        %v459 = vld [vmem:[#allocation2 + $0x50] sm:$0xff]
        %v460 = vld [vmem:[#allocation2 + $0x58] sm:$0xff]
        %v461 = vld [vmem:[#allocation2 + $0x60] sm:$0xff]
        %v462 = vld [vmem:[#allocation2 + $0x68] sm:$0xff]
        %v463 = vld [vmem:[#allocation2 + $0x70] sm:$0xff]
        %v464 = vld [vmem:[#allocation2 + $0x78] sm:$0xff]
        %v465 = vld [vmem:[#allocation2 + $0x80] sm:$0xff]
        %v466 = vld [vmem:[#allocation2 + $0x88] sm:$0xff]
        %v467 = vld [vmem:[#allocation2 + $0x90] sm:$0xff]
        %v468 = vld [vmem:[#allocation2 + $0x98] sm:$0xff]
        %v469 = vld [vmem:[#allocation2 + $0xa0] sm:$0xff]
        %v470 = vld [vmem:[#allocation2 + $0xa8] sm:$0xff]
        %v471 = vld [vmem:[#allocation2 + $0xb0] sm:$0xff]
        %v472 = vld [vmem:[#allocation2 + $0xb8] sm:$0xff]
        %v473 = vld [vmem:[#allocation2 + $0xc0] sm:$0xff]
        %v474 = vld [vmem:[#allocation2 + $0xc8] sm:$0xff]
        %v475 = vld [vmem:[#allocation2 + $0xd0] sm:$0xff]
        %v476 = vld [vmem:[#allocation2 + $0xd8] sm:$0xff]
        %v477 = vld [vmem:[#allocation2 + $0xe0] sm:$0xff]
        %v478 = vld [vmem:[#allocation2 + $0xe8] sm:$0xff]
        %v479 = vld [vmem:[#allocation2 + $0xf0] sm:$0xff]
        %v480 = vld [vmem:[#allocation2 + $0xf8] sm:$0xff]
        %v481 = vld [vmem:[%s354] sm:$0xff]
        %v482 = vld [vmem:[%s354 + $0x8] sm:$0xff]
        %v483 = vld [vmem:[%s354 + $0x10] sm:$0xff]
        %v484 = vld [vmem:[%s354 + $0x18] sm:$0xff]
        %v485 = vld [vmem:[%s354 + $0x20] sm:$0xff]
        %v486 = vld [vmem:[%s354 + $0x28] sm:$0xff]
        %v487 = vld [vmem:[%s354 + $0x30] sm:$0xff]
        %v488 = vld [vmem:[%s354 + $0x38] sm:$0xff]
        %v489 = vld [vmem:[%s354 + $0x40] sm:$0xff]
        %v490 = vld [vmem:[%s354 + $0x48] sm:$0xff]
        %v491 = vld [vmem:[%s354 + $0x50] sm:$0xff]
        %v492 = vld [vmem:[%s354 + $0x58] sm:$0xff]
        %v493 = vld [vmem:[%s354 + $0x60] sm:$0xff]
        %v494 = vld [vmem:[%s354 + $0x68] sm:$0xff]
        %v495 = vld [vmem:[%s354 + $0x70] sm:$0xff]
        %v496 = vld [vmem:[%s354 + $0x78] sm:$0xff]
        %v497 = vld [vmem:[%s354 + $0x80] sm:$0xff]
        %v498 = vld [vmem:[%s354 + $0x88] sm:$0xff]
        %v499 = vld [vmem:[%s354 + $0x90] sm:$0xff]
        %v500 = vld [vmem:[%s354 + $0x98] sm:$0xff]
        %v501 = vld [vmem:[%s354 + $0xa0] sm:$0xff]
        %v502 = vld [vmem:[%s354 + $0xa8] sm:$0xff]
        %v503 = vld [vmem:[%s354 + $0xb0] sm:$0xff]
        %v504 = vld [vmem:[%s354 + $0xb8] sm:$0xff]
        %v505 = vld [vmem:[%s354 + $0xc0] sm:$0xff]
        %v506 = vld [vmem:[%s354 + $0xc8] sm:$0xff]
        %v507 = vld [vmem:[%s354 + $0xd0] sm:$0xff]
        %v508 = vld [vmem:[%s354 + $0xd8] sm:$0xff]
        %v509 = vld [vmem:[%s354 + $0xe0] sm:$0xff]
        %v510 = vld [vmem:[%s354 + $0xe8] sm:$0xff]
        %v511 = vld [vmem:[%s354 + $0xf0] sm:$0xff]
        %v512 = vld [vmem:[%s354 + $0xf8] sm:$0xff]
        %v513 = vld [vmem:[%s398] sm:$0xf]
        %v514 = vld [vmem:[%s398 + $0x4] sm:$0xf]
        %v515 = vld [vmem:[%s398 + $0x8] sm:$0xf]
        %v516 = vld [vmem:[%s398 + $0xc] sm:$0xf]
        %v517 = vld [vmem:[%s398 + $0x10] sm:$0xf]
        %v518 = vld [vmem:[%s398 + $0x14] sm:$0xf]
        %v519 = vld [vmem:[%s398 + $0x18] sm:$0xf]
        %v520 = vld [vmem:[%s398 + $0x1c] sm:$0xf]
        %v521 = vld [vmem:[%s398 + $0x20] sm:$0xf]
        %v522 = vld [vmem:[%s398 + $0x24] sm:$0xf]
        %v523 = vld [vmem:[%s398 + $0x28] sm:$0xf]
        %v524 = vld [vmem:[%s398 + $0x2c] sm:$0xf]
        %v525 = vld [vmem:[%s398 + $0x30] sm:$0xf]
        %v526 = vld [vmem:[%s398 + $0x34] sm:$0xf]
        %v527 = vld [vmem:[%s398 + $0x38] sm:$0xf]
        %v528 = vld [vmem:[%s398 + $0x3c] sm:$0xf]
        %v529 = vld [vmem:[%s398 + $0x40] sm:$0xf]
        %v530 = vld [vmem:[%s398 + $0x44] sm:$0xf]
        %v531 = vld [vmem:[%s398 + $0x48] sm:$0xf]
        %v532 = vld [vmem:[%s398 + $0x4c] sm:$0xf]
        %v533 = vld [vmem:[%s398 + $0x50] sm:$0xf]
        %v534 = vld [vmem:[%s398 + $0x54] sm:$0xf]
        %v535 = vld [vmem:[%s398 + $0x58] sm:$0xf]
        %v536 = vld [vmem:[%s398 + $0x5c] sm:$0xf]
        %v537 = vld [vmem:[%s398 + $0x60] sm:$0xf]
        %v538 = vld [vmem:[%s398 + $0x64] sm:$0xf]
        %v539 = vld [vmem:[%s398 + $0x68] sm:$0xf]
        %v540 = vld [vmem:[%s398 + $0x6c] sm:$0xf]
        %v541 = vld [vmem:[%s398 + $0x70] sm:$0xf]
        %v542 = vld [vmem:[%s398 + $0x74] sm:$0xf]
        %v543 = vld [vmem:[%s398 + $0x78] sm:$0xf]
        %v544 = vld [vmem:[%s398 + $0x7c] sm:$0xf]
        %v577 = vunpack.c.l.b16 %v481
        %v578 = vunpack.c.h.b16 %v481
        %v579 = vunpack.c.l.b16 %v482
        %v580 = vunpack.c.h.b16 %v482
        %v581 = vunpack.c.l.b16 %v483
        %v582 = vunpack.c.h.b16 %v483
        %v583 = vunpack.c.l.b16 %v484
        %v584 = vunpack.c.h.b16 %v484
        %v585 = vunpack.c.l.b16 %v485
        %v586 = vunpack.c.h.b16 %v485
        %v587 = vunpack.c.l.b16 %v486
        %v588 = vunpack.c.h.b16 %v486
        %v589 = vunpack.c.l.b16 %v487
        %v590 = vunpack.c.h.b16 %v487
        %v591 = vunpack.c.l.b16 %v488
        %v592 = vunpack.c.h.b16 %v488
        %v593 = vunpack.c.l.b16 %v489
        %v594 = vunpack.c.h.b16 %v489
        %v595 = vunpack.c.l.b16 %v490
        %v596 = vunpack.c.h.b16 %v490
        %v597 = vunpack.c.l.b16 %v491
        %v598 = vunpack.c.h.b16 %v491
        %v599 = vunpack.c.l.b16 %v492
        %v600 = vunpack.c.h.b16 %v492
        %v601 = vunpack.c.l.b16 %v493
        %v602 = vunpack.c.h.b16 %v493
        %v603 = vunpack.c.l.b16 %v494
        %v604 = vunpack.c.h.b16 %v494
        %v605 = vunpack.c.l.b16 %v495
        %v606 = vunpack.c.h.b16 %v495
        %v607 = vunpack.c.l.b16 %v496
        %v608 = vunpack.c.h.b16 %v496
        %v609 = vunpack.c.l.b16 %v497
        %v610 = vunpack.c.h.b16 %v497
        %v611 = vunpack.c.l.b16 %v498
        %v612 = vunpack.c.h.b16 %v498
        %v613 = vunpack.c.l.b16 %v499
        %v614 = vunpack.c.h.b16 %v499
        %v615 = vunpack.c.l.b16 %v500
        %v616 = vunpack.c.h.b16 %v500
        %v617 = vunpack.c.l.b16 %v501
        %v618 = vunpack.c.h.b16 %v501
        %v619 = vunpack.c.l.b16 %v502
        %v620 = vunpack.c.h.b16 %v502
        %v621 = vunpack.c.l.b16 %v503
        %v622 = vunpack.c.h.b16 %v503
        %v623 = vunpack.c.l.b16 %v504
        %v624 = vunpack.c.h.b16 %v504
        %v625 = vunpack.c.l.b16 %v505
        %v626 = vunpack.c.h.b16 %v505
        %v627 = vunpack.c.l.b16 %v506
        %v628 = vunpack.c.h.b16 %v506
        %v629 = vunpack.c.l.b16 %v507
        %v630 = vunpack.c.h.b16 %v507
        %v631 = vunpack.c.l.b16 %v508
        %v632 = vunpack.c.h.b16 %v508
        %v633 = vunpack.c.l.b16 %v509
        %v634 = vunpack.c.h.b16 %v509
        %v635 = vunpack.c.l.b16 %v510
        %v636 = vunpack.c.h.b16 %v510
        %v637 = vunpack.c.l.b16 %v511
        %v638 = vunpack.c.h.b16 %v511
        %v639 = vunpack.c.l.b16 %v512
        %v640 = vunpack.c.h.b16 %v512
        %v641 = vpack.c.b16 %v579, %v577
        %v642 = vpack.c.b16 %v580, %v578
        %v643 = vpack.c.b16 %v583, %v581
        %v644 = vpack.c.b16 %v584, %v582
        %v645 = vpack.c.b16 %v587, %v585
        %v646 = vpack.c.b16 %v588, %v586
        %v647 = vpack.c.b16 %v591, %v589
        %v648 = vpack.c.b16 %v592, %v590
        %v649 = vpack.c.b16 %v595, %v593
        %v650 = vpack.c.b16 %v596, %v594
        %v651 = vpack.c.b16 %v599, %v597
        %v652 = vpack.c.b16 %v600, %v598
        %v653 = vpack.c.b16 %v603, %v601
        %v654 = vpack.c.b16 %v604, %v602
        %v655 = vpack.c.b16 %v607, %v605
        %v656 = vpack.c.b16 %v608, %v606
        %v657 = vpack.c.b16 %v611, %v609
        %v658 = vpack.c.b16 %v612, %v610
        %v659 = vpack.c.b16 %v615, %v613
        %v660 = vpack.c.b16 %v616, %v614
        %v661 = vpack.c.b16 %v619, %v617
        %v662 = vpack.c.b16 %v620, %v618
        %v663 = vpack.c.b16 %v623, %v621
        %v664 = vpack.c.b16 %v624, %v622
        %v665 = vpack.c.b16 %v627, %v625
        %v666 = vpack.c.b16 %v628, %v626
        %v667 = vpack.c.b16 %v631, %v629
        %v668 = vpack.c.b16 %v632, %v630
        %v669 = vpack.c.b16 %v635, %v633
        %v670 = vpack.c.b16 %v636, %v634
        %v671 = vpack.c.b16 %v639, %v637
        %v672 = vpack.c.b16 %v640, %v638
        %v737 = vunpack.c.l.b16 %v513
        %v738 = vunpack.c.l.b16 %v514
        %v739 = vunpack.c.l.b16 %v515
        %v740 = vunpack.c.l.b16 %v516
        %v741 = vunpack.c.l.b16 %v517
        %v742 = vunpack.c.l.b16 %v518
        %v743 = vunpack.c.l.b16 %v519
        %v744 = vunpack.c.l.b16 %v520
        %v745 = vunpack.c.l.b16 %v521
        %v746 = vunpack.c.l.b16 %v522
        %v747 = vunpack.c.l.b16 %v523
        %v748 = vunpack.c.l.b16 %v524
        %v749 = vunpack.c.l.b16 %v525
        %v750 = vunpack.c.l.b16 %v526
        %v751 = vunpack.c.l.b16 %v527
        %v752 = vunpack.c.l.b16 %v528
        %v753 = vunpack.c.l.b16 %v529
        %v754 = vunpack.c.l.b16 %v530
        %v755 = vunpack.c.l.b16 %v531
        %v756 = vunpack.c.l.b16 %v532
        %v757 = vunpack.c.l.b16 %v533
        %v758 = vunpack.c.l.b16 %v534
        %v759 = vunpack.c.l.b16 %v535
        %v760 = vunpack.c.l.b16 %v536
        %v761 = vunpack.c.l.b16 %v537
        %v762 = vunpack.c.l.b16 %v538
        %v763 = vunpack.c.l.b16 %v539
        %v764 = vunpack.c.l.b16 %v540
        %v765 = vunpack.c.l.b16 %v541
        %v766 = vunpack.c.l.b16 %v542
        %v767 = vunpack.c.l.b16 %v543
        %v768 = vunpack.c.l.b16 %v544
        %v769 = vpack.c.b16 %v738, %v737
        %v770 = vpack.c.b16 %v740, %v739
        %v771 = vpack.c.b16 %v742, %v741
        %v772 = vpack.c.b16 %v744, %v743
        %v773 = vpack.c.b16 %v746, %v745
        %v774 = vpack.c.b16 %v748, %v747
        %v775 = vpack.c.b16 %v750, %v749
        %v776 = vpack.c.b16 %v752, %v751
        %v777 = vpack.c.b16 %v754, %v753
        %v778 = vpack.c.b16 %v756, %v755
        %v779 = vpack.c.b16 %v758, %v757
        %v780 = vpack.c.b16 %v760, %v759
        %v781 = vpack.c.b16 %v762, %v761
        %v782 = vpack.c.b16 %v764, %v763
        %v783 = vpack.c.b16 %v766, %v765
        %v784 = vpack.c.b16 %v768, %v767
        %801 = vmatprep.subr.bf16.mxu0 0
        %802 = vmatpush1.bf16.msra.mxu0 %v769
        %803 = vmatprep.subr.bf16.mxu0 0
        %804 = vmatpush1.bf16.msra.mxu0 %v770
        %805 = vmatprep.subr.bf16.mxu0 0
        %806 = vmatpush1.bf16.msra.mxu0 %v771
        %807 = vmatprep.subr.bf16.mxu0 0
        %808 = vmatpush1.bf16.msra.mxu0 %v772
        %809 = vmatprep.subr.bf16.mxu0 0
        %810 = vmatpush1.bf16.msra.mxu0 %v773
        %811 = vmatprep.subr.bf16.mxu0 0
        %812 = vmatpush1.bf16.msra.mxu0 %v774
        %813 = vmatprep.subr.bf16.mxu0 0
        %814 = vmatpush1.bf16.msra.mxu0 %v775
        %815 = vmatprep.subr.bf16.mxu0 0
        %816 = vmatpush1.bf16.msra.mxu0 %v776
        %817 = vmatprep.subr.bf16.mxu0 0
        %818 = vmatpush1.bf16.msra.mxu0 %v777
        %819 = vmatprep.subr.bf16.mxu0 0
        %820 = vmatpush1.bf16.msra.mxu0 %v778
        %821 = vmatprep.subr.bf16.mxu0 0
        %822 = vmatpush1.bf16.msra.mxu0 %v779
        %823 = vmatprep.subr.bf16.mxu0 0
        %824 = vmatpush1.bf16.msra.mxu0 %v780
        %825 = vmatprep.subr.bf16.mxu0 0
        %826 = vmatpush1.bf16.msra.mxu0 %v781
        %827 = vmatprep.subr.bf16.mxu0 0
        %828 = vmatpush1.bf16.msra.mxu0 %v782
        %829 = vmatprep.subr.bf16.mxu0 0
        %830 = vmatpush1.bf16.msra.mxu0 %v783
        %831 = vmatprep.subr.bf16.mxu0 0
        %832 = vmatpush1.bf16.msra.mxu0 %v784
        %833 = vmatprep.mubr.bf16.mxu0 %v642
        %834 = vmatmul.mubr.bf16.gmra.mrb[0].mxu0 %v641
        %v835 = vpop.f32.mrb[0].mxu0
        %v836 = vadd.f32 0.0, %v835
        %v837 = vpop.f32.mrb[0].mxu0
        %v838 = vpop.f32.mrb[0].mxu0
        %v839 = vadd.f32 0.0, %v838
        %v840 = vpop.f32.mrb[0].mxu0
        %841 = vmatprep.mubr.bf16.mxu0 %v644
        %842 = vmatmul.mubr.bf16.gmra.mrb[0].mxu0 %v643
        %v843 = vpop.f32.mrb[0].mxu0
        %v844 = vadd.f32 0.0, %v843
        %v845 = vpop.f32.mrb[0].mxu0
        %v846 = vpop.f32.mrb[0].mxu0
        %v847 = vadd.f32 0.0, %v846
        %v848 = vpop.f32.mrb[0].mxu0
        %849 = vmatprep.mubr.bf16.mxu0 %v646
        %850 = vmatmul.mubr.bf16.gmra.mrb[0].mxu0 %v645
        %v851 = vpop.f32.mrb[0].mxu0
        %v852 = vadd.f32 0.0, %v851
        %v853 = vpop.f32.mrb[0].mxu0
        %v854 = vpop.f32.mrb[0].mxu0
        %v855 = vadd.f32 0.0, %v854
        %v856 = vpop.f32.mrb[0].mxu0
        %857 = vmatprep.mubr.bf16.mxu0 %v648
        %858 = vmatmul.mubr.bf16.gmra.mrb[0].mxu0 %v647
        %v859 = vpop.f32.mrb[0].mxu0
        %v860 = vadd.f32 0.0, %v859
        %v861 = vpop.f32.mrb[0].mxu0
        %v862 = vpop.f32.mrb[0].mxu0
        %v863 = vadd.f32 0.0, %v862
        %v864 = vpop.f32.mrb[0].mxu0
        %865 = vmatprep.mubr.bf16.mxu0 %v650
        %866 = vmatmul.mubr.bf16.gmra.mrb[0].mxu0 %v649
        %v867 = vpop.f32.mrb[0].mxu0
        %v868 = vadd.f32 0.0, %v867
        %v869 = vpop.f32.mrb[0].mxu0
        %v870 = vpop.f32.mrb[0].mxu0
        %v871 = vadd.f32 0.0, %v870
        %v872 = vpop.f32.mrb[0].mxu0
        %873 = vmatprep.mubr.bf16.mxu0 %v652
        %874 = vmatmul.mubr.bf16.gmra.mrb[0].mxu0 %v651
        %v875 = vpop.f32.mrb[0].mxu0
        %v876 = vadd.f32 0.0, %v875
        %v877 = vpop.f32.mrb[0].mxu0
        %v878 = vpop.f32.mrb[0].mxu0
        %v879 = vadd.f32 0.0, %v878
        %v880 = vpop.f32.mrb[0].mxu0
        %881 = vmatprep.mubr.bf16.mxu0 %v654
        %882 = vmatmul.mubr.bf16.gmra.mrb[0].mxu0 %v653
        %v883 = vpop.f32.mrb[0].mxu0
        %v884 = vadd.f32 0.0, %v883
        %v885 = vpop.f32.mrb[0].mxu0
        %v886 = vpop.f32.mrb[0].mxu0
        %v887 = vadd.f32 0.0, %v886
        %v888 = vpop.f32.mrb[0].mxu0
        %889 = vmatprep.mubr.bf16.mxu0 %v656
        %890 = vmatmul.mubr.bf16.gmra.mrb[0].mxu0 %v655
        %v891 = vpop.f32.mrb[0].mxu0
        %v892 = vadd.f32 0.0, %v891
        %v893 = vpop.f32.mrb[0].mxu0
        %v894 = vpop.f32.mrb[0].mxu0
        %v895 = vadd.f32 0.0, %v894
        %v896 = vpop.f32.mrb[0].mxu0
        %897 = vmatprep.mubr.bf16.mxu0 %v658
        %898 = vmatmul.mubr.bf16.gmra.mrb[0].mxu0 %v657
        %v899 = vpop.f32.mrb[0].mxu0
        %v900 = vadd.f32 0.0, %v899
        %v901 = vpop.f32.mrb[0].mxu0
        %v902 = vpop.f32.mrb[0].mxu0
        %v903 = vadd.f32 0.0, %v902
        %v904 = vpop.f32.mrb[0].mxu0
        %905 = vmatprep.mubr.bf16.mxu0 %v660
        %906 = vmatmul.mubr.bf16.gmra.mrb[0].mxu0 %v659
        %v907 = vpop.f32.mrb[0].mxu0
        %v908 = vadd.f32 0.0, %v907
        %v909 = vpop.f32.mrb[0].mxu0
        %v910 = vpop.f32.mrb[0].mxu0
        %v911 = vadd.f32 0.0, %v910
        %v912 = vpop.f32.mrb[0].mxu0
        %913 = vmatprep.mubr.bf16.mxu0 %v662
        %914 = vmatmul.mubr.bf16.gmra.mrb[0].mxu0 %v661
        %v915 = vpop.f32.mrb[0].mxu0
        %v916 = vadd.f32 0.0, %v915
        %v917 = vpop.f32.mrb[0].mxu0
        %v918 = vpop.f32.mrb[0].mxu0
        %v919 = vadd.f32 0.0, %v918
        %v920 = vpop.f32.mrb[0].mxu0
        %921 = vmatprep.mubr.bf16.mxu0 %v664
        %922 = vmatmul.mubr.bf16.gmra.mrb[0].mxu0 %v663
        %v923 = vpop.f32.mrb[0].mxu0
        %v924 = vadd.f32 0.0, %v923
        %v925 = vpop.f32.mrb[0].mxu0
        %v926 = vpop.f32.mrb[0].mxu0
        %v927 = vadd.f32 0.0, %v926
        %v928 = vpop.f32.mrb[0].mxu0
        %929 = vmatprep.mubr.bf16.mxu0 %v666
        %930 = vmatmul.mubr.bf16.gmra.mrb[0].mxu0 %v665
        %v931 = vpop.f32.mrb[0].mxu0
        %v932 = vadd.f32 0.0, %v931
        %v933 = vpop.f32.mrb[0].mxu0
        %v934 = vpop.f32.mrb[0].mxu0
        %v935 = vadd.f32 0.0, %v934
        %v936 = vpop.f32.mrb[0].mxu0
        %937 = vmatprep.mubr.bf16.mxu0 %v668
        %938 = vmatmul.mubr.bf16.gmra.mrb[0].mxu0 %v667
        %v939 = vpop.f32.mrb[0].mxu0
        %v940 = vadd.f32 0.0, %v939
        %v941 = vpop.f32.mrb[0].mxu0
        %v942 = vpop.f32.mrb[0].mxu0
        %v943 = vadd.f32 0.0, %v942
        %v944 = vpop.f32.mrb[0].mxu0
        %945 = vmatprep.mubr.bf16.mxu0 %v670
        %946 = vmatmul.mubr.bf16.gmra.mrb[0].mxu0 %v669
        %v947 = vpop.f32.mrb[0].mxu0
        %v948 = vadd.f32 0.0, %v947
        %v949 = vpop.f32.mrb[0].mxu0
        %v950 = vpop.f32.mrb[0].mxu0
        %v951 = vadd.f32 0.0, %v950
        %v952 = vpop.f32.mrb[0].mxu0
        %953 = vmatprep.mubr.bf16.mxu0 %v672
        %954 = vmatmul.mubr.bf16.gmra.mrb[0].mxu0 %v671
        %v955 = vpop.f32.mrb[0].mxu0
        %v956 = vadd.f32 0.0, %v955
        %v957 = vpop.f32.mrb[0].mxu0
        %v958 = vpop.f32.mrb[0].mxu0
        %v959 = vadd.f32 0.0, %v958
        %v960 = vpop.f32.mrb[0].mxu0
        %961 = vdwg.mxu0
        %v962 = vadd.f32 %v449, %v836
        %v963 = vadd.f32 %v450, %v839
        %v964 = vadd.f32 %v451, %v844
        %v965 = vadd.f32 %v452, %v847
        %v966 = vadd.f32 %v453, %v852
        %v967 = vadd.f32 %v454, %v855
        %v968 = vadd.f32 %v455, %v860
        %v969 = vadd.f32 %v456, %v863
        %v970 = vadd.f32 %v457, %v868
        %v971 = vadd.f32 %v458, %v871
        %v972 = vadd.f32 %v459, %v876
        %v973 = vadd.f32 %v460, %v879
        %v974 = vadd.f32 %v461, %v884
        %v975 = vadd.f32 %v462, %v887
        %v976 = vadd.f32 %v463, %v892
        %v977 = vadd.f32 %v464, %v895
        %v978 = vadd.f32 %v465, %v900
        %v979 = vadd.f32 %v466, %v903
        %v980 = vadd.f32 %v467, %v908
        %v981 = vadd.f32 %v468, %v911
        %v982 = vadd.f32 %v469, %v916
        %v983 = vadd.f32 %v470, %v919
        %v984 = vadd.f32 %v471, %v924
        %v985 = vadd.f32 %v472, %v927
        %v986 = vadd.f32 %v473, %v932
        %v987 = vadd.f32 %v474, %v935
        %v988 = vadd.f32 %v475, %v940
        %v989 = vadd.f32 %v476, %v943
        %v990 = vadd.f32 %v477, %v948
        %v991 = vadd.f32 %v478, %v951
        %v992 = vadd.f32 %v479, %v956
        %v993 = vadd.f32 %v480, %v959
        %994 = vst [vmem:[#allocation2] sm:$0xff] %v962
        %995 = vst [vmem:[#allocation2 + $0x8] sm:$0xff] %v963
        %996 = vst [vmem:[#allocation2 + $0x10] sm:$0xff] %v964
        %997 = vst [vmem:[#allocation2 + $0x18] sm:$0xff] %v965
        %998 = vst [vmem:[#allocation2 + $0x20] sm:$0xff] %v966
        %999 = vst [vmem:[#allocation2 + $0x28] sm:$0xff] %v967
        %1000 = vst [vmem:[#allocation2 + $0x30] sm:$0xff] %v968
        %1001 = vst [vmem:[#allocation2 + $0x38] sm:$0xff] %v969
        %1002 = vst [vmem:[#allocation2 + $0x40] sm:$0xff] %v970
        %1003 = vst [vmem:[#allocation2 + $0x48] sm:$0xff] %v971
        %1004 = vst [vmem:[#allocation2 + $0x50] sm:$0xff] %v972
        %1005 = vst [vmem:[#allocation2 + $0x58] sm:$0xff] %v973
        %1006 = vst [vmem:[#allocation2 + $0x60] sm:$0xff] %v974
        %1007 = vst [vmem:[#allocation2 + $0x68] sm:$0xff] %v975
        %1008 = vst [vmem:[#allocation2 + $0x70] sm:$0xff] %v976
        %1009 = vst [vmem:[#allocation2 + $0x78] sm:$0xff] %v977
        %1010 = vst [vmem:[#allocation2 + $0x80] sm:$0xff] %v978
        %1011 = vst [vmem:[#allocation2 + $0x88] sm:$0xff] %v979
        %1012 = vst [vmem:[#allocation2 + $0x90] sm:$0xff] %v980
        %1013 = vst [vmem:[#allocation2 + $0x98] sm:$0xff] %v981
        %1014 = vst [vmem:[#allocation2 + $0xa0] sm:$0xff] %v982
        %1015 = vst [vmem:[#allocation2 + $0xa8] sm:$0xff] %v983
        %1016 = vst [vmem:[#allocation2 + $0xb0] sm:$0xff] %v984
        %1017 = vst [vmem:[#allocation2 + $0xb8] sm:$0xff] %v985
        %1018 = vst [vmem:[#allocation2 + $0xc0] sm:$0xff] %v986
        %1019 = vst [vmem:[#allocation2 + $0xc8] sm:$0xff] %v987
        %1020 = vst [vmem:[#allocation2 + $0xd0] sm:$0xff] %v988
        %1021 = vst [vmem:[#allocation2 + $0xd8] sm:$0xff] %v989
        %1022 = vst [vmem:[#allocation2 + $0xe0] sm:$0xff] %v990
        %1023 = vst [vmem:[#allocation2 + $0xe8] sm:$0xff] %v991
        %1024 = vst [vmem:[#allocation2 + $0xf0] sm:$0xff] %v992
        %1025 = vst [vmem:[#allocation2 + $0xf8] sm:$0xff] %v993
        %p1026 = scmp.eq.s32.totalorder %s21, 4
        // Predicated region
        $region75: #{inception_a.9} parent=65 // pred_check
          %p1027 = pneg %p1026
        $region76: #{inception_a.9} parent=65 // pred_check_branch
          %1029 = sbr.rel (%p1027) target = $region78
        $region77: #{inception_a.9} parent=65 // pred_region
          %v1030 = vld [vmem:[#allocation2] sm:$0xff]
          %v1031 = vld [vmem:[#allocation2 + $0x8] sm:$0xff]
          %v1032 = vld [vmem:[#allocation2 + $0x10] sm:$0xff]
          %v1033 = vld [vmem:[#allocation2 + $0x18] sm:$0xff]
          %v1034 = vld [vmem:[#allocation2 + $0x20] sm:$0xff]
          %v1035 = vld [vmem:[#allocation2 + $0x28] sm:$0xff]
          %v1036 = vld [vmem:[#allocation2 + $0x30] sm:$0xff]
          %v1037 = vld [vmem:[#allocation2 + $0x38] sm:$0xff]
          %v1038 = vld [vmem:[#allocation2 + $0x40] sm:$0xff]
          %v1039 = vld [vmem:[#allocation2 + $0x48] sm:$0xff]
          %v1040 = vld [vmem:[#allocation2 + $0x50] sm:$0xff]
          %v1041 = vld [vmem:[#allocation2 + $0x58] sm:$0xff]
          %v1042 = vld [vmem:[#allocation2 + $0x60] sm:$0xff]
          %v1043 = vld [vmem:[#allocation2 + $0x68] sm:$0xff]
          %v1044 = vld [vmem:[#allocation2 + $0x70] sm:$0xff]
          %v1045 = vld [vmem:[#allocation2 + $0x78] sm:$0xff]
          %v1046 = vld [vmem:[#allocation2 + $0x80] sm:$0xff]
          %v1047 = vld [vmem:[#allocation2 + $0x88] sm:$0xff]
          %v1048 = vld [vmem:[#allocation2 + $0x90] sm:$0xff]
          %v1049 = vld [vmem:[#allocation2 + $0x98] sm:$0xff]
          %v1050 = vld [vmem:[#allocation2 + $0xa0] sm:$0xff]
          %v1051 = vld [vmem:[#allocation2 + $0xa8] sm:$0xff]
          %v1052 = vld [vmem:[#allocation2 + $0xb0] sm:$0xff]
          %v1053 = vld [vmem:[#allocation2 + $0xb8] sm:$0xff]
          %v1054 = vld [vmem:[#allocation2 + $0xc0] sm:$0xff]
          %v1055 = vld [vmem:[#allocation2 + $0xc8] sm:$0xff]
          %v1056 = vld [vmem:[#allocation2 + $0xd0] sm:$0xff]
          %v1057 = vld [vmem:[#allocation2 + $0xd8] sm:$0xff]
          %v1058 = vld [vmem:[#allocation2 + $0xe0] sm:$0xff]
          %v1059 = vld [vmem:[#allocation2 + $0xe8] sm:$0xff]
          %v1060 = vld [vmem:[#allocation2 + $0xf0] sm:$0xff]
          %v1061 = vld [vmem:[#allocation2 + $0xf8] sm:$0xff]
          %v1062 = vld [vmem:[%s402] sm:$0x1]
          %v1064 = vlaneseq
          %v1065 = vshrl.u32 %v1064, 7
          %v1066 = vsub.s32 0, %v1065
          %v1067 = vrot.slane %v1062, %v1066
          %v1069 = vadd.f32 %v1030, %v1067
          %v1070 = vadd.f32 %v1031, %v1067
          %v1071 = vadd.f32 %v1032, %v1067
          %v1072 = vadd.f32 %v1033, %v1067
          %v1073 = vadd.f32 %v1034, %v1067
          %v1074 = vadd.f32 %v1035, %v1067
          %v1075 = vadd.f32 %v1036, %v1067
          %v1076 = vadd.f32 %v1037, %v1067
          %v1077 = vadd.f32 %v1038, %v1067
          %v1078 = vadd.f32 %v1039, %v1067
          %v1079 = vadd.f32 %v1040, %v1067
          %v1080 = vadd.f32 %v1041, %v1067
          %v1081 = vadd.f32 %v1042, %v1067
          %v1082 = vadd.f32 %v1043, %v1067
          %v1083 = vadd.f32 %v1044, %v1067
          %v1084 = vadd.f32 %v1045, %v1067
          %v1085 = vadd.f32 %v1046, %v1067
          %v1086 = vadd.f32 %v1047, %v1067
          %v1087 = vadd.f32 %v1048, %v1067
          %v1088 = vadd.f32 %v1049, %v1067
          %v1089 = vadd.f32 %v1050, %v1067
          %v1090 = vadd.f32 %v1051, %v1067
          %v1091 = vadd.f32 %v1052, %v1067
          %v1092 = vadd.f32 %v1053, %v1067
          %v1093 = vadd.f32 %v1054, %v1067
          %v1094 = vadd.f32 %v1055, %v1067
          %v1095 = vadd.f32 %v1056, %v1067
          %v1096 = vadd.f32 %v1057, %v1067
          %v1097 = vadd.f32 %v1058, %v1067
          %v1098 = vadd.f32 %v1059, %v1067
          %v1099 = vadd.f32 %v1060, %v1067
          %v1100 = vadd.f32 %v1061, %v1067
          %v1101 = vmax.f32 %v1069, 0.0
          %v1102 = vmax.f32 %v1070, 0.0
          %v1103 = vmax.f32 %v1071, 0.0
          %v1104 = vmax.f32 %v1072, 0.0
          %v1105 = vmax.f32 %v1073, 0.0
          %v1106 = vmax.f32 %v1074, 0.0
          %v1107 = vmax.f32 %v1075, 0.0
          %v1108 = vmax.f32 %v1076, 0.0
          %v1109 = vmax.f32 %v1077, 0.0
          %v1110 = vmax.f32 %v1078, 0.0
          %v1111 = vmax.f32 %v1079, 0.0
          %v1112 = vmax.f32 %v1080, 0.0
          %v1113 = vmax.f32 %v1081, 0.0
          %v1114 = vmax.f32 %v1082, 0.0
          %v1115 = vmax.f32 %v1083, 0.0
          %v1116 = vmax.f32 %v1084, 0.0
          %v1117 = vmax.f32 %v1085, 0.0
          %v1118 = vmax.f32 %v1086, 0.0
          %v1119 = vmax.f32 %v1087, 0.0
          %v1120 = vmax.f32 %v1088, 0.0
          %v1121 = vmax.f32 %v1089, 0.0
          %v1122 = vmax.f32 %v1090, 0.0
          %v1123 = vmax.f32 %v1091, 0.0
          %v1124 = vmax.f32 %v1092, 0.0
          %v1125 = vmax.f32 %v1093, 0.0
          %v1126 = vmax.f32 %v1094, 0.0
          %v1127 = vmax.f32 %v1095, 0.0
          %v1128 = vmax.f32 %v1096, 0.0
          %v1129 = vmax.f32 %v1097, 0.0
          %v1130 = vmax.f32 %v1098, 0.0
          %v1131 = vmax.f32 %v1099, 0.0
          %v1132 = vmax.f32 %v1100, 0.0
          %1133 = vst [vmem:[%s410] sm:$0xff] %v1101
          %1134 = vst [vmem:[%s410 + $0x8] sm:$0xff] %v1102
          %1135 = vst [vmem:[%s410 + $0x10] sm:$0xff] %v1103
          %1136 = vst [vmem:[%s410 + $0x18] sm:$0xff] %v1104
          %1137 = vst [vmem:[%s410 + $0x20] sm:$0xff] %v1105
          %1138 = vst [vmem:[%s410 + $0x28] sm:$0xff] %v1106
          %1139 = vst [vmem:[%s410 + $0x30] sm:$0xff] %v1107
          %1140 = vst [vmem:[%s410 + $0x38] sm:$0xff] %v1108
          %1141 = vst [vmem:[%s410 + $0x40] sm:$0xff] %v1109
          %1142 = vst [vmem:[%s410 + $0x48] sm:$0xff] %v1110
          %1143 = vst [vmem:[%s410 + $0x50] sm:$0xff] %v1111
          %1144 = vst [vmem:[%s410 + $0x58] sm:$0xff] %v1112
          %1145 = vst [vmem:[%s410 + $0x60] sm:$0xff] %v1113
          %1146 = vst [vmem:[%s410 + $0x68] sm:$0xff] %v1114
          %1147 = vst [vmem:[%s410 + $0x70] sm:$0xff] %v1115
          %1148 = vst [vmem:[%s410 + $0x78] sm:$0xff] %v1116
          %1149 = vst [vmem:[%s410 + $0x80] sm:$0xff] %v1117
          %1150 = vst [vmem:[%s410 + $0x88] sm:$0xff] %v1118
          %1151 = vst [vmem:[%s410 + $0x90] sm:$0xff] %v1119
          %1152 = vst [vmem:[%s410 + $0x98] sm:$0xff] %v1120
          %1153 = vst [vmem:[%s410 + $0xa0] sm:$0xff] %v1121
          %1154 = vst [vmem:[%s410 + $0xa8] sm:$0xff] %v1122
          %1155 = vst [vmem:[%s410 + $0xb0] sm:$0xff] %v1123
          %1156 = vst [vmem:[%s410 + $0xb8] sm:$0xff] %v1124
          %1157 = vst [vmem:[%s410 + $0xc0] sm:$0xff] %v1125
          %1158 = vst [vmem:[%s410 + $0xc8] sm:$0xff] %v1126
          %1159 = vst [vmem:[%s410 + $0xd0] sm:$0xff] %v1127
          %1160 = vst [vmem:[%s410 + $0xd8] sm:$0xff] %v1128
          %1161 = vst [vmem:[%s410 + $0xe0] sm:$0xff] %v1129
          %1162 = vst [vmem:[%s410 + $0xe8] sm:$0xff] %v1130
          %1163 = vst [vmem:[%s410 + $0xf0] sm:$0xff] %v1131
          %1164 = vst [vmem:[%s410 + $0xf8] sm:$0xff] %v1132
        $region78: #{inception_a.9} parent=65 // pred_fallthru
          _
        %s1165 = smul.u32 32, %s19
        %p1166 = scmp.lt.s32.totalorder %s1165, 63
        %s1167 = scalar_select %p1166, %s1165, 63
        %p1168 = scmp.lt.s32.totalorder %s20, 0
        %s1169 = scalar_select %p1168, %s20, 0
        %s1170 = sadd.s32 %s1169, %s1167
        %s1171 = smul.addr %s1170, 8
        %s1172 = scalar_lea.vmem %s3, %s1171
        // Predicated region
        $region79: #{inception_a.9} parent=65 // pred_check
          %p1173 = pneg %p135
        $region80: #{inception_a.9} parent=65 // pred_check_branch
          %1175 = sbr.rel (%p1173) target = $region82
        $region81: #{inception_a.9} parent=65 // pred_region
          %s1176 = smul.u32 32, %s19
        $region82: #{inception_a.9} parent=65 // pred_fallthru
          _
      $region66: #{inception_a.9} parent=5 // pred_fallthru
        _
      %p1177 = scmp.le.s32.totalorder 2, %s9
      // Predicated region
      $region83: #{inception_a.9} parent=5 // pred_check
        %p1178 = pneg %p1177
      $region84: #{inception_a.9} parent=5 // pred_check_branch
        %1180 = sbr.rel (%p1178) target = $region86
      $region85: #{inception_a.9} parent=5 // pred_region
        %s1181 = ssub.s32 %s9, 2
        // Predicated region
        $region87: #{inception_a.9} parent=85 // pred_check
          %p1182 = pneg %p141
        $region88: #{inception_a.9} parent=85 // pred_check_branch
          %1184 = sbr.rel (%p1182) target = $region90
        $region89: #{inception_a.9} parent=85 // pred_region
          %s1185 = smul.u32 32, %s22
          %p1186 = scmp.lt.s32.totalorder %s1185, 63
          %s1187 = scalar_select %p1186, %s1185, 63
          %p1188 = scmp.lt.s32.totalorder %s23, 0
          %s1189 = scalar_select %p1188, %s23, 0
          %s1190 = sadd.s32 %s1189, %s1187
          %s1191 = smul.addr %s1190, 8
          %s1192 = scalar_lea.vmem %s3, %s1191
        $region90: #{inception_a.9} parent=85 // pred_fallthru
          _
      $region86: #{inception_a.9} parent=5 // pred_fallthru
        _
    $region6: #{inception_a.9} parent=1 // loop_footer
      %s13 = sadd.s32 1, %s9
    $region7: #{inception_a.9} parent=1 // loop_footer_branch
      %8 = sbr.rel target = $region3
    $region8: #{inception_a.9} parent=1 // loop_exit
      _

// kernel: inception_a.11
$region0: #{inception_a.11}
  #allocation0 [shape = 'u32[]', space=smem, size = 0x4, offset = 0x4, fixed_abs, tag = 'smem constant byte address 0x4 - core index']
  #allocation1 [shape = 'u32[144,128]{1,0:T(1,128)}', space=vmem, size = 0x12000, scoped, tag = 'internal scratch']
  #allocation2 [shape = 'f32[256,128]{1,0:T(8,128)}', space=vmem, size = 0x20000, scoped, tag = 'scratch operand']
  %s0 = inlined_call_operand.vmem [shape: bf16[512,640], index: 0, kind: input, shape index: {}]
  %s1 = inlined_call_operand.vmem [shape: bf16[640,128], index: 1, kind: input, shape index: {}]
  %s2 = inlined_call_operand.vmem [shape: f32[1,128], index: 2, kind: input, shape index: {}]
  %s3 = inlined_call_operand.vmem [shape: f32[512,128], index: 3, kind: output, shape index: {}]
  %s4 = sld [smem:[#allocation0]]
  $region94: #{inception_a.11} parent=0
    _
  %s6 = ssub.s32 1, %s4
  %s7 = scalar_select 0, %s6, %s4
  $region1: #{inception_a.11} parent=0
    #allocation3 [shape = 'u8[131072]{0}', space=vmem, size = 0x20000, scoped, tag = 'input window, operand 0']
    loop: start=0, step=1, limit=12
    $region2: #{inception_a.11} parent=1 // loop_pre_header
      _
    $region3: #{inception_a.11} parent=1 // loop_header
      %s9 = sphi 0, %s13
      %p10 = scmp.ge.s32.totalorder %s9, 12
      %s16 = sphi 0, %s35
      %s17 = sphi 0, %s31
      %s18 = sphi 0, %s27
      %s19 = sphi 0, %s16
      %s20 = sphi 0, %s17
      %s21 = sphi 0, %s18
      %s22 = sphi 0, %s19
      %s23 = sphi 0, %s20
      %s24 = sphi 0, %s21
      %s40 = sphi 0, %s42
      %s43 = sphi 0, %s40
      %s44 = sphi 0, %s43
      %s60 = sphi 0, %s44
      %s68 = sphi 0, %s70
      %s71 = sphi 0, %s68
      %s72 = sphi 0, %s71
      %s88 = sphi 0, %s72
      %s94 = sphi 0, %s96
      %s97 = sphi 0, %s94
      %s98 = sphi 0, %s97
      %s114 = sphi 0, %s98
      %s122 = sphi 0, %s124
      %s125 = sphi 0, %s122
      %s126 = sphi 0, %s125
      %s142 = sphi 0, %s126
    $region4: #{inception_a.11} parent=1 // loop_header_branch
      %12 = sbr.rel (%p10) target = $region8
    $region5: #{inception_a.11} parent=1 // loop_body
      %s14 = ssub.s32 %s9, 1
      %s15 = ssub.s32 %s9, 2
      %s25 = sadd.s32 1, %s18
      %p26 = scmp.ge.s32.totalorder %s25, 5
      %s27 = scalar_select %p26, 0, %s25
      %s28 = sadd.s32 1, %s17
      %s29 = scalar_select %p26, %s28, %s17
      %p30 = scmp.ge.s32.totalorder %s29, 1
      %s31 = scalar_select %p30, 0, %s29
      %s32 = sadd.s32 1, %s16
      %s33 = scalar_select %p30, %s32, %s16
      %p34 = scmp.ge.s32.totalorder %s33, 2
      %s35 = scalar_select %p34, 0, %s33
      %s36 = ssub.s32 %s16, %s35
      %s37 = ssub.s32 %s18, %s27
      %s38 = sor.u32 %s36, %s37
      %p39 = scmp.eq.s32.totalorder %s38, 0
      %s41 = sadd.s32 %s40, 1
      %s42 = scalar_select %p39, %s40, %s41
      %p45 = pneg %p39
      %p46 = scmp.eq.s32.totalorder %s9, 9
      %p47 = por %p45, %p46
      %p48 = scmp.ne.s32.totalorder %s40, %s43
      %p49 = scmp.eq.s32.totalorder %s9, 0
      %p50 = por %p48, %p49
      %p51 = scmp.ne.s32.totalorder %s40, %s43
      %p52 = scmp.eq.s32.totalorder %s14, 9
      %p53 = por %p51, %p52
      %p54 = scmp.ne.s32.totalorder %s43, %s44
      %p55 = scmp.eq.s32.totalorder %s14, 0
      %p56 = por %p54, %p55
      %p57 = scmp.ne.s32.totalorder %s43, %s44
      %p58 = scmp.eq.s32.totalorder %s15, 9
      %p59 = por %p57, %p58
      %p61 = scmp.ne.s32.totalorder %s44, %s60
      %p62 = scmp.eq.s32.totalorder %s15, 0
      %p63 = por %p61, %p62
      %s64 = ssub.s32 %s18, %s27
      %s65 = ssub.s32 %s17, %s31
      %s66 = sor.u32 %s64, %s65
      %p67 = scmp.eq.s32.totalorder %s66, 0
      %s69 = sadd.s32 %s68, 1
      %s70 = scalar_select %p67, %s68, %s69
      %p73 = pneg %p67
      %p74 = scmp.eq.s32.totalorder %s9, 9
      %p75 = por %p73, %p74
      %p76 = scmp.ne.s32.totalorder %s68, %s71
      %p77 = scmp.eq.s32.totalorder %s9, 0
      %p78 = por %p76, %p77
      %p79 = scmp.ne.s32.totalorder %s68, %s71
      %p80 = scmp.eq.s32.totalorder %s14, 9
      %p81 = por %p79, %p80
      %p82 = scmp.ne.s32.totalorder %s71, %s72
      %p83 = scmp.eq.s32.totalorder %s14, 0
      %p84 = por %p82, %p83
      %p85 = scmp.ne.s32.totalorder %s71, %s72
      %p86 = scmp.eq.s32.totalorder %s15, 9
      %p87 = por %p85, %p86
      %p89 = scmp.ne.s32.totalorder %s72, %s88
      %p90 = scmp.eq.s32.totalorder %s15, 0
      %p91 = por %p89, %p90
      %s92 = ssub.s32 %s17, %s31
      %p93 = scmp.eq.s32.totalorder %s92, 0
      %s95 = sadd.s32 %s94, 1
      %s96 = scalar_select %p93, %s94, %s95
      %p99 = pneg %p93
      %p100 = scmp.eq.s32.totalorder %s9, 9
      %p101 = por %p99, %p100
      %p102 = scmp.ne.s32.totalorder %s94, %s97
      %p103 = scmp.eq.s32.totalorder %s9, 0
      %p104 = por %p102, %p103
      %p105 = scmp.ne.s32.totalorder %s94, %s97
      %p106 = scmp.eq.s32.totalorder %s14, 9
      %p107 = por %p105, %p106
      %p108 = scmp.ne.s32.totalorder %s97, %s98
      %p109 = scmp.eq.s32.totalorder %s14, 0
      %p110 = por %p108, %p109
      %p111 = scmp.ne.s32.totalorder %s97, %s98
      %p112 = scmp.eq.s32.totalorder %s15, 9
      %p113 = por %p111, %p112
      %p115 = scmp.ne.s32.totalorder %s98, %s114
      %p116 = scmp.eq.s32.totalorder %s15, 0
      %p117 = por %p115, %p116
      %s118 = ssub.s32 %s16, %s35
      %s119 = ssub.s32 %s17, %s31
      %s120 = sor.u32 %s118, %s119
      %p121 = scmp.eq.s32.totalorder %s120, 0
      %s123 = sadd.s32 %s122, 1
      %s124 = scalar_select %p121, %s122, %s123
      %p127 = pneg %p121
      %p128 = scmp.eq.s32.totalorder %s9, 9
      %p129 = por %p127, %p128
      %p130 = scmp.ne.s32.totalorder %s122, %s125
      %p131 = scmp.eq.s32.totalorder %s9, 0
      %p132 = por %p130, %p131
      %p133 = scmp.ne.s32.totalorder %s122, %s125
      %p134 = scmp.eq.s32.totalorder %s14, 9
      %p135 = por %p133, %p134
      %p136 = scmp.ne.s32.totalorder %s125, %s126
      %p137 = scmp.eq.s32.totalorder %s14, 0
      %p138 = por %p136, %p137
      %p139 = scmp.ne.s32.totalorder %s125, %s126
      %p140 = scmp.eq.s32.totalorder %s15, 9
      %p141 = por %p139, %p140
      %p143 = scmp.ne.s32.totalorder %s126, %s142
      %p144 = scmp.eq.s32.totalorder %s15, 0
      %p145 = por %p143, %p144
      %p146 = scmp.le.s32.totalorder 1, %s9
      %p147 = scmp.lt.s32.totalorder %s9, 11
      %p148 = pnand %p146, %p147
      %p149 = pneg %p148
      // Predicated region
      $region9: #{inception_a.11} parent=5 // pred_check
        _
      $region10: #{inception_a.11} parent=5 // pred_check_branch
        %151 = sbr.rel (%p148) target = $region12
      $region11: #{inception_a.11} parent=5 // pred_region
        %s152 = ssub.s32 %s9, 1
        // Predicated region
        $region13: #{inception_a.11} parent=11 // pred_check
          %p153 = pneg %p110
        $region14: #{inception_a.11} parent=11 // pred_check_branch
          %155 = sbr.rel (%p153) target = $region16
        $region15: #{inception_a.11} parent=11 // pred_region
          %p156 = scmp.lt.s32.totalorder %s20, 0
          %s157 = scalar_select %p156, %s20, 0
          %s158 = scalar_lea.vmem %s2, %s157
        $region16: #{inception_a.11} parent=11 // pred_fallthru
          _
      $region12: #{inception_a.11} parent=5 // pred_fallthru
        _
      %p159 = scmp.lt.s32.totalorder %s9, 10
      // Predicated region
      $region17: #{inception_a.11} parent=5 // pred_check
        %p160 = pneg %p159
      $region18: #{inception_a.11} parent=5 // pred_check_branch
        %162 = sbr.rel (%p160) target = $region20
      $region19: #{inception_a.11} parent=5 // pred_region
        // Predicated region
        $region21: #{inception_a.11} parent=19 // pred_check
          %p163 = pneg %p50
        $region22: #{inception_a.11} parent=19 // pred_check_branch
          %165 = sbr.rel (%p163) target = $region24
        $region23: #{inception_a.11} parent=19 // pred_region
          %s166 = sand.u32 %s40, 1
          %s167 = sand.u32 %s40, 1
          %s168 = smul.addr %s167, 128
          %s169 = scalar_lea.vmem [#allocation3], %s168
          %s170 = smul.u32 32, %s16
          %s171 = smul.addr %s170, 5
          %s172 = sadd.s32 %s18, %s171
          %s173 = smul.addr %s172, 4
          %s174 = scalar_lea.vmem %s0, %s173
          // Predicated region
          $region25: #{inception_a.11} parent=23 // pred_check
            _
          $region26: #{inception_a.11} parent=23 // pred_check_branch
            %176 = sbr.rel (0) target = $region28
          $region27: #{inception_a.11} parent=23 // pred_region
            // Predicated region
            $region29: #{inception_a.11} parent=27 // pred_check
              _
            $region30: #{inception_a.11} parent=27 // pred_check_branch
              %178 = sbr.rel target = $region32
            $region31: #{inception_a.11} parent=27 // pred_region
              // Predicated region
              $region44: #{inception_a.11} parent=31 // pred_check
                _
              $region45: #{inception_a.11} parent=31 // pred_check_branch
                %255 = sbr.rel (0) target = $region47
              $region46: #{inception_a.11} parent=31 // pred_region
                loop: start=0, step=1, limit=1
                $region48: #{inception_a.11} parent=46 // loop_pre_header
                  _
                $region49: #{inception_a.11} parent=46 // loop_header
                  %s257 = sphi 0, %s261
                  %p258 = scmp.ge.s32.totalorder %s257, 1
                  %s262 = sphi %s174, %s174
                  %s263 = sphi %s169, %s169
                $region50: #{inception_a.11} parent=46 // loop_header_branch
                  %260 = sbr.rel (%p258) target = $region54
                $region51: #{inception_a.11} parent=46 // loop_body
                  _
                $region52: #{inception_a.11} parent=46 // loop_footer
                  %s261 = sadd.s32 1, %s257
                $region53: #{inception_a.11} parent=46 // loop_footer_branch
                  %256 = sbr.rel target = $region49
                $region54: #{inception_a.11} parent=46 // loop_exit
                  _
                loop: start=0, step=1, limit=1
                $region55: #{inception_a.11} parent=46 // loop_pre_header
                  _
                $region56: #{inception_a.11} parent=46 // loop_header
                  %s266 = sphi 0, %s270
                  %p267 = scmp.ge.s32.totalorder %s266, 1
                  %s271 = sphi %s174, %s174
                  %s272 = sphi %s169, %s169
                $region57: #{inception_a.11} parent=46 // loop_header_branch
                  %269 = sbr.rel (%p267) target = $region61
                $region58: #{inception_a.11} parent=46 // loop_body
                  %v273 = vld [vmem:[%s271] sm:$0xf]
                  %274 = vst [vmem:[%s272] sm:$0xf] %v273
                  %v275 = vld [vmem:[%s271 + $0x14] sm:$0xf]
                  %276 = vst [vmem:[%s272 + $0x4] sm:$0xf] %v275
                  %v277 = vld [vmem:[%s271 + $0x28] sm:$0xf]
                  %278 = vst [vmem:[%s272 + $0x8] sm:$0xf] %v277
                  %v279 = vld [vmem:[%s271 + $0x3c] sm:$0xf]
                  %280 = vst [vmem:[%s272 + $0xc] sm:$0xf] %v279
                  %v281 = vld [vmem:[%s271 + $0x50] sm:$0xf]
                  %282 = vst [vmem:[%s272 + $0x10] sm:$0xf] %v281
                  %v283 = vld [vmem:[%s271 + $0x64] sm:$0xf]
                  %284 = vst [vmem:[%s272 + $0x14] sm:$0xf] %v283
                  %v285 = vld [vmem:[%s271 + $0x78] sm:$0xf]
                  %286 = vst [vmem:[%s272 + $0x18] sm:$0xf] %v285
                  %v287 = vld [vmem:[%s271 + $0x8c] sm:$0xf]
                  %288 = vst [vmem:[%s272 + $0x1c] sm:$0xf] %v287
                  %v289 = vld [vmem:[%s271 + $0xa0] sm:$0xf]
                  %290 = vst [vmem:[%s272 + $0x20] sm:$0xf] %v289
                  %v291 = vld [vmem:[%s271 + $0xb4] sm:$0xf]
                  %292 = vst [vmem:[%s272 + $0x24] sm:$0xf] %v291
                  %v293 = vld [vmem:[%s271 + $0xc8] sm:$0xf]
                  %294 = vst [vmem:[%s272 + $0x28] sm:$0xf] %v293
                  %v295 = vld [vmem:[%s271 + $0xdc] sm:$0xf]
                  %296 = vst [vmem:[%s272 + $0x2c] sm:$0xf] %v295
                  %v297 = vld [vmem:[%s271 + $0xf0] sm:$0xf]
                  %298 = vst [vmem:[%s272 + $0x30] sm:$0xf] %v297
                  %v299 = vld [vmem:[%s271 + $0x104] sm:$0xf]
                  %300 = vst [vmem:[%s272 + $0x34] sm:$0xf] %v299
                  %v301 = vld [vmem:[%s271 + $0x118] sm:$0xf]
                  %302 = vst [vmem:[%s272 + $0x38] sm:$0xf] %v301
                  %v303 = vld [vmem:[%s271 + $0x12c] sm:$0xf]
                  %304 = vst [vmem:[%s272 + $0x3c] sm:$0xf] %v303
                  %v305 = vld [vmem:[%s271 + $0x140] sm:$0xf]
                  %306 = vst [vmem:[%s272 + $0x40] sm:$0xf] %v305
                  %v307 = vld [vmem:[%s271 + $0x154] sm:$0xf]
                  %308 = vst [vmem:[%s272 + $0x44] sm:$0xf] %v307
                  %v309 = vld [vmem:[%s271 + $0x168] sm:$0xf]
                  %310 = vst [vmem:[%s272 + $0x48] sm:$0xf] %v309
                  %v311 = vld [vmem:[%s271 + $0x17c] sm:$0xf]
                  %312 = vst [vmem:[%s272 + $0x4c] sm:$0xf] %v311
                  %v313 = vld [vmem:[%s271 + $0x190] sm:$0xf]
                  %314 = vst [vmem:[%s272 + $0x50] sm:$0xf] %v313
                  %v315 = vld [vmem:[%s271 + $0x1a4] sm:$0xf]
                  %316 = vst [vmem:[%s272 + $0x54] sm:$0xf] %v315
                  %v317 = vld [vmem:[%s271 + $0x1b8] sm:$0xf]
                  %318 = vst [vmem:[%s272 + $0x58] sm:$0xf] %v317
                  %v319 = vld [vmem:[%s271 + $0x1cc] sm:$0xf]
                  %320 = vst [vmem:[%s272 + $0x5c] sm:$0xf] %v319
                  %v321 = vld [vmem:[%s271 + $0x1e0] sm:$0xf]
                  %322 = vst [vmem:[%s272 + $0x60] sm:$0xf] %v321
                  %v323 = vld [vmem:[%s271 + $0x1f4] sm:$0xf]
                  %324 = vst [vmem:[%s272 + $0x64] sm:$0xf] %v323
                  %v325 = vld [vmem:[%s271 + $0x208] sm:$0xf]
                  %326 = vst [vmem:[%s272 + $0x68] sm:$0xf] %v325
                  %v327 = vld [vmem:[%s271 + $0x21c] sm:$0xf]
                  %328 = vst [vmem:[%s272 + $0x6c] sm:$0xf] %v327
                  %v329 = vld [vmem:[%s271 + $0x230] sm:$0xf]
                  %330 = vst [vmem:[%s272 + $0x70] sm:$0xf] %v329
                  %v331 = vld [vmem:[%s271 + $0x244] sm:$0xf]
                  %332 = vst [vmem:[%s272 + $0x74] sm:$0xf] %v331
                  %v333 = vld [vmem:[%s271 + $0x258] sm:$0xf]
                  %334 = vst [vmem:[%s272 + $0x78] sm:$0xf] %v333
                  %v335 = vld [vmem:[%s271 + $0x26c] sm:$0xf]
                  %336 = vst [vmem:[%s272 + $0x7c] sm:$0xf] %v335
                $region59: #{inception_a.11} parent=46 // loop_footer
                  %s270 = sadd.s32 1, %s266
                $region60: #{inception_a.11} parent=46 // loop_footer_branch
                  %265 = sbr.rel target = $region56
                $region61: #{inception_a.11} parent=46 // loop_exit
                  _
              $region47: #{inception_a.11} parent=31 // pred_fallthru
                _
            $region32: #{inception_a.11} parent=27 // pred_fallthru
              _
            // Predicated region
            $region33: #{inception_a.11} parent=27 // pred_check
              _
            $region34: #{inception_a.11} parent=27 // pred_check_branch
              %180 = sbr.rel (0) target = $region36
            $region35: #{inception_a.11} parent=27 // pred_region
              loop: start=0, step=1, limit=1
              $region37: #{inception_a.11} parent=35 // loop_pre_header
                _
              $region38: #{inception_a.11} parent=35 // loop_header
                %s183 = sphi 0, %s187
                %p184 = scmp.ge.s32.totalorder %s183, 1
                %s188 = sphi %s174, %s174
                %s189 = sphi %s169, %s169
              $region39: #{inception_a.11} parent=35 // loop_header_branch
                %186 = sbr.rel (%p184) target = $region43
              $region40: #{inception_a.11} parent=35 // loop_body
                %v190 = vld [vmem:[%s188] sm:$0xf]
                %191 = vst [vmem:[%s189] sm:$0xf] %v190
                %v192 = vld [vmem:[%s188 + $0x14] sm:$0xf]
                %193 = vst [vmem:[%s189 + $0x4] sm:$0xf] %v192
                %v194 = vld [vmem:[%s188 + $0x28] sm:$0xf]
                %195 = vst [vmem:[%s189 + $0x8] sm:$0xf] %v194
                %v196 = vld [vmem:[%s188 + $0x3c] sm:$0xf]
                %197 = vst [vmem:[%s189 + $0xc] sm:$0xf] %v196
                %v198 = vld [vmem:[%s188 + $0x50] sm:$0xf]
                %199 = vst [vmem:[%s189 + $0x10] sm:$0xf] %v198
                %v200 = vld [vmem:[%s188 + $0x64] sm:$0xf]
                %201 = vst [vmem:[%s189 + $0x14] sm:$0xf] %v200
                %v202 = vld [vmem:[%s188 + $0x78] sm:$0xf]
                %203 = vst [vmem:[%s189 + $0x18] sm:$0xf] %v202
                %v204 = vld [vmem:[%s188 + $0x8c] sm:$0xf]
                %205 = vst [vmem:[%s189 + $0x1c] sm:$0xf] %v204
                %v206 = vld [vmem:[%s188 + $0xa0] sm:$0xf]
                %207 = vst [vmem:[%s189 + $0x20] sm:$0xf] %v206
                %v208 = vld [vmem:[%s188 + $0xb4] sm:$0xf]
                %209 = vst [vmem:[%s189 + $0x24] sm:$0xf] %v208
                %v210 = vld [vmem:[%s188 + $0xc8] sm:$0xf]
                %211 = vst [vmem:[%s189 + $0x28] sm:$0xf] %v210
                %v212 = vld [vmem:[%s188 + $0xdc] sm:$0xf]
                %213 = vst [vmem:[%s189 + $0x2c] sm:$0xf] %v212
                %v214 = vld [vmem:[%s188 + $0xf0] sm:$0xf]
                %215 = vst [vmem:[%s189 + $0x30] sm:$0xf] %v214
                %v216 = vld [vmem:[%s188 + $0x104] sm:$0xf]
                %217 = vst [vmem:[%s189 + $0x34] sm:$0xf] %v216
                %v218 = vld [vmem:[%s188 + $0x118] sm:$0xf]
                %219 = vst [vmem:[%s189 + $0x38] sm:$0xf] %v218
                %v220 = vld [vmem:[%s188 + $0x12c] sm:$0xf]
                %221 = vst [vmem:[%s189 + $0x3c] sm:$0xf] %v220
                %v222 = vld [vmem:[%s188 + $0x140] sm:$0xf]
                %223 = vst [vmem:[%s189 + $0x40] sm:$0xf] %v222
                %v224 = vld [vmem:[%s188 + $0x154] sm:$0xf]
                %225 = vst [vmem:[%s189 + $0x44] sm:$0xf] %v224
                %v226 = vld [vmem:[%s188 + $0x168] sm:$0xf]
                %227 = vst [vmem:[%s189 + $0x48] sm:$0xf] %v226
                %v228 = vld [vmem:[%s188 + $0x17c] sm:$0xf]
                %229 = vst [vmem:[%s189 + $0x4c] sm:$0xf] %v228
                %v230 = vld [vmem:[%s188 + $0x190] sm:$0xf]
                %231 = vst [vmem:[%s189 + $0x50] sm:$0xf] %v230
                %v232 = vld [vmem:[%s188 + $0x1a4] sm:$0xf]
                %233 = vst [vmem:[%s189 + $0x54] sm:$0xf] %v232
                %v234 = vld [vmem:[%s188 + $0x1b8] sm:$0xf]
                %235 = vst [vmem:[%s189 + $0x58] sm:$0xf] %v234
                %v236 = vld [vmem:[%s188 + $0x1cc] sm:$0xf]
                %237 = vst [vmem:[%s189 + $0x5c] sm:$0xf] %v236
                %v238 = vld [vmem:[%s188 + $0x1e0] sm:$0xf]
                %239 = vst [vmem:[%s189 + $0x60] sm:$0xf] %v238
                %v240 = vld [vmem:[%s188 + $0x1f4] sm:$0xf]
                %241 = vst [vmem:[%s189 + $0x64] sm:$0xf] %v240
                %v242 = vld [vmem:[%s188 + $0x208] sm:$0xf]
                %243 = vst [vmem:[%s189 + $0x68] sm:$0xf] %v242
                %v244 = vld [vmem:[%s188 + $0x21c] sm:$0xf]
                %245 = vst [vmem:[%s189 + $0x6c] sm:$0xf] %v244
                %v246 = vld [vmem:[%s188 + $0x230] sm:$0xf]
                %247 = vst [vmem:[%s189 + $0x70] sm:$0xf] %v246
                %v248 = vld [vmem:[%s188 + $0x244] sm:$0xf]
                %249 = vst [vmem:[%s189 + $0x74] sm:$0xf] %v248
                %v250 = vld [vmem:[%s188 + $0x258] sm:$0xf]
                %251 = vst [vmem:[%s189 + $0x78] sm:$0xf] %v250
                %v252 = vld [vmem:[%s188 + $0x26c] sm:$0xf]
                %253 = vst [vmem:[%s189 + $0x7c] sm:$0xf] %v252
              $region41: #{inception_a.11} parent=35 // loop_footer
                %s187 = sadd.s32 1, %s183
              $region42: #{inception_a.11} parent=35 // loop_footer_branch
                %182 = sbr.rel target = $region38
              $region43: #{inception_a.11} parent=35 // loop_exit
                _
            $region36: #{inception_a.11} parent=27 // pred_fallthru
              _
          $region28: #{inception_a.11} parent=23 // pred_fallthru
            _
          %337 = vnop
        $region24: #{inception_a.11} parent=19 // pred_fallthru
          _
        // Predicated region
        $region62: #{inception_a.11} parent=19 // pred_check
          %p338 = pneg %p78
        $region63: #{inception_a.11} parent=19 // pred_check_branch
          %340 = sbr.rel (%p338) target = $region65
        $region64: #{inception_a.11} parent=19 // pred_region
          %s341 = smul.u32 16, %s18
          %p342 = scmp.lt.s32.totalorder %s341, 79
          %s343 = scalar_select %p342, %s341, 79
          %p344 = scmp.lt.s32.totalorder %s17, 0
          %s345 = scalar_select %p344, %s17, 0
          %s346 = sadd.s32 %s345, %s343
          %s347 = smul.addr %s346, 4
          %s348 = scalar_lea.vmem %s1, %s347
          %s349 = smul.u32 16, %s18
        $region65: #{inception_a.11} parent=19 // pred_fallthru
          _
      $region20: #{inception_a.11} parent=5 // pred_fallthru
        _
      %p350 = scmp.le.s32.totalorder 1, %s9
      %p351 = scmp.lt.s32.totalorder %s9, 11
      %p352 = pnand %p350, %p351
      %p353 = pneg %p352
      // Predicated region
      $region66: #{inception_a.11} parent=5 // pred_check
        _
      $region67: #{inception_a.11} parent=5 // pred_check_branch
        %355 = sbr.rel (%p352) target = $region69
      $region68: #{inception_a.11} parent=5 // pred_region
        %s356 = ssub.s32 %s9, 1
        %s357 = sand.u32 %s43, 1
        %s358 = sand.u32 %s43, 1
        %s359 = smul.addr %s358, 128
        %s360 = scalar_lea.vmem [#allocation3], %s359
        // Predicated region
        $region70: #{inception_a.11} parent=68 // pred_check
          %p361 = pneg %p56
        $region71: #{inception_a.11} parent=68 // pred_check_branch
          %363 = sbr.rel (%p361) target = $region73
        $region72: #{inception_a.11} parent=68 // pred_region
          _
        $region73: #{inception_a.11} parent=68 // pred_fallthru
          _
        %s364 = sand.u32 %s43, 1
        %s365 = sand.u32 %s43, 1
        %s366 = smul.addr %s365, 128
        %s367 = scalar_lea.vmem [#allocation3], %s366
        %p368 = pneg %p56
        %p369 = pneg %p53
        %s370 = smul.u32 16, %s21
        %p371 = scmp.lt.s32.totalorder %s370, 79
        %s372 = scalar_select %p371, %s370, 79
        %p373 = scmp.lt.s32.totalorder %s20, 0
        %s374 = scalar_select %p373, %s20, 0
        %s375 = sadd.s32 %s374, %s372
        %s376 = smul.addr %s375, 4
        %s377 = scalar_lea.vmem %s1, %s376
        %p378 = pneg %p84
        %p379 = pneg %p81
        %p380 = scmp.lt.s32.totalorder %s20, 0
        %s381 = scalar_select %p380, %s20, 0
        %s382 = scalar_lea.vmem %s2, %s381
        %p383 = pneg %p110
        %p384 = pneg %p107
        %p385 = pneg %p138
        %p386 = pneg %p135
        %s387 = smul.u32 32, %s19
        %p388 = scmp.lt.s32.totalorder %s387, 63
        %s389 = scalar_select %p388, %s387, 63
        %p390 = scmp.lt.s32.totalorder %s20, 0
        %s391 = scalar_select %p390, %s20, 0
        %s392 = sadd.s32 %s391, %s389
        %s393 = smul.addr %s392, 8
        %s394 = scalar_lea.vmem %s3, %s393
        %s395 = smul.u32 32, %s19
        %s396 = smul.u32 16, %s21
        %p397 = scmp.lt.s32.totalorder %s396, 79
        %s398 = scalar_select %p397, %s396, 79
        %p399 = scmp.lt.s32.totalorder %s20, 0
        %s400 = scalar_select %p399, %s20, 0
        %s401 = sadd.s32 %s400, %s398
        %s402 = smul.addr %s401, 4
        %s403 = scalar_lea.vmem %s1, %s402
        %s404 = smul.u32 16, %s21
        %p405 = scmp.lt.s32.totalorder %s20, 0
        %s406 = scalar_select %p405, %s20, 0
        %s407 = scalar_lea.vmem %s2, %s406
        %s408 = smul.u32 32, %s19
        %p409 = scmp.lt.s32.totalorder %s408, 63
        %s410 = scalar_select %p409, %s408, 63
        %p411 = scmp.lt.s32.totalorder %s20, 0
        %s412 = scalar_select %p411, %s20, 0
        %s413 = sadd.s32 %s412, %s410
        %s414 = smul.addr %s413, 8
        %s415 = scalar_lea.vmem %s3, %s414
        %s416 = smul.u32 32, %s19
        %p418 = scmp.eq.s32.totalorder %s21, 0
        // Predicated region
        $region74: #{inception_a.11} parent=68 // pred_check
          %p419 = pneg %p418
        $region75: #{inception_a.11} parent=68 // pred_check_branch
          %421 = sbr.rel (%p419) target = $region77
        $region76: #{inception_a.11} parent=68 // pred_region
          %422 = vst [vmem:[#allocation2] sm:$0xff] 0.0
          %423 = vst [vmem:[#allocation2 + $0x8] sm:$0xff] 0.0
          %424 = vst [vmem:[#allocation2 + $0x10] sm:$0xff] 0.0
          %425 = vst [vmem:[#allocation2 + $0x18] sm:$0xff] 0.0
          %426 = vst [vmem:[#allocation2 + $0x20] sm:$0xff] 0.0
          %427 = vst [vmem:[#allocation2 + $0x28] sm:$0xff] 0.0
          %428 = vst [vmem:[#allocation2 + $0x30] sm:$0xff] 0.0
          %429 = vst [vmem:[#allocation2 + $0x38] sm:$0xff] 0.0
          %430 = vst [vmem:[#allocation2 + $0x40] sm:$0xff] 0.0
          %431 = vst [vmem:[#allocation2 + $0x48] sm:$0xff] 0.0
          %432 = vst [vmem:[#allocation2 + $0x50] sm:$0xff] 0.0
          %433 = vst [vmem:[#allocation2 + $0x58] sm:$0xff] 0.0
          %434 = vst [vmem:[#allocation2 + $0x60] sm:$0xff] 0.0
          %435 = vst [vmem:[#allocation2 + $0x68] sm:$0xff] 0.0
          %436 = vst [vmem:[#allocation2 + $0x70] sm:$0xff] 0.0
          %437 = vst [vmem:[#allocation2 + $0x78] sm:$0xff] 0.0
          %438 = vst [vmem:[#allocation2 + $0x80] sm:$0xff] 0.0
          %439 = vst [vmem:[#allocation2 + $0x88] sm:$0xff] 0.0
          %440 = vst [vmem:[#allocation2 + $0x90] sm:$0xff] 0.0
          %441 = vst [vmem:[#allocation2 + $0x98] sm:$0xff] 0.0
          %442 = vst [vmem:[#allocation2 + $0xa0] sm:$0xff] 0.0
          %443 = vst [vmem:[#allocation2 + $0xa8] sm:$0xff] 0.0
          %444 = vst [vmem:[#allocation2 + $0xb0] sm:$0xff] 0.0
          %445 = vst [vmem:[#allocation2 + $0xb8] sm:$0xff] 0.0
          %446 = vst [vmem:[#allocation2 + $0xc0] sm:$0xff] 0.0
          %447 = vst [vmem:[#allocation2 + $0xc8] sm:$0xff] 0.0
          %448 = vst [vmem:[#allocation2 + $0xd0] sm:$0xff] 0.0
          %449 = vst [vmem:[#allocation2 + $0xd8] sm:$0xff] 0.0
          %450 = vst [vmem:[#allocation2 + $0xe0] sm:$0xff] 0.0
          %451 = vst [vmem:[#allocation2 + $0xe8] sm:$0xff] 0.0
          %452 = vst [vmem:[#allocation2 + $0xf0] sm:$0xff] 0.0
          %453 = vst [vmem:[#allocation2 + $0xf8] sm:$0xff] 0.0
        $region77: #{inception_a.11} parent=68 // pred_fallthru
          _
        %v454 = vld [vmem:[#allocation2] sm:$0xff]
        %v455 = vld [vmem:[#allocation2 + $0x8] sm:$0xff]
        %v456 = vld [vmem:[#allocation2 + $0x10] sm:$0xff]
        %v457 = vld [vmem:[#allocation2 + $0x18] sm:$0xff]
        %v458 = vld [vmem:[#allocation2 + $0x20] sm:$0xff]
        %v459 = vld [vmem:[#allocation2 + $0x28] sm:$0xff]
        %v460 = vld [vmem:[#allocation2 + $0x30] sm:$0xff]
        %v461 = vld [vmem:[#allocation2 + $0x38] sm:$0xff]
        %v462 = vld [vmem:[#allocation2 + $0x40] sm:$0xff]
        %v463 = vld [vmem:[#allocation2 + $0x48] sm:$0xff]
        %v464 = vld [vmem:[#allocation2 + $0x50] sm:$0xff]
        %v465 = vld [vmem:[#allocation2 + $0x58] sm:$0xff]
        %v466 = vld [vmem:[#allocation2 + $0x60] sm:$0xff]
        %v467 = vld [vmem:[#allocation2 + $0x68] sm:$0xff]
        %v468 = vld [vmem:[#allocation2 + $0x70] sm:$0xff]
        %v469 = vld [vmem:[#allocation2 + $0x78] sm:$0xff]
        %v470 = vld [vmem:[#allocation2 + $0x80] sm:$0xff]
        %v471 = vld [vmem:[#allocation2 + $0x88] sm:$0xff]
        %v472 = vld [vmem:[#allocation2 + $0x90] sm:$0xff]
        %v473 = vld [vmem:[#allocation2 + $0x98] sm:$0xff]
        %v474 = vld [vmem:[#allocation2 + $0xa0] sm:$0xff]
        %v475 = vld [vmem:[#allocation2 + $0xa8] sm:$0xff]
        %v476 = vld [vmem:[#allocation2 + $0xb0] sm:$0xff]
        %v477 = vld [vmem:[#allocation2 + $0xb8] sm:$0xff]
        %v478 = vld [vmem:[#allocation2 + $0xc0] sm:$0xff]
        %v479 = vld [vmem:[#allocation2 + $0xc8] sm:$0xff]
        %v480 = vld [vmem:[#allocation2 + $0xd0] sm:$0xff]
        %v481 = vld [vmem:[#allocation2 + $0xd8] sm:$0xff]
        %v482 = vld [vmem:[#allocation2 + $0xe0] sm:$0xff]
        %v483 = vld [vmem:[#allocation2 + $0xe8] sm:$0xff]
        %v484 = vld [vmem:[#allocation2 + $0xf0] sm:$0xff]
        %v485 = vld [vmem:[#allocation2 + $0xf8] sm:$0xff]
        %v486 = vld [vmem:[%s360] sm:$0xf]
        %v487 = vld [vmem:[%s360 + $0x4] sm:$0xf]
        %v488 = vld [vmem:[%s360 + $0x8] sm:$0xf]
        %v489 = vld [vmem:[%s360 + $0xc] sm:$0xf]
        %v490 = vld [vmem:[%s360 + $0x10] sm:$0xf]
        %v491 = vld [vmem:[%s360 + $0x14] sm:$0xf]
        %v492 = vld [vmem:[%s360 + $0x18] sm:$0xf]
        %v493 = vld [vmem:[%s360 + $0x1c] sm:$0xf]
        %v494 = vld [vmem:[%s360 + $0x20] sm:$0xf]
        %v495 = vld [vmem:[%s360 + $0x24] sm:$0xf]
        %v496 = vld [vmem:[%s360 + $0x28] sm:$0xf]
        %v497 = vld [vmem:[%s360 + $0x2c] sm:$0xf]
        %v498 = vld [vmem:[%s360 + $0x30] sm:$0xf]
        %v499 = vld [vmem:[%s360 + $0x34] sm:$0xf]
        %v500 = vld [vmem:[%s360 + $0x38] sm:$0xf]
        %v501 = vld [vmem:[%s360 + $0x3c] sm:$0xf]
        %v502 = vld [vmem:[%s360 + $0x40] sm:$0xf]
        %v503 = vld [vmem:[%s360 + $0x44] sm:$0xf]
        %v504 = vld [vmem:[%s360 + $0x48] sm:$0xf]
        %v505 = vld [vmem:[%s360 + $0x4c] sm:$0xf]
        %v506 = vld [vmem:[%s360 + $0x50] sm:$0xf]
        %v507 = vld [vmem:[%s360 + $0x54] sm:$0xf]
        %v508 = vld [vmem:[%s360 + $0x58] sm:$0xf]
        %v509 = vld [vmem:[%s360 + $0x5c] sm:$0xf]
        %v510 = vld [vmem:[%s360 + $0x60] sm:$0xf]
        %v511 = vld [vmem:[%s360 + $0x64] sm:$0xf]
        %v512 = vld [vmem:[%s360 + $0x68] sm:$0xf]
        %v513 = vld [vmem:[%s360 + $0x6c] sm:$0xf]
        %v514 = vld [vmem:[%s360 + $0x70] sm:$0xf]
        %v515 = vld [vmem:[%s360 + $0x74] sm:$0xf]
        %v516 = vld [vmem:[%s360 + $0x78] sm:$0xf]
        %v517 = vld [vmem:[%s360 + $0x7c] sm:$0xf]
        %v518 = vld [vmem:[%s403] sm:$0xf]
        %v519 = vld [vmem:[%s403 + $0x4] sm:$0xf]
        %v520 = vld [vmem:[%s403 + $0x8] sm:$0xf]
        %v521 = vld [vmem:[%s403 + $0xc] sm:$0xf]
        %v522 = vld [vmem:[%s403 + $0x10] sm:$0xf]
        %v523 = vld [vmem:[%s403 + $0x14] sm:$0xf]
        %v524 = vld [vmem:[%s403 + $0x18] sm:$0xf]
        %v525 = vld [vmem:[%s403 + $0x1c] sm:$0xf]
        %v526 = vld [vmem:[%s403 + $0x20] sm:$0xf]
        %v527 = vld [vmem:[%s403 + $0x24] sm:$0xf]
        %v528 = vld [vmem:[%s403 + $0x28] sm:$0xf]
        %v529 = vld [vmem:[%s403 + $0x2c] sm:$0xf]
        %v530 = vld [vmem:[%s403 + $0x30] sm:$0xf]
        %v531 = vld [vmem:[%s403 + $0x34] sm:$0xf]
        %v532 = vld [vmem:[%s403 + $0x38] sm:$0xf]
        %v533 = vld [vmem:[%s403 + $0x3c] sm:$0xf]
        %v566 = vunpack.c.l.b16 %v486
        %v567 = vunpack.c.l.b16 %v487
        %v568 = vunpack.c.l.b16 %v488
        %v569 = vunpack.c.l.b16 %v489
        %v570 = vunpack.c.l.b16 %v490
        %v571 = vunpack.c.l.b16 %v491
        %v572 = vunpack.c.l.b16 %v492
        %v573 = vunpack.c.l.b16 %v493
        %v574 = vunpack.c.l.b16 %v494
        %v575 = vunpack.c.l.b16 %v495
        %v576 = vunpack.c.l.b16 %v496
        %v577 = vunpack.c.l.b16 %v497
        %v578 = vunpack.c.l.b16 %v498
        %v579 = vunpack.c.l.b16 %v499
        %v580 = vunpack.c.l.b16 %v500
        %v581 = vunpack.c.l.b16 %v501
        %v582 = vunpack.c.l.b16 %v502
        %v583 = vunpack.c.l.b16 %v503
        %v584 = vunpack.c.l.b16 %v504
        %v585 = vunpack.c.l.b16 %v505
        %v586 = vunpack.c.l.b16 %v506
        %v587 = vunpack.c.l.b16 %v507
        %v588 = vunpack.c.l.b16 %v508
        %v589 = vunpack.c.l.b16 %v509
        %v590 = vunpack.c.l.b16 %v510
        %v591 = vunpack.c.l.b16 %v511
        %v592 = vunpack.c.l.b16 %v512
        %v593 = vunpack.c.l.b16 %v513
        %v594 = vunpack.c.l.b16 %v514
        %v595 = vunpack.c.l.b16 %v515
        %v596 = vunpack.c.l.b16 %v516
        %v597 = vunpack.c.l.b16 %v517
        %v598 = vpack.c.b16 %v567, %v566
        %v599 = vpack.c.b16 %v569, %v568
        %v600 = vpack.c.b16 %v571, %v570
        %v601 = vpack.c.b16 %v573, %v572
        %v602 = vpack.c.b16 %v575, %v574
        %v603 = vpack.c.b16 %v577, %v576
        %v604 = vpack.c.b16 %v579, %v578
        %v605 = vpack.c.b16 %v581, %v580
        %v606 = vpack.c.b16 %v583, %v582
        %v607 = vpack.c.b16 %v585, %v584
        %v608 = vpack.c.b16 %v587, %v586
        %v609 = vpack.c.b16 %v589, %v588
        %v610 = vpack.c.b16 %v591, %v590
        %v611 = vpack.c.b16 %v593, %v592
        %v612 = vpack.c.b16 %v595, %v594
        %v613 = vpack.c.b16 %v597, %v596
        %v646 = vunpack.c.l.b16 %v518
        %v647 = vunpack.c.l.b16 %v519
        %v648 = vunpack.c.l.b16 %v520
        %v649 = vunpack.c.l.b16 %v521
        %v650 = vunpack.c.l.b16 %v522
        %v651 = vunpack.c.l.b16 %v523
        %v652 = vunpack.c.l.b16 %v524
        %v653 = vunpack.c.l.b16 %v525
        %v654 = vunpack.c.l.b16 %v526
        %v655 = vunpack.c.l.b16 %v527
        %v656 = vunpack.c.l.b16 %v528
        %v657 = vunpack.c.l.b16 %v529
        %v658 = vunpack.c.l.b16 %v530
        %v659 = vunpack.c.l.b16 %v531
        %v660 = vunpack.c.l.b16 %v532
        %v661 = vunpack.c.l.b16 %v533
        %v662 = vpack.c.b16 %v647, %v646
        %v663 = vpack.c.b16 %v649, %v648
        %v664 = vpack.c.b16 %v651, %v650
        %v665 = vpack.c.b16 %v653, %v652
        %v666 = vpack.c.b16 %v655, %v654
        %v667 = vpack.c.b16 %v657, %v656
        %v668 = vpack.c.b16 %v659, %v658
        %v669 = vpack.c.b16 %v661, %v660
        %678 = vmatprep.subr.bf16.mxu0 0
        %679 = vmatpush1.bf16.msra.mxu0 %v662
        %680 = vmatprep.subr.bf16.mxu0 0
        %681 = vmatpush1.bf16.msra.mxu0 %v663
        %682 = vmatprep.subr.bf16.mxu0 0
        %683 = vmatpush1.bf16.msra.mxu0 %v664
        %684 = vmatprep.subr.bf16.mxu0 0
        %685 = vmatpush1.bf16.msra.mxu0 %v665
        %686 = vmatprep.subr.bf16.mxu0 0
        %687 = vmatpush1.bf16.msra.mxu0 %v666
        %688 = vmatprep.subr.bf16.mxu0 0
        %689 = vmatpush1.bf16.msra.mxu0 %v667
        %690 = vmatprep.subr.bf16.mxu0 0
        %691 = vmatpush1.bf16.msra.mxu0 %v668
        %692 = vmatprep.subr.bf16.mxu0 0
        %693 = vmatpush1.bf16.msra.mxu0 %v669
        %694 = vmatprep.subr.bf16.mxu0 0
        %695 = vmatpush1.bf16.msra.mxu0 0
        %696 = vmatprep.subr.bf16.mxu0 0
        %697 = vmatpush1.bf16.msra.mxu0 0
        %698 = vmatprep.subr.bf16.mxu0 0
        %699 = vmatpush1.bf16.msra.mxu0 0
        %700 = vmatprep.subr.bf16.mxu0 0
        %701 = vmatpush1.bf16.msra.mxu0 0
        %702 = vmatprep.subr.bf16.mxu0 0
        %703 = vmatpush1.bf16.msra.mxu0 0
        %704 = vmatprep.subr.bf16.mxu0 0
        %705 = vmatpush1.bf16.msra.mxu0 0
        %706 = vmatprep.subr.bf16.mxu0 0
        %707 = vmatpush1.bf16.msra.mxu0 0
        %708 = vmatprep.subr.bf16.mxu0 0
        %709 = vmatpush1.bf16.msra.mxu0 0
        %710 = vmatprep.mubr.bf16.mxu0 0
        %711 = vmatmul.mubr.bf16.gmra.mrb[0].mxu0 %v598
        %v712 = vpop.f32.mrb[0].mxu0
        %v713 = vadd.f32 0.0, %v712
        %v714 = vpop.f32.mrb[0].mxu0
        %v715 = vpop.f32.mrb[0].mxu0
        %v716 = vadd.f32 0.0, %v715
        %v717 = vpop.f32.mrb[0].mxu0
        %718 = vmatprep.mubr.bf16.mxu0 0
        %719 = vmatmul.mubr.bf16.gmra.mrb[0].mxu0 %v599
        %v720 = vpop.f32.mrb[0].mxu0
        %v721 = vadd.f32 0.0, %v720
        %v722 = vpop.f32.mrb[0].mxu0
        %v723 = vpop.f32.mrb[0].mxu0
        %v724 = vadd.f32 0.0, %v723
        %v725 = vpop.f32.mrb[0].mxu0
        %726 = vmatprep.mubr.bf16.mxu0 0
        %727 = vmatmul.mubr.bf16.gmra.mrb[0].mxu0 %v600
        %v728 = vpop.f32.mrb[0].mxu0
        %v729 = vadd.f32 0.0, %v728
        %v730 = vpop.f32.mrb[0].mxu0
        %v731 = vpop.f32.mrb[0].mxu0
        %v732 = vadd.f32 0.0, %v731
        %v733 = vpop.f32.mrb[0].mxu0
        %734 = vmatprep.mubr.bf16.mxu0 0
        %735 = vmatmul.mubr.bf16.gmra.mrb[0].mxu0 %v601
        %v736 = vpop.f32.mrb[0].mxu0
        %v737 = vadd.f32 0.0, %v736
        %v738 = vpop.f32.mrb[0].mxu0
        %v739 = vpop.f32.mrb[0].mxu0
        %v740 = vadd.f32 0.0, %v739
        %v741 = vpop.f32.mrb[0].mxu0
        %742 = vmatprep.mubr.bf16.mxu0 0
        %743 = vmatmul.mubr.bf16.gmra.mrb[0].mxu0 %v602
        %v744 = vpop.f32.mrb[0].mxu0
        %v745 = vadd.f32 0.0, %v744
        %v746 = vpop.f32.mrb[0].mxu0
        %v747 = vpop.f32.mrb[0].mxu0
        %v748 = vadd.f32 0.0, %v747
        %v749 = vpop.f32.mrb[0].mxu0
        %750 = vmatprep.mubr.bf16.mxu0 0
        %751 = vmatmul.mubr.bf16.gmra.mrb[0].mxu0 %v603
        %v752 = vpop.f32.mrb[0].mxu0
        %v753 = vadd.f32 0.0, %v752
        %v754 = vpop.f32.mrb[0].mxu0
        %v755 = vpop.f32.mrb[0].mxu0
        %v756 = vadd.f32 0.0, %v755
        %v757 = vpop.f32.mrb[0].mxu0
        %758 = vmatprep.mubr.bf16.mxu0 0
        %759 = vmatmul.mubr.bf16.gmra.mrb[0].mxu0 %v604
        %v760 = vpop.f32.mrb[0].mxu0
        %v761 = vadd.f32 0.0, %v760
        %v762 = vpop.f32.mrb[0].mxu0
        %v763 = vpop.f32.mrb[0].mxu0
        %v764 = vadd.f32 0.0, %v763
        %v765 = vpop.f32.mrb[0].mxu0
        %766 = vmatprep.mubr.bf16.mxu0 0
        %767 = vmatmul.mubr.bf16.gmra.mrb[0].mxu0 %v605
        %v768 = vpop.f32.mrb[0].mxu0
        %v769 = vadd.f32 0.0, %v768
        %v770 = vpop.f32.mrb[0].mxu0
        %v771 = vpop.f32.mrb[0].mxu0
        %v772 = vadd.f32 0.0, %v771
        %v773 = vpop.f32.mrb[0].mxu0
        %774 = vmatprep.mubr.bf16.mxu0 0
        %775 = vmatmul.mubr.bf16.gmra.mrb[0].mxu0 %v606
        %v776 = vpop.f32.mrb[0].mxu0
        %v777 = vadd.f32 0.0, %v776
        %v778 = vpop.f32.mrb[0].mxu0
        %v779 = vpop.f32.mrb[0].mxu0
        %v780 = vadd.f32 0.0, %v779
        %v781 = vpop.f32.mrb[0].mxu0
        %782 = vmatprep.mubr.bf16.mxu0 0
        %783 = vmatmul.mubr.bf16.gmra.mrb[0].mxu0 %v607
        %v784 = vpop.f32.mrb[0].mxu0
        %v785 = vadd.f32 0.0, %v784
        %v786 = vpop.f32.mrb[0].mxu0
        %v787 = vpop.f32.mrb[0].mxu0
        %v788 = vadd.f32 0.0, %v787
        %v789 = vpop.f32.mrb[0].mxu0
        %790 = vmatprep.mubr.bf16.mxu0 0
        %791 = vmatmul.mubr.bf16.gmra.mrb[0].mxu0 %v608
        %v792 = vpop.f32.mrb[0].mxu0
        %v793 = vadd.f32 0.0, %v792
        %v794 = vpop.f32.mrb[0].mxu0
        %v795 = vpop.f32.mrb[0].mxu0
        %v796 = vadd.f32 0.0, %v795
        %v797 = vpop.f32.mrb[0].mxu0
        %798 = vmatprep.mubr.bf16.mxu0 0
        %799 = vmatmul.mubr.bf16.gmra.mrb[0].mxu0 %v609
        %v800 = vpop.f32.mrb[0].mxu0
        %v801 = vadd.f32 0.0, %v800
        %v802 = vpop.f32.mrb[0].mxu0
        %v803 = vpop.f32.mrb[0].mxu0
        %v804 = vadd.f32 0.0, %v803
        %v805 = vpop.f32.mrb[0].mxu0
        %806 = vmatprep.mubr.bf16.mxu0 0
        %807 = vmatmul.mubr.bf16.gmra.mrb[0].mxu0 %v610
        %v808 = vpop.f32.mrb[0].mxu0
        %v809 = vadd.f32 0.0, %v808
        %v810 = vpop.f32.mrb[0].mxu0
        %v811 = vpop.f32.mrb[0].mxu0
        %v812 = vadd.f32 0.0, %v811
        %v813 = vpop.f32.mrb[0].mxu0
        %814 = vmatprep.mubr.bf16.mxu0 0
        %815 = vmatmul.mubr.bf16.gmra.mrb[0].mxu0 %v611
        %v816 = vpop.f32.mrb[0].mxu0
        %v817 = vadd.f32 0.0, %v816
        %v818 = vpop.f32.mrb[0].mxu0
        %v819 = vpop.f32.mrb[0].mxu0
        %v820 = vadd.f32 0.0, %v819
        %v821 = vpop.f32.mrb[0].mxu0
        %822 = vmatprep.mubr.bf16.mxu0 0
        %823 = vmatmul.mubr.bf16.gmra.mrb[0].mxu0 %v612
        %v824 = vpop.f32.mrb[0].mxu0
        %v825 = vadd.f32 0.0, %v824
        %v826 = vpop.f32.mrb[0].mxu0
        %v827 = vpop.f32.mrb[0].mxu0
        %v828 = vadd.f32 0.0, %v827
        %v829 = vpop.f32.mrb[0].mxu0
        %830 = vmatprep.mubr.bf16.mxu0 0
        %831 = vmatmul.mubr.bf16.gmra.mrb[0].mxu0 %v613
        %v832 = vpop.f32.mrb[0].mxu0
        %v833 = vadd.f32 0.0, %v832
        %v834 = vpop.f32.mrb[0].mxu0
        %v835 = vpop.f32.mrb[0].mxu0
        %v836 = vadd.f32 0.0, %v835
        %v837 = vpop.f32.mrb[0].mxu0
        %838 = vdwg.mxu0
        %v839 = vadd.f32 %v454, %v713
        %v840 = vadd.f32 %v455, %v716
        %v841 = vadd.f32 %v456, %v721
        %v842 = vadd.f32 %v457, %v724
        %v843 = vadd.f32 %v458, %v729
        %v844 = vadd.f32 %v459, %v732
        %v845 = vadd.f32 %v460, %v737
        %v846 = vadd.f32 %v461, %v740
        %v847 = vadd.f32 %v462, %v745
        %v848 = vadd.f32 %v463, %v748
        %v849 = vadd.f32 %v464, %v753
        %v850 = vadd.f32 %v465, %v756
        %v851 = vadd.f32 %v466, %v761
        %v852 = vadd.f32 %v467, %v764
        %v853 = vadd.f32 %v468, %v769
        %v854 = vadd.f32 %v469, %v772
        %v855 = vadd.f32 %v470, %v777
        %v856 = vadd.f32 %v471, %v780
        %v857 = vadd.f32 %v472, %v785
        %v858 = vadd.f32 %v473, %v788
        %v859 = vadd.f32 %v474, %v793
        %v860 = vadd.f32 %v475, %v796
        %v861 = vadd.f32 %v476, %v801
        %v862 = vadd.f32 %v477, %v804
        %v863 = vadd.f32 %v478, %v809
        %v864 = vadd.f32 %v479, %v812
        %v865 = vadd.f32 %v480, %v817
        %v866 = vadd.f32 %v481, %v820
        %v867 = vadd.f32 %v482, %v825
        %v868 = vadd.f32 %v483, %v828
        %v869 = vadd.f32 %v484, %v833
        %v870 = vadd.f32 %v485, %v836
        %871 = vst [vmem:[#allocation2] sm:$0xff] %v839
        %872 = vst [vmem:[#allocation2 + $0x8] sm:$0xff] %v840
        %873 = vst [vmem:[#allocation2 + $0x10] sm:$0xff] %v841
        %874 = vst [vmem:[#allocation2 + $0x18] sm:$0xff] %v842
        %875 = vst [vmem:[#allocation2 + $0x20] sm:$0xff] %v843
        %876 = vst [vmem:[#allocation2 + $0x28] sm:$0xff] %v844
        %877 = vst [vmem:[#allocation2 + $0x30] sm:$0xff] %v845
        %878 = vst [vmem:[#allocation2 + $0x38] sm:$0xff] %v846
        %879 = vst [vmem:[#allocation2 + $0x40] sm:$0xff] %v847
        %880 = vst [vmem:[#allocation2 + $0x48] sm:$0xff] %v848
        %881 = vst [vmem:[#allocation2 + $0x50] sm:$0xff] %v849
        %882 = vst [vmem:[#allocation2 + $0x58] sm:$0xff] %v850
        %883 = vst [vmem:[#allocation2 + $0x60] sm:$0xff] %v851
        %884 = vst [vmem:[#allocation2 + $0x68] sm:$0xff] %v852
        %885 = vst [vmem:[#allocation2 + $0x70] sm:$0xff] %v853
        %886 = vst [vmem:[#allocation2 + $0x78] sm:$0xff] %v854
        %887 = vst [vmem:[#allocation2 + $0x80] sm:$0xff] %v855
        %888 = vst [vmem:[#allocation2 + $0x88] sm:$0xff] %v856
        %889 = vst [vmem:[#allocation2 + $0x90] sm:$0xff] %v857
        %890 = vst [vmem:[#allocation2 + $0x98] sm:$0xff] %v858
        %891 = vst [vmem:[#allocation2 + $0xa0] sm:$0xff] %v859
        %892 = vst [vmem:[#allocation2 + $0xa8] sm:$0xff] %v860
        %893 = vst [vmem:[#allocation2 + $0xb0] sm:$0xff] %v861
        %894 = vst [vmem:[#allocation2 + $0xb8] sm:$0xff] %v862
        %895 = vst [vmem:[#allocation2 + $0xc0] sm:$0xff] %v863
        %896 = vst [vmem:[#allocation2 + $0xc8] sm:$0xff] %v864
        %897 = vst [vmem:[#allocation2 + $0xd0] sm:$0xff] %v865
        %898 = vst [vmem:[#allocation2 + $0xd8] sm:$0xff] %v866
        %899 = vst [vmem:[#allocation2 + $0xe0] sm:$0xff] %v867
        %900 = vst [vmem:[#allocation2 + $0xe8] sm:$0xff] %v868
        %901 = vst [vmem:[#allocation2 + $0xf0] sm:$0xff] %v869
        %902 = vst [vmem:[#allocation2 + $0xf8] sm:$0xff] %v870
        %p903 = scmp.eq.s32.totalorder %s21, 4
        // Predicated region
        $region78: #{inception_a.11} parent=68 // pred_check
          %p904 = pneg %p903
        $region79: #{inception_a.11} parent=68 // pred_check_branch
          %906 = sbr.rel (%p904) target = $region81
        $region80: #{inception_a.11} parent=68 // pred_region
          %v907 = vld [vmem:[#allocation2] sm:$0xff]
          %v908 = vld [vmem:[#allocation2 + $0x8] sm:$0xff]
          %v909 = vld [vmem:[#allocation2 + $0x10] sm:$0xff]
          %v910 = vld [vmem:[#allocation2 + $0x18] sm:$0xff]
          %v911 = vld [vmem:[#allocation2 + $0x20] sm:$0xff]
          %v912 = vld [vmem:[#allocation2 + $0x28] sm:$0xff]
          %v913 = vld [vmem:[#allocation2 + $0x30] sm:$0xff]
          %v914 = vld [vmem:[#allocation2 + $0x38] sm:$0xff]
          %v915 = vld [vmem:[#allocation2 + $0x40] sm:$0xff]
          %v916 = vld [vmem:[#allocation2 + $0x48] sm:$0xff]
          %v917 = vld [vmem:[#allocation2 + $0x50] sm:$0xff]
          %v918 = vld [vmem:[#allocation2 + $0x58] sm:$0xff]
          %v919 = vld [vmem:[#allocation2 + $0x60] sm:$0xff]
          %v920 = vld [vmem:[#allocation2 + $0x68] sm:$0xff]
          %v921 = vld [vmem:[#allocation2 + $0x70] sm:$0xff]
          %v922 = vld [vmem:[#allocation2 + $0x78] sm:$0xff]
          %v923 = vld [vmem:[#allocation2 + $0x80] sm:$0xff]
          %v924 = vld [vmem:[#allocation2 + $0x88] sm:$0xff]
          %v925 = vld [vmem:[#allocation2 + $0x90] sm:$0xff]
          %v926 = vld [vmem:[#allocation2 + $0x98] sm:$0xff]
          %v927 = vld [vmem:[#allocation2 + $0xa0] sm:$0xff]
          %v928 = vld [vmem:[#allocation2 + $0xa8] sm:$0xff]
          %v929 = vld [vmem:[#allocation2 + $0xb0] sm:$0xff]
          %v930 = vld [vmem:[#allocation2 + $0xb8] sm:$0xff]
          %v931 = vld [vmem:[#allocation2 + $0xc0] sm:$0xff]
          %v932 = vld [vmem:[#allocation2 + $0xc8] sm:$0xff]
          %v933 = vld [vmem:[#allocation2 + $0xd0] sm:$0xff]
          %v934 = vld [vmem:[#allocation2 + $0xd8] sm:$0xff]
          %v935 = vld [vmem:[#allocation2 + $0xe0] sm:$0xff]
          %v936 = vld [vmem:[#allocation2 + $0xe8] sm:$0xff]
          %v937 = vld [vmem:[#allocation2 + $0xf0] sm:$0xff]
          %v938 = vld [vmem:[#allocation2 + $0xf8] sm:$0xff]
          %v939 = vld [vmem:[%s407] sm:$0x1]
          %v941 = vlaneseq
          %v942 = vshrl.u32 %v941, 7
          %v943 = vsub.s32 0, %v942
          %v944 = vrot.slane %v939, %v943
          %v946 = vadd.f32 %v907, %v944
          %v947 = vadd.f32 %v908, %v944
          %v948 = vadd.f32 %v909, %v944
          %v949 = vadd.f32 %v910, %v944
          %v950 = vadd.f32 %v911, %v944
          %v951 = vadd.f32 %v912, %v944
          %v952 = vadd.f32 %v913, %v944
          %v953 = vadd.f32 %v914, %v944
          %v954 = vadd.f32 %v915, %v944
          %v955 = vadd.f32 %v916, %v944
          %v956 = vadd.f32 %v917, %v944
          %v957 = vadd.f32 %v918, %v944
          %v958 = vadd.f32 %v919, %v944
          %v959 = vadd.f32 %v920, %v944
          %v960 = vadd.f32 %v921, %v944
          %v961 = vadd.f32 %v922, %v944
          %v962 = vadd.f32 %v923, %v944
          %v963 = vadd.f32 %v924, %v944
          %v964 = vadd.f32 %v925, %v944
          %v965 = vadd.f32 %v926, %v944
          %v966 = vadd.f32 %v927, %v944
          %v967 = vadd.f32 %v928, %v944
          %v968 = vadd.f32 %v929, %v944
          %v969 = vadd.f32 %v930, %v944
          %v970 = vadd.f32 %v931, %v944
          %v971 = vadd.f32 %v932, %v944
          %v972 = vadd.f32 %v933, %v944
          %v973 = vadd.f32 %v934, %v944
          %v974 = vadd.f32 %v935, %v944
          %v975 = vadd.f32 %v936, %v944
          %v976 = vadd.f32 %v937, %v944
          %v977 = vadd.f32 %v938, %v944
          %v978 = vmax.f32 %v946, 0.0
          %v979 = vmax.f32 %v947, 0.0
          %v980 = vmax.f32 %v948, 0.0
          %v981 = vmax.f32 %v949, 0.0
          %v982 = vmax.f32 %v950, 0.0
          %v983 = vmax.f32 %v951, 0.0
          %v984 = vmax.f32 %v952, 0.0
          %v985 = vmax.f32 %v953, 0.0
          %v986 = vmax.f32 %v954, 0.0
          %v987 = vmax.f32 %v955, 0.0
          %v988 = vmax.f32 %v956, 0.0
          %v989 = vmax.f32 %v957, 0.0
          %v990 = vmax.f32 %v958, 0.0
          %v991 = vmax.f32 %v959, 0.0
          %v992 = vmax.f32 %v960, 0.0
          %v993 = vmax.f32 %v961, 0.0
          %v994 = vmax.f32 %v962, 0.0
          %v995 = vmax.f32 %v963, 0.0
          %v996 = vmax.f32 %v964, 0.0
          %v997 = vmax.f32 %v965, 0.0
          %v998 = vmax.f32 %v966, 0.0
          %v999 = vmax.f32 %v967, 0.0
          %v1000 = vmax.f32 %v968, 0.0
          %v1001 = vmax.f32 %v969, 0.0
          %v1002 = vmax.f32 %v970, 0.0
          %v1003 = vmax.f32 %v971, 0.0
          %v1004 = vmax.f32 %v972, 0.0
          %v1005 = vmax.f32 %v973, 0.0
          %v1006 = vmax.f32 %v974, 0.0
          %v1007 = vmax.f32 %v975, 0.0
          %v1008 = vmax.f32 %v976, 0.0
          %v1009 = vmax.f32 %v977, 0.0
          %1010 = vst [vmem:[%s415] sm:$0xff] %v978
          %1011 = vst [vmem:[%s415 + $0x8] sm:$0xff] %v979
          %1012 = vst [vmem:[%s415 + $0x10] sm:$0xff] %v980
          %1013 = vst [vmem:[%s415 + $0x18] sm:$0xff] %v981
          %1014 = vst [vmem:[%s415 + $0x20] sm:$0xff] %v982
          %1015 = vst [vmem:[%s415 + $0x28] sm:$0xff] %v983
          %1016 = vst [vmem:[%s415 + $0x30] sm:$0xff] %v984
          %1017 = vst [vmem:[%s415 + $0x38] sm:$0xff] %v985
          %1018 = vst [vmem:[%s415 + $0x40] sm:$0xff] %v986
          %1019 = vst [vmem:[%s415 + $0x48] sm:$0xff] %v987
          %1020 = vst [vmem:[%s415 + $0x50] sm:$0xff] %v988
          %1021 = vst [vmem:[%s415 + $0x58] sm:$0xff] %v989
          %1022 = vst [vmem:[%s415 + $0x60] sm:$0xff] %v990
          %1023 = vst [vmem:[%s415 + $0x68] sm:$0xff] %v991
          %1024 = vst [vmem:[%s415 + $0x70] sm:$0xff] %v992
          %1025 = vst [vmem:[%s415 + $0x78] sm:$0xff] %v993
          %1026 = vst [vmem:[%s415 + $0x80] sm:$0xff] %v994
          %1027 = vst [vmem:[%s415 + $0x88] sm:$0xff] %v995
          %1028 = vst [vmem:[%s415 + $0x90] sm:$0xff] %v996
          %1029 = vst [vmem:[%s415 + $0x98] sm:$0xff] %v997
          %1030 = vst [vmem:[%s415 + $0xa0] sm:$0xff] %v998
          %1031 = vst [vmem:[%s415 + $0xa8] sm:$0xff] %v999
          %1032 = vst [vmem:[%s415 + $0xb0] sm:$0xff] %v1000
          %1033 = vst [vmem:[%s415 + $0xb8] sm:$0xff] %v1001
          %1034 = vst [vmem:[%s415 + $0xc0] sm:$0xff] %v1002
          %1035 = vst [vmem:[%s415 + $0xc8] sm:$0xff] %v1003
          %1036 = vst [vmem:[%s415 + $0xd0] sm:$0xff] %v1004
          %1037 = vst [vmem:[%s415 + $0xd8] sm:$0xff] %v1005
          %1038 = vst [vmem:[%s415 + $0xe0] sm:$0xff] %v1006
          %1039 = vst [vmem:[%s415 + $0xe8] sm:$0xff] %v1007
          %1040 = vst [vmem:[%s415 + $0xf0] sm:$0xff] %v1008
          %1041 = vst [vmem:[%s415 + $0xf8] sm:$0xff] %v1009
        $region81: #{inception_a.11} parent=68 // pred_fallthru
          _
        %s1042 = smul.u32 32, %s19
        %p1043 = scmp.lt.s32.totalorder %s1042, 63
        %s1044 = scalar_select %p1043, %s1042, 63
        %p1045 = scmp.lt.s32.totalorder %s20, 0
        %s1046 = scalar_select %p1045, %s20, 0
        %s1047 = sadd.s32 %s1046, %s1044
        %s1048 = smul.addr %s1047, 8
        %s1049 = scalar_lea.vmem %s3, %s1048
        // Predicated region
        $region82: #{inception_a.11} parent=68 // pred_check
          %p1050 = pneg %p135
        $region83: #{inception_a.11} parent=68 // pred_check_branch
          %1052 = sbr.rel (%p1050) target = $region85
        $region84: #{inception_a.11} parent=68 // pred_region
          %s1053 = smul.u32 32, %s19
        $region85: #{inception_a.11} parent=68 // pred_fallthru
          _
      $region69: #{inception_a.11} parent=5 // pred_fallthru
        _
      %p1054 = scmp.le.s32.totalorder 2, %s9
      // Predicated region
      $region86: #{inception_a.11} parent=5 // pred_check
        %p1055 = pneg %p1054
      $region87: #{inception_a.11} parent=5 // pred_check_branch
        %1057 = sbr.rel (%p1055) target = $region89
      $region88: #{inception_a.11} parent=5 // pred_region
        %s1058 = ssub.s32 %s9, 2
        // Predicated region
        $region90: #{inception_a.11} parent=88 // pred_check
          %p1059 = pneg %p141
        $region91: #{inception_a.11} parent=88 // pred_check_branch
          %1061 = sbr.rel (%p1059) target = $region93
        $region92: #{inception_a.11} parent=88 // pred_region
          %s1062 = smul.u32 32, %s22
          %p1063 = scmp.lt.s32.totalorder %s1062, 63
          %s1064 = scalar_select %p1063, %s1062, 63
          %p1065 = scmp.lt.s32.totalorder %s23, 0
          %s1066 = scalar_select %p1065, %s23, 0
          %s1067 = sadd.s32 %s1066, %s1064
          %s1068 = smul.addr %s1067, 8
          %s1069 = scalar_lea.vmem %s3, %s1068
        $region93: #{inception_a.11} parent=88 // pred_fallthru
          _
      $region89: #{inception_a.11} parent=5 // pred_fallthru
        _
    $region6: #{inception_a.11} parent=1 // loop_footer
      %s13 = sadd.s32 1, %s9
    $region7: #{inception_a.11} parent=1 // loop_footer_branch
      %8 = sbr.rel target = $region3
    $region8: #{inception_a.11} parent=1 // loop_exit
      _

// kernel: inception_a.12
$region0: #{inception_a.12}
  #allocation0 [shape = 'u32[]', space=smem, size = 0x4, offset = 0x4, fixed_abs, tag = 'smem constant byte address 0x4 - core index']
  #allocation1 [shape = 'u32[144,128]{1,0:T(1,128)}', space=vmem, size = 0x12000, scoped, tag = 'internal scratch']
  #allocation2 [shape = 'f32[256,128]{1,0:T(8,128)}', space=vmem, size = 0x20000, scoped, tag = 'scratch operand']
  %s0 = inlined_call_operand.vmem [shape: bf16[512,896], index: 0, kind: input, shape index: {}]
  %s1 = inlined_call_operand.vmem [shape: bf16[896,128], index: 1, kind: input, shape index: {}]
  %s2 = inlined_call_operand.vmem [shape: f32[1,128], index: 2, kind: input, shape index: {}]
  %s3 = inlined_call_operand.vmem [shape: f32[512,128], index: 3, kind: output, shape index: {}]
  %s4 = sld [smem:[#allocation0]]
  $region94: #{inception_a.12} parent=0
    _
  %s6 = ssub.s32 1, %s4
  %s7 = scalar_select 0, %s6, %s4
  $region1: #{inception_a.12} parent=0
    #allocation3 [shape = 'u8[131072]{0}', space=vmem, size = 0x20000, scoped, tag = 'input window, operand 0']
    loop: start=0, step=1, limit=16
    $region2: #{inception_a.12} parent=1 // loop_pre_header
      _
    $region3: #{inception_a.12} parent=1 // loop_header
      %s9 = sphi 0, %s13
      %p10 = scmp.ge.s32.totalorder %s9, 16
      %s16 = sphi 0, %s35
      %s17 = sphi 0, %s31
      %s18 = sphi 0, %s27
      %s19 = sphi 0, %s16
      %s20 = sphi 0, %s17
      %s21 = sphi 0, %s18
      %s22 = sphi 0, %s19
      %s23 = sphi 0, %s20
      %s24 = sphi 0, %s21
      %s40 = sphi 0, %s42
      %s43 = sphi 0, %s40
      %s44 = sphi 0, %s43
      %s60 = sphi 0, %s44
      %s68 = sphi 0, %s70
      %s71 = sphi 0, %s68
      %s72 = sphi 0, %s71
      %s88 = sphi 0, %s72
      %s94 = sphi 0, %s96
      %s97 = sphi 0, %s94
      %s98 = sphi 0, %s97
      %s114 = sphi 0, %s98
      %s122 = sphi 0, %s124
      %s125 = sphi 0, %s122
      %s126 = sphi 0, %s125
      %s142 = sphi 0, %s126
    $region4: #{inception_a.12} parent=1 // loop_header_branch
      %12 = sbr.rel (%p10) target = $region8
    $region5: #{inception_a.12} parent=1 // loop_body
      %s14 = ssub.s32 %s9, 1
      %s15 = ssub.s32 %s9, 2
      %s25 = sadd.s32 1, %s18
      %p26 = scmp.ge.s32.totalorder %s25, 7
      %s27 = scalar_select %p26, 0, %s25
      %s28 = sadd.s32 1, %s17
      %s29 = scalar_select %p26, %s28, %s17
      %p30 = scmp.ge.s32.totalorder %s29, 1
      %s31 = scalar_select %p30, 0, %s29
      %s32 = sadd.s32 1, %s16
      %s33 = scalar_select %p30, %s32, %s16
      %p34 = scmp.ge.s32.totalorder %s33, 2
      %s35 = scalar_select %p34, 0, %s33
      %s36 = ssub.s32 %s16, %s35
      %s37 = ssub.s32 %s18, %s27
      %s38 = sor.u32 %s36, %s37
      %p39 = scmp.eq.s32.totalorder %s38, 0
      %s41 = sadd.s32 %s40, 1
      %s42 = scalar_select %p39, %s40, %s41
      %p45 = pneg %p39
      %p46 = scmp.eq.s32.totalorder %s9, 13
      %p47 = por %p45, %p46
      %p48 = scmp.ne.s32.totalorder %s40, %s43
      %p49 = scmp.eq.s32.totalorder %s9, 0
      %p50 = por %p48, %p49
      %p51 = scmp.ne.s32.totalorder %s40, %s43
      %p52 = scmp.eq.s32.totalorder %s14, 13
      %p53 = por %p51, %p52
      %p54 = scmp.ne.s32.totalorder %s43, %s44
      %p55 = scmp.eq.s32.totalorder %s14, 0
      %p56 = por %p54, %p55
      %p57 = scmp.ne.s32.totalorder %s43, %s44
      %p58 = scmp.eq.s32.totalorder %s15, 13
      %p59 = por %p57, %p58
      %p61 = scmp.ne.s32.totalorder %s44, %s60
      %p62 = scmp.eq.s32.totalorder %s15, 0
      %p63 = por %p61, %p62
      %s64 = ssub.s32 %s18, %s27
      %s65 = ssub.s32 %s17, %s31
      %s66 = sor.u32 %s64, %s65
      %p67 = scmp.eq.s32.totalorder %s66, 0
      %s69 = sadd.s32 %s68, 1
      %s70 = scalar_select %p67, %s68, %s69
      %p73 = pneg %p67
      %p74 = scmp.eq.s32.totalorder %s9, 13
      %p75 = por %p73, %p74
      %p76 = scmp.ne.s32.totalorder %s68, %s71
      %p77 = scmp.eq.s32.totalorder %s9, 0
      %p78 = por %p76, %p77
      %p79 = scmp.ne.s32.totalorder %s68, %s71
      %p80 = scmp.eq.s32.totalorder %s14, 13
      %p81 = por %p79, %p80
      %p82 = scmp.ne.s32.totalorder %s71, %s72
      %p83 = scmp.eq.s32.totalorder %s14, 0
      %p84 = por %p82, %p83
      %p85 = scmp.ne.s32.totalorder %s71, %s72
      %p86 = scmp.eq.s32.totalorder %s15, 13
      %p87 = por %p85, %p86
      %p89 = scmp.ne.s32.totalorder %s72, %s88
      %p90 = scmp.eq.s32.totalorder %s15, 0
      %p91 = por %p89, %p90
      %s92 = ssub.s32 %s17, %s31
      %p93 = scmp.eq.s32.totalorder %s92, 0
      %s95 = sadd.s32 %s94, 1
      %s96 = scalar_select %p93, %s94, %s95
      %p99 = pneg %p93
      %p100 = scmp.eq.s32.totalorder %s9, 13
      %p101 = por %p99, %p100
      %p102 = scmp.ne.s32.totalorder %s94, %s97
      %p103 = scmp.eq.s32.totalorder %s9, 0
      %p104 = por %p102, %p103
      %p105 = scmp.ne.s32.totalorder %s94, %s97
      %p106 = scmp.eq.s32.totalorder %s14, 13
      %p107 = por %p105, %p106
      %p108 = scmp.ne.s32.totalorder %s97, %s98
      %p109 = scmp.eq.s32.totalorder %s14, 0
      %p110 = por %p108, %p109
      %p111 = scmp.ne.s32.totalorder %s97, %s98
      %p112 = scmp.eq.s32.totalorder %s15, 13
      %p113 = por %p111, %p112
      %p115 = scmp.ne.s32.totalorder %s98, %s114
      %p116 = scmp.eq.s32.totalorder %s15, 0
      %p117 = por %p115, %p116
      %s118 = ssub.s32 %s16, %s35
      %s119 = ssub.s32 %s17, %s31
      %s120 = sor.u32 %s118, %s119
      %p121 = scmp.eq.s32.totalorder %s120, 0
      %s123 = sadd.s32 %s122, 1
      %s124 = scalar_select %p121, %s122, %s123
      %p127 = pneg %p121
      %p128 = scmp.eq.s32.totalorder %s9, 13
      %p129 = por %p127, %p128
      %p130 = scmp.ne.s32.totalorder %s122, %s125
      %p131 = scmp.eq.s32.totalorder %s9, 0
      %p132 = por %p130, %p131
      %p133 = scmp.ne.s32.totalorder %s122, %s125
      %p134 = scmp.eq.s32.totalorder %s14, 13
      %p135 = por %p133, %p134
      %p136 = scmp.ne.s32.totalorder %s125, %s126
      %p137 = scmp.eq.s32.totalorder %s14, 0
      %p138 = por %p136, %p137
      %p139 = scmp.ne.s32.totalorder %s125, %s126
      %p140 = scmp.eq.s32.totalorder %s15, 13
      %p141 = por %p139, %p140
      %p143 = scmp.ne.s32.totalorder %s126, %s142
      %p144 = scmp.eq.s32.totalorder %s15, 0
      %p145 = por %p143, %p144
      %p146 = scmp.le.s32.totalorder 1, %s9
      %p147 = scmp.lt.s32.totalorder %s9, 15
      %p148 = pnand %p146, %p147
      %p149 = pneg %p148
      // Predicated region
      $region9: #{inception_a.12} parent=5 // pred_check
        _
      $region10: #{inception_a.12} parent=5 // pred_check_branch
        %151 = sbr.rel (%p148) target = $region12
      $region11: #{inception_a.12} parent=5 // pred_region
        %s152 = ssub.s32 %s9, 1
        // Predicated region
        $region13: #{inception_a.12} parent=11 // pred_check
          %p153 = pneg %p110
        $region14: #{inception_a.12} parent=11 // pred_check_branch
          %155 = sbr.rel (%p153) target = $region16
        $region15: #{inception_a.12} parent=11 // pred_region
          %p156 = scmp.lt.s32.totalorder %s20, 0
          %s157 = scalar_select %p156, %s20, 0
          %s158 = scalar_lea.vmem %s2, %s157
        $region16: #{inception_a.12} parent=11 // pred_fallthru
          _
      $region12: #{inception_a.12} parent=5 // pred_fallthru
        _
      %p159 = scmp.lt.s32.totalorder %s9, 14
      // Predicated region
      $region17: #{inception_a.12} parent=5 // pred_check
        %p160 = pneg %p159
      $region18: #{inception_a.12} parent=5 // pred_check_branch
        %162 = sbr.rel (%p160) target = $region20
      $region19: #{inception_a.12} parent=5 // pred_region
        // Predicated region
        $region21: #{inception_a.12} parent=19 // pred_check
          %p163 = pneg %p50
        $region22: #{inception_a.12} parent=19 // pred_check_branch
          %165 = sbr.rel (%p163) target = $region24
        $region23: #{inception_a.12} parent=19 // pred_region
          %s166 = sand.u32 %s40, 1
          %s167 = sand.u32 %s40, 1
          %s168 = smul.addr %s167, 128
          %s169 = scalar_lea.vmem [#allocation3], %s168
          %s170 = smul.u32 32, %s16
          %s171 = smul.addr %s170, 7
          %s172 = sadd.s32 %s18, %s171
          %s173 = smul.addr %s172, 4
          %s174 = scalar_lea.vmem %s0, %s173
          // Predicated region
          $region25: #{inception_a.12} parent=23 // pred_check
            _
          $region26: #{inception_a.12} parent=23 // pred_check_branch
            %176 = sbr.rel (0) target = $region28
          $region27: #{inception_a.12} parent=23 // pred_region
            // Predicated region
            $region29: #{inception_a.12} parent=27 // pred_check
              _
            $region30: #{inception_a.12} parent=27 // pred_check_branch
              %178 = sbr.rel target = $region32
            $region31: #{inception_a.12} parent=27 // pred_region
              // Predicated region
              $region44: #{inception_a.12} parent=31 // pred_check
                _
              $region45: #{inception_a.12} parent=31 // pred_check_branch
                %255 = sbr.rel (0) target = $region47
              $region46: #{inception_a.12} parent=31 // pred_region
                loop: start=0, step=1, limit=1
                $region48: #{inception_a.12} parent=46 // loop_pre_header
                  _
                $region49: #{inception_a.12} parent=46 // loop_header
                  %s257 = sphi 0, %s261
                  %p258 = scmp.ge.s32.totalorder %s257, 1
                  %s262 = sphi %s174, %s174
                  %s263 = sphi %s169, %s169
                $region50: #{inception_a.12} parent=46 // loop_header_branch
                  %260 = sbr.rel (%p258) target = $region54
                $region51: #{inception_a.12} parent=46 // loop_body
                  _
                $region52: #{inception_a.12} parent=46 // loop_footer
                  %s261 = sadd.s32 1, %s257
                $region53: #{inception_a.12} parent=46 // loop_footer_branch
                  %256 = sbr.rel target = $region49
                $region54: #{inception_a.12} parent=46 // loop_exit
                  _
                loop: start=0, step=1, limit=1
                $region55: #{inception_a.12} parent=46 // loop_pre_header
                  _
                $region56: #{inception_a.12} parent=46 // loop_header
                  %s266 = sphi 0, %s270
                  %p267 = scmp.ge.s32.totalorder %s266, 1
                  %s271 = sphi %s174, %s174
                  %s272 = sphi %s169, %s169
                $region57: #{inception_a.12} parent=46 // loop_header_branch
                  %269 = sbr.rel (%p267) target = $region61
                $region58: #{inception_a.12} parent=46 // loop_body
                  %v273 = vld [vmem:[%s271] sm:$0xf]
                  %274 = vst [vmem:[%s272] sm:$0xf] %v273
                  %v275 = vld [vmem:[%s271 + $0x1c] sm:$0xf]
                  %276 = vst [vmem:[%s272 + $0x4] sm:$0xf] %v275
                  %v277 = vld [vmem:[%s271 + $0x38] sm:$0xf]
                  %278 = vst [vmem:[%s272 + $0x8] sm:$0xf] %v277
                  %v279 = vld [vmem:[%s271 + $0x54] sm:$0xf]
                  %280 = vst [vmem:[%s272 + $0xc] sm:$0xf] %v279
                  %v281 = vld [vmem:[%s271 + $0x70] sm:$0xf]
                  %282 = vst [vmem:[%s272 + $0x10] sm:$0xf] %v281
                  %v283 = vld [vmem:[%s271 + $0x8c] sm:$0xf]
                  %284 = vst [vmem:[%s272 + $0x14] sm:$0xf] %v283
                  %v285 = vld [vmem:[%s271 + $0xa8] sm:$0xf]
                  %286 = vst [vmem:[%s272 + $0x18] sm:$0xf] %v285
                  %v287 = vld [vmem:[%s271 + $0xc4] sm:$0xf]
                  %288 = vst [vmem:[%s272 + $0x1c] sm:$0xf] %v287
                  %v289 = vld [vmem:[%s271 + $0xe0] sm:$0xf]
                  %290 = vst [vmem:[%s272 + $0x20] sm:$0xf] %v289
                  %v291 = vld [vmem:[%s271 + $0xfc] sm:$0xf]
                  %292 = vst [vmem:[%s272 + $0x24] sm:$0xf] %v291
                  %v293 = vld [vmem:[%s271 + $0x118] sm:$0xf]
                  %294 = vst [vmem:[%s272 + $0x28] sm:$0xf] %v293
                  %v295 = vld [vmem:[%s271 + $0x134] sm:$0xf]
                  %296 = vst [vmem:[%s272 + $0x2c] sm:$0xf] %v295
                  %v297 = vld [vmem:[%s271 + $0x150] sm:$0xf]
                  %298 = vst [vmem:[%s272 + $0x30] sm:$0xf] %v297
                  %v299 = vld [vmem:[%s271 + $0x16c] sm:$0xf]
                  %300 = vst [vmem:[%s272 + $0x34] sm:$0xf] %v299
                  %v301 = vld [vmem:[%s271 + $0x188] sm:$0xf]
                  %302 = vst [vmem:[%s272 + $0x38] sm:$0xf] %v301
                  %v303 = vld [vmem:[%s271 + $0x1a4] sm:$0xf]
                  %304 = vst [vmem:[%s272 + $0x3c] sm:$0xf] %v303
                  %v305 = vld [vmem:[%s271 + $0x1c0] sm:$0xf]
                  %306 = vst [vmem:[%s272 + $0x40] sm:$0xf] %v305
                  %v307 = vld [vmem:[%s271 + $0x1dc] sm:$0xf]
                  %308 = vst [vmem:[%s272 + $0x44] sm:$0xf] %v307
                  %v309 = vld [vmem:[%s271 + $0x1f8] sm:$0xf]
                  %310 = vst [vmem:[%s272 + $0x48] sm:$0xf] %v309
                  %v311 = vld [vmem:[%s271 + $0x214] sm:$0xf]
                  %312 = vst [vmem:[%s272 + $0x4c] sm:$0xf] %v311
                  %v313 = vld [vmem:[%s271 + $0x230] sm:$0xf]
                  %314 = vst [vmem:[%s272 + $0x50] sm:$0xf] %v313
                  %v315 = vld [vmem:[%s271 + $0x24c] sm:$0xf]
                  %316 = vst [vmem:[%s272 + $0x54] sm:$0xf] %v315
                  %v317 = vld [vmem:[%s271 + $0x268] sm:$0xf]
                  %318 = vst [vmem:[%s272 + $0x58] sm:$0xf] %v317
                  %v319 = vld [vmem:[%s271 + $0x284] sm:$0xf]
                  %320 = vst [vmem:[%s272 + $0x5c] sm:$0xf] %v319
                  %v321 = vld [vmem:[%s271 + $0x2a0] sm:$0xf]
                  %322 = vst [vmem:[%s272 + $0x60] sm:$0xf] %v321
                  %v323 = vld [vmem:[%s271 + $0x2bc] sm:$0xf]
                  %324 = vst [vmem:[%s272 + $0x64] sm:$0xf] %v323
                  %v325 = vld [vmem:[%s271 + $0x2d8] sm:$0xf]
                  %326 = vst [vmem:[%s272 + $0x68] sm:$0xf] %v325
                  %v327 = vld [vmem:[%s271 + $0x2f4] sm:$0xf]
                  %328 = vst [vmem:[%s272 + $0x6c] sm:$0xf] %v327
                  %v329 = vld [vmem:[%s271 + $0x310] sm:$0xf]
                  %330 = vst [vmem:[%s272 + $0x70] sm:$0xf] %v329
                  %v331 = vld [vmem:[%s271 + $0x32c] sm:$0xf]
                  %332 = vst [vmem:[%s272 + $0x74] sm:$0xf] %v331
                  %v333 = vld [vmem:[%s271 + $0x348] sm:$0xf]
                  %334 = vst [vmem:[%s272 + $0x78] sm:$0xf] %v333
                  %v335 = vld [vmem:[%s271 + $0x364] sm:$0xf]
                  %336 = vst [vmem:[%s272 + $0x7c] sm:$0xf] %v335
                $region59: #{inception_a.12} parent=46 // loop_footer
                  %s270 = sadd.s32 1, %s266
                $region60: #{inception_a.12} parent=46 // loop_footer_branch
                  %265 = sbr.rel target = $region56
                $region61: #{inception_a.12} parent=46 // loop_exit
                  _
              $region47: #{inception_a.12} parent=31 // pred_fallthru
                _
            $region32: #{inception_a.12} parent=27 // pred_fallthru
              _
            // Predicated region
            $region33: #{inception_a.12} parent=27 // pred_check
              _
            $region34: #{inception_a.12} parent=27 // pred_check_branch
              %180 = sbr.rel (0) target = $region36
            $region35: #{inception_a.12} parent=27 // pred_region
              loop: start=0, step=1, limit=1
              $region37: #{inception_a.12} parent=35 // loop_pre_header
                _
              $region38: #{inception_a.12} parent=35 // loop_header
                %s183 = sphi 0, %s187
                %p184 = scmp.ge.s32.totalorder %s183, 1
                %s188 = sphi %s174, %s174
                %s189 = sphi %s169, %s169
              $region39: #{inception_a.12} parent=35 // loop_header_branch
                %186 = sbr.rel (%p184) target = $region43
              $region40: #{inception_a.12} parent=35 // loop_body
                %v190 = vld [vmem:[%s188] sm:$0xf]
                %191 = vst [vmem:[%s189] sm:$0xf] %v190
                %v192 = vld [vmem:[%s188 + $0x1c] sm:$0xf]
                %193 = vst [vmem:[%s189 + $0x4] sm:$0xf] %v192
                %v194 = vld [vmem:[%s188 + $0x38] sm:$0xf]
                %195 = vst [vmem:[%s189 + $0x8] sm:$0xf] %v194
                %v196 = vld [vmem:[%s188 + $0x54] sm:$0xf]
                %197 = vst [vmem:[%s189 + $0xc] sm:$0xf] %v196
                %v198 = vld [vmem:[%s188 + $0x70] sm:$0xf]
                %199 = vst [vmem:[%s189 + $0x10] sm:$0xf] %v198
                %v200 = vld [vmem:[%s188 + $0x8c] sm:$0xf]
                %201 = vst [vmem:[%s189 + $0x14] sm:$0xf] %v200
                %v202 = vld [vmem:[%s188 + $0xa8] sm:$0xf]
                %203 = vst [vmem:[%s189 + $0x18] sm:$0xf] %v202
                %v204 = vld [vmem:[%s188 + $0xc4] sm:$0xf]
                %205 = vst [vmem:[%s189 + $0x1c] sm:$0xf] %v204
                %v206 = vld [vmem:[%s188 + $0xe0] sm:$0xf]
                %207 = vst [vmem:[%s189 + $0x20] sm:$0xf] %v206
                %v208 = vld [vmem:[%s188 + $0xfc] sm:$0xf]
                %209 = vst [vmem:[%s189 + $0x24] sm:$0xf] %v208
                %v210 = vld [vmem:[%s188 + $0x118] sm:$0xf]
                %211 = vst [vmem:[%s189 + $0x28] sm:$0xf] %v210
                %v212 = vld [vmem:[%s188 + $0x134] sm:$0xf]
                %213 = vst [vmem:[%s189 + $0x2c] sm:$0xf] %v212
                %v214 = vld [vmem:[%s188 + $0x150] sm:$0xf]
                %215 = vst [vmem:[%s189 + $0x30] sm:$0xf] %v214
                %v216 = vld [vmem:[%s188 + $0x16c] sm:$0xf]
                %217 = vst [vmem:[%s189 + $0x34] sm:$0xf] %v216
                %v218 = vld [vmem:[%s188 + $0x188] sm:$0xf]
                %219 = vst [vmem:[%s189 + $0x38] sm:$0xf] %v218
                %v220 = vld [vmem:[%s188 + $0x1a4] sm:$0xf]
                %221 = vst [vmem:[%s189 + $0x3c] sm:$0xf] %v220
                %v222 = vld [vmem:[%s188 + $0x1c0] sm:$0xf]
                %223 = vst [vmem:[%s189 + $0x40] sm:$0xf] %v222
                %v224 = vld [vmem:[%s188 + $0x1dc] sm:$0xf]
                %225 = vst [vmem:[%s189 + $0x44] sm:$0xf] %v224
                %v226 = vld [vmem:[%s188 + $0x1f8] sm:$0xf]
                %227 = vst [vmem:[%s189 + $0x48] sm:$0xf] %v226
                %v228 = vld [vmem:[%s188 + $0x214] sm:$0xf]
                %229 = vst [vmem:[%s189 + $0x4c] sm:$0xf] %v228
                %v230 = vld [vmem:[%s188 + $0x230] sm:$0xf]
                %231 = vst [vmem:[%s189 + $0x50] sm:$0xf] %v230
                %v232 = vld [vmem:[%s188 + $0x24c] sm:$0xf]
                %233 = vst [vmem:[%s189 + $0x54] sm:$0xf] %v232
                %v234 = vld [vmem:[%s188 + $0x268] sm:$0xf]
                %235 = vst [vmem:[%s189 + $0x58] sm:$0xf] %v234
                %v236 = vld [vmem:[%s188 + $0x284] sm:$0xf]
                %237 = vst [vmem:[%s189 + $0x5c] sm:$0xf] %v236
                %v238 = vld [vmem:[%s188 + $0x2a0] sm:$0xf]
                %239 = vst [vmem:[%s189 + $0x60] sm:$0xf] %v238
                %v240 = vld [vmem:[%s188 + $0x2bc] sm:$0xf]
                %241 = vst [vmem:[%s189 + $0x64] sm:$0xf] %v240
                %v242 = vld [vmem:[%s188 + $0x2d8] sm:$0xf]
                %243 = vst [vmem:[%s189 + $0x68] sm:$0xf] %v242
                %v244 = vld [vmem:[%s188 + $0x2f4] sm:$0xf]
                %245 = vst [vmem:[%s189 + $0x6c] sm:$0xf] %v244
                %v246 = vld [vmem:[%s188 + $0x310] sm:$0xf]
                %247 = vst [vmem:[%s189 + $0x70] sm:$0xf] %v246
                %v248 = vld [vmem:[%s188 + $0x32c] sm:$0xf]
                %249 = vst [vmem:[%s189 + $0x74] sm:$0xf] %v248
                %v250 = vld [vmem:[%s188 + $0x348] sm:$0xf]
                %251 = vst [vmem:[%s189 + $0x78] sm:$0xf] %v250
                %v252 = vld [vmem:[%s188 + $0x364] sm:$0xf]
                %253 = vst [vmem:[%s189 + $0x7c] sm:$0xf] %v252
              $region41: #{inception_a.12} parent=35 // loop_footer
                %s187 = sadd.s32 1, %s183
              $region42: #{inception_a.12} parent=35 // loop_footer_branch
                %182 = sbr.rel target = $region38
              $region43: #{inception_a.12} parent=35 // loop_exit
                _
            $region36: #{inception_a.12} parent=27 // pred_fallthru
              _
          $region28: #{inception_a.12} parent=23 // pred_fallthru
            _
          %337 = vnop
        $region24: #{inception_a.12} parent=19 // pred_fallthru
          _
        // Predicated region
        $region62: #{inception_a.12} parent=19 // pred_check
          %p338 = pneg %p78
        $region63: #{inception_a.12} parent=19 // pred_check_branch
          %340 = sbr.rel (%p338) target = $region65
        $region64: #{inception_a.12} parent=19 // pred_region
          %s341 = smul.u32 16, %s18
          %p342 = scmp.lt.s32.totalorder %s341, 111
          %s343 = scalar_select %p342, %s341, 111
          %p344 = scmp.lt.s32.totalorder %s17, 0
          %s345 = scalar_select %p344, %s17, 0
          %s346 = sadd.s32 %s345, %s343
          %s347 = smul.addr %s346, 4
          %s348 = scalar_lea.vmem %s1, %s347
          %s349 = smul.u32 16, %s18
        $region65: #{inception_a.12} parent=19 // pred_fallthru
          _
      $region20: #{inception_a.12} parent=5 // pred_fallthru
        _
      %p350 = scmp.le.s32.totalorder 1, %s9
      %p351 = scmp.lt.s32.totalorder %s9, 15
      %p352 = pnand %p350, %p351
      %p353 = pneg %p352
      // Predicated region
      $region66: #{inception_a.12} parent=5 // pred_check
        _
      $region67: #{inception_a.12} parent=5 // pred_check_branch
        %355 = sbr.rel (%p352) target = $region69
      $region68: #{inception_a.12} parent=5 // pred_region
        %s356 = ssub.s32 %s9, 1
        %s357 = sand.u32 %s43, 1
        %s358 = sand.u32 %s43, 1
        %s359 = smul.addr %s358, 128
        %s360 = scalar_lea.vmem [#allocation3], %s359
        // Predicated region
        $region70: #{inception_a.12} parent=68 // pred_check
          %p361 = pneg %p56
        $region71: #{inception_a.12} parent=68 // pred_check_branch
          %363 = sbr.rel (%p361) target = $region73
        $region72: #{inception_a.12} parent=68 // pred_region
          _
        $region73: #{inception_a.12} parent=68 // pred_fallthru
          _
        %s364 = sand.u32 %s43, 1
        %s365 = sand.u32 %s43, 1
        %s366 = smul.addr %s365, 128
        %s367 = scalar_lea.vmem [#allocation3], %s366
        %p368 = pneg %p56
        %p369 = pneg %p53
        %s370 = smul.u32 16, %s21
        %p371 = scmp.lt.s32.totalorder %s370, 111
        %s372 = scalar_select %p371, %s370, 111
        %p373 = scmp.lt.s32.totalorder %s20, 0
        %s374 = scalar_select %p373, %s20, 0
        %s375 = sadd.s32 %s374, %s372
        %s376 = smul.addr %s375, 4
        %s377 = scalar_lea.vmem %s1, %s376
        %p378 = pneg %p84
        %p379 = pneg %p81
        %p380 = scmp.lt.s32.totalorder %s20, 0
        %s381 = scalar_select %p380, %s20, 0
        %s382 = scalar_lea.vmem %s2, %s381
        %p383 = pneg %p110
        %p384 = pneg %p107
        %p385 = pneg %p138
        %p386 = pneg %p135
        %s387 = smul.u32 32, %s19
        %p388 = scmp.lt.s32.totalorder %s387, 63
        %s389 = scalar_select %p388, %s387, 63
        %p390 = scmp.lt.s32.totalorder %s20, 0
        %s391 = scalar_select %p390, %s20, 0
        %s392 = sadd.s32 %s391, %s389
        %s393 = smul.addr %s392, 8
        %s394 = scalar_lea.vmem %s3, %s393
        %s395 = smul.u32 32, %s19
        %s396 = smul.u32 16, %s21
        %p397 = scmp.lt.s32.totalorder %s396, 111
        %s398 = scalar_select %p397, %s396, 111
        %p399 = scmp.lt.s32.totalorder %s20, 0
        %s400 = scalar_select %p399, %s20, 0
        %s401 = sadd.s32 %s400, %s398
        %s402 = smul.addr %s401, 4
        %s403 = scalar_lea.vmem %s1, %s402
        %s404 = smul.u32 16, %s21
        %p405 = scmp.lt.s32.totalorder %s20, 0
        %s406 = scalar_select %p405, %s20, 0
        %s407 = scalar_lea.vmem %s2, %s406
        %s408 = smul.u32 32, %s19
        %p409 = scmp.lt.s32.totalorder %s408, 63
        %s410 = scalar_select %p409, %s408, 63
        %p411 = scmp.lt.s32.totalorder %s20, 0
        %s412 = scalar_select %p411, %s20, 0
        %s413 = sadd.s32 %s412, %s410
        %s414 = smul.addr %s413, 8
        %s415 = scalar_lea.vmem %s3, %s414
        %s416 = smul.u32 32, %s19
        %p418 = scmp.eq.s32.totalorder %s21, 0
        // Predicated region
        $region74: #{inception_a.12} parent=68 // pred_check
          %p419 = pneg %p418
        $region75: #{inception_a.12} parent=68 // pred_check_branch
          %421 = sbr.rel (%p419) target = $region77
        $region76: #{inception_a.12} parent=68 // pred_region
          %422 = vst [vmem:[#allocation2] sm:$0xff] 0.0
          %423 = vst [vmem:[#allocation2 + $0x8] sm:$0xff] 0.0
          %424 = vst [vmem:[#allocation2 + $0x10] sm:$0xff] 0.0
          %425 = vst [vmem:[#allocation2 + $0x18] sm:$0xff] 0.0
          %426 = vst [vmem:[#allocation2 + $0x20] sm:$0xff] 0.0
          %427 = vst [vmem:[#allocation2 + $0x28] sm:$0xff] 0.0
          %428 = vst [vmem:[#allocation2 + $0x30] sm:$0xff] 0.0
          %429 = vst [vmem:[#allocation2 + $0x38] sm:$0xff] 0.0
          %430 = vst [vmem:[#allocation2 + $0x40] sm:$0xff] 0.0
          %431 = vst [vmem:[#allocation2 + $0x48] sm:$0xff] 0.0
          %432 = vst [vmem:[#allocation2 + $0x50] sm:$0xff] 0.0
          %433 = vst [vmem:[#allocation2 + $0x58] sm:$0xff] 0.0
          %434 = vst [vmem:[#allocation2 + $0x60] sm:$0xff] 0.0
          %435 = vst [vmem:[#allocation2 + $0x68] sm:$0xff] 0.0
          %436 = vst [vmem:[#allocation2 + $0x70] sm:$0xff] 0.0
          %437 = vst [vmem:[#allocation2 + $0x78] sm:$0xff] 0.0
          %438 = vst [vmem:[#allocation2 + $0x80] sm:$0xff] 0.0
          %439 = vst [vmem:[#allocation2 + $0x88] sm:$0xff] 0.0
          %440 = vst [vmem:[#allocation2 + $0x90] sm:$0xff] 0.0
          %441 = vst [vmem:[#allocation2 + $0x98] sm:$0xff] 0.0
          %442 = vst [vmem:[#allocation2 + $0xa0] sm:$0xff] 0.0
          %443 = vst [vmem:[#allocation2 + $0xa8] sm:$0xff] 0.0
          %444 = vst [vmem:[#allocation2 + $0xb0] sm:$0xff] 0.0
          %445 = vst [vmem:[#allocation2 + $0xb8] sm:$0xff] 0.0
          %446 = vst [vmem:[#allocation2 + $0xc0] sm:$0xff] 0.0
          %447 = vst [vmem:[#allocation2 + $0xc8] sm:$0xff] 0.0
          %448 = vst [vmem:[#allocation2 + $0xd0] sm:$0xff] 0.0
          %449 = vst [vmem:[#allocation2 + $0xd8] sm:$0xff] 0.0
          %450 = vst [vmem:[#allocation2 + $0xe0] sm:$0xff] 0.0
          %451 = vst [vmem:[#allocation2 + $0xe8] sm:$0xff] 0.0
          %452 = vst [vmem:[#allocation2 + $0xf0] sm:$0xff] 0.0
          %453 = vst [vmem:[#allocation2 + $0xf8] sm:$0xff] 0.0
        $region77: #{inception_a.12} parent=68 // pred_fallthru
          _
        %v454 = vld [vmem:[#allocation2] sm:$0xff]
        %v455 = vld [vmem:[#allocation2 + $0x8] sm:$0xff]
        %v456 = vld [vmem:[#allocation2 + $0x10] sm:$0xff]
        %v457 = vld [vmem:[#allocation2 + $0x18] sm:$0xff]
        %v458 = vld [vmem:[#allocation2 + $0x20] sm:$0xff]
        %v459 = vld [vmem:[#allocation2 + $0x28] sm:$0xff]
        %v460 = vld [vmem:[#allocation2 + $0x30] sm:$0xff]
        %v461 = vld [vmem:[#allocation2 + $0x38] sm:$0xff]
        %v462 = vld [vmem:[#allocation2 + $0x40] sm:$0xff]
        %v463 = vld [vmem:[#allocation2 + $0x48] sm:$0xff]
        %v464 = vld [vmem:[#allocation2 + $0x50] sm:$0xff]
        %v465 = vld [vmem:[#allocation2 + $0x58] sm:$0xff]
        %v466 = vld [vmem:[#allocation2 + $0x60] sm:$0xff]
        %v467 = vld [vmem:[#allocation2 + $0x68] sm:$0xff]
        %v468 = vld [vmem:[#allocation2 + $0x70] sm:$0xff]
        %v469 = vld [vmem:[#allocation2 + $0x78] sm:$0xff]
        %v470 = vld [vmem:[#allocation2 + $0x80] sm:$0xff]
        %v471 = vld [vmem:[#allocation2 + $0x88] sm:$0xff]
        %v472 = vld [vmem:[#allocation2 + $0x90] sm:$0xff]
        %v473 = vld [vmem:[#allocation2 + $0x98] sm:$0xff]
        %v474 = vld [vmem:[#allocation2 + $0xa0] sm:$0xff]
        %v475 = vld [vmem:[#allocation2 + $0xa8] sm:$0xff]
        %v476 = vld [vmem:[#allocation2 + $0xb0] sm:$0xff]
        %v477 = vld [vmem:[#allocation2 + $0xb8] sm:$0xff]
        %v478 = vld [vmem:[#allocation2 + $0xc0] sm:$0xff]
        %v479 = vld [vmem:[#allocation2 + $0xc8] sm:$0xff]
        %v480 = vld [vmem:[#allocation2 + $0xd0] sm:$0xff]
        %v481 = vld [vmem:[#allocation2 + $0xd8] sm:$0xff]
        %v482 = vld [vmem:[#allocation2 + $0xe0] sm:$0xff]
        %v483 = vld [vmem:[#allocation2 + $0xe8] sm:$0xff]
        %v484 = vld [vmem:[#allocation2 + $0xf0] sm:$0xff]
        %v485 = vld [vmem:[#allocation2 + $0xf8] sm:$0xff]
        %v486 = vld [vmem:[%s360] sm:$0xf]
        %v487 = vld [vmem:[%s360 + $0x4] sm:$0xf]
        %v488 = vld [vmem:[%s360 + $0x8] sm:$0xf]
        %v489 = vld [vmem:[%s360 + $0xc] sm:$0xf]
        %v490 = vld [vmem:[%s360 + $0x10] sm:$0xf]
        %v491 = vld [vmem:[%s360 + $0x14] sm:$0xf]
        %v492 = vld [vmem:[%s360 + $0x18] sm:$0xf]
        %v493 = vld [vmem:[%s360 + $0x1c] sm:$0xf]
        %v494 = vld [vmem:[%s360 + $0x20] sm:$0xf]
        %v495 = vld [vmem:[%s360 + $0x24] sm:$0xf]
        %v496 = vld [vmem:[%s360 + $0x28] sm:$0xf]
        %v497 = vld [vmem:[%s360 + $0x2c] sm:$0xf]
        %v498 = vld [vmem:[%s360 + $0x30] sm:$0xf]
        %v499 = vld [vmem:[%s360 + $0x34] sm:$0xf]
        %v500 = vld [vmem:[%s360 + $0x38] sm:$0xf]
        %v501 = vld [vmem:[%s360 + $0x3c] sm:$0xf]
        %v502 = vld [vmem:[%s360 + $0x40] sm:$0xf]
        %v503 = vld [vmem:[%s360 + $0x44] sm:$0xf]
        %v504 = vld [vmem:[%s360 + $0x48] sm:$0xf]
        %v505 = vld [vmem:[%s360 + $0x4c] sm:$0xf]
        %v506 = vld [vmem:[%s360 + $0x50] sm:$0xf]
        %v507 = vld [vmem:[%s360 + $0x54] sm:$0xf]
        %v508 = vld [vmem:[%s360 + $0x58] sm:$0xf]
        %v509 = vld [vmem:[%s360 + $0x5c] sm:$0xf]
        %v510 = vld [vmem:[%s360 + $0x60] sm:$0xf]
        %v511 = vld [vmem:[%s360 + $0x64] sm:$0xf]
        %v512 = vld [vmem:[%s360 + $0x68] sm:$0xf]
        %v513 = vld [vmem:[%s360 + $0x6c] sm:$0xf]
        %v514 = vld [vmem:[%s360 + $0x70] sm:$0xf]
        %v515 = vld [vmem:[%s360 + $0x74] sm:$0xf]
        %v516 = vld [vmem:[%s360 + $0x78] sm:$0xf]
        %v517 = vld [vmem:[%s360 + $0x7c] sm:$0xf]
        %v518 = vld [vmem:[%s403] sm:$0xf]
        %v519 = vld [vmem:[%s403 + $0x4] sm:$0xf]
        %v520 = vld [vmem:[%s403 + $0x8] sm:$0xf]
        %v521 = vld [vmem:[%s403 + $0xc] sm:$0xf]
        %v522 = vld [vmem:[%s403 + $0x10] sm:$0xf]
        %v523 = vld [vmem:[%s403 + $0x14] sm:$0xf]
        %v524 = vld [vmem:[%s403 + $0x18] sm:$0xf]
        %v525 = vld [vmem:[%s403 + $0x1c] sm:$0xf]
        %v526 = vld [vmem:[%s403 + $0x20] sm:$0xf]
        %v527 = vld [vmem:[%s403 + $0x24] sm:$0xf]
        %v528 = vld [vmem:[%s403 + $0x28] sm:$0xf]
        %v529 = vld [vmem:[%s403 + $0x2c] sm:$0xf]
        %v530 = vld [vmem:[%s403 + $0x30] sm:$0xf]
        %v531 = vld [vmem:[%s403 + $0x34] sm:$0xf]
        %v532 = vld [vmem:[%s403 + $0x38] sm:$0xf]
        %v533 = vld [vmem:[%s403 + $0x3c] sm:$0xf]
        %v566 = vunpack.c.l.b16 %v486
        %v567 = vunpack.c.l.b16 %v487
        %v568 = vunpack.c.l.b16 %v488
        %v569 = vunpack.c.l.b16 %v489
        %v570 = vunpack.c.l.b16 %v490
        %v571 = vunpack.c.l.b16 %v491
        %v572 = vunpack.c.l.b16 %v492
        %v573 = vunpack.c.l.b16 %v493
        %v574 = vunpack.c.l.b16 %v494
        %v575 = vunpack.c.l.b16 %v495
        %v576 = vunpack.c.l.b16 %v496
        %v577 = vunpack.c.l.b16 %v497
        %v578 = vunpack.c.l.b16 %v498
        %v579 = vunpack.c.l.b16 %v499
        %v580 = vunpack.c.l.b16 %v500
        %v581 = vunpack.c.l.b16 %v501
        %v582 = vunpack.c.l.b16 %v502
        %v583 = vunpack.c.l.b16 %v503
        %v584 = vunpack.c.l.b16 %v504
        %v585 = vunpack.c.l.b16 %v505
        %v586 = vunpack.c.l.b16 %v506
        %v587 = vunpack.c.l.b16 %v507
        %v588 = vunpack.c.l.b16 %v508
        %v589 = vunpack.c.l.b16 %v509
        %v590 = vunpack.c.l.b16 %v510
        %v591 = vunpack.c.l.b16 %v511
        %v592 = vunpack.c.l.b16 %v512
        %v593 = vunpack.c.l.b16 %v513
        %v594 = vunpack.c.l.b16 %v514
        %v595 = vunpack.c.l.b16 %v515
        %v596 = vunpack.c.l.b16 %v516
        %v597 = vunpack.c.l.b16 %v517
        %v598 = vpack.c.b16 %v567, %v566
        %v599 = vpack.c.b16 %v569, %v568
        %v600 = vpack.c.b16 %v571, %v570
        %v601 = vpack.c.b16 %v573, %v572
        %v602 = vpack.c.b16 %v575, %v574
        %v603 = vpack.c.b16 %v577, %v576
        %v604 = vpack.c.b16 %v579, %v578
        %v605 = vpack.c.b16 %v581, %v580
        %v606 = vpack.c.b16 %v583, %v582
        %v607 = vpack.c.b16 %v585, %v584
        %v608 = vpack.c.b16 %v587, %v586
        %v609 = vpack.c.b16 %v589, %v588
        %v610 = vpack.c.b16 %v591, %v590
        %v611 = vpack.c.b16 %v593, %v592
        %v612 = vpack.c.b16 %v595, %v594
        %v613 = vpack.c.b16 %v597, %v596
        %v646 = vunpack.c.l.b16 %v518
        %v647 = vunpack.c.l.b16 %v519
        %v648 = vunpack.c.l.b16 %v520
        %v649 = vunpack.c.l.b16 %v521
        %v650 = vunpack.c.l.b16 %v522
        %v651 = vunpack.c.l.b16 %v523
        %v652 = vunpack.c.l.b16 %v524
        %v653 = vunpack.c.l.b16 %v525
        %v654 = vunpack.c.l.b16 %v526
        %v655 = vunpack.c.l.b16 %v527
        %v656 = vunpack.c.l.b16 %v528
        %v657 = vunpack.c.l.b16 %v529
        %v658 = vunpack.c.l.b16 %v530
        %v659 = vunpack.c.l.b16 %v531
        %v660 = vunpack.c.l.b16 %v532
        %v661 = vunpack.c.l.b16 %v533
        %v662 = vpack.c.b16 %v647, %v646
        %v663 = vpack.c.b16 %v649, %v648
        %v664 = vpack.c.b16 %v651, %v650
        %v665 = vpack.c.b16 %v653, %v652
        %v666 = vpack.c.b16 %v655, %v654
        %v667 = vpack.c.b16 %v657, %v656
        %v668 = vpack.c.b16 %v659, %v658
        %v669 = vpack.c.b16 %v661, %v660
        %678 = vmatprep.subr.bf16.mxu0 0
        %679 = vmatpush1.bf16.msra.mxu0 %v662
        %680 = vmatprep.subr.bf16.mxu0 0
        %681 = vmatpush1.bf16.msra.mxu0 %v663
        %682 = vmatprep.subr.bf16.mxu0 0
        %683 = vmatpush1.bf16.msra.mxu0 %v664
        %684 = vmatprep.subr.bf16.mxu0 0
        %685 = vmatpush1.bf16.msra.mxu0 %v665
        %686 = vmatprep.subr.bf16.mxu0 0
        %687 = vmatpush1.bf16.msra.mxu0 %v666
        %688 = vmatprep.subr.bf16.mxu0 0
        %689 = vmatpush1.bf16.msra.mxu0 %v667
        %690 = vmatprep.subr.bf16.mxu0 0
        %691 = vmatpush1.bf16.msra.mxu0 %v668
        %692 = vmatprep.subr.bf16.mxu0 0
        %693 = vmatpush1.bf16.msra.mxu0 %v669
        %694 = vmatprep.subr.bf16.mxu0 0
        %695 = vmatpush1.bf16.msra.mxu0 0
        %696 = vmatprep.subr.bf16.mxu0 0
        %697 = vmatpush1.bf16.msra.mxu0 0
        %698 = vmatprep.subr.bf16.mxu0 0
        %699 = vmatpush1.bf16.msra.mxu0 0
        %700 = vmatprep.subr.bf16.mxu0 0
        %701 = vmatpush1.bf16.msra.mxu0 0
        %702 = vmatprep.subr.bf16.mxu0 0
        %703 = vmatpush1.bf16.msra.mxu0 0
        %704 = vmatprep.subr.bf16.mxu0 0
        %705 = vmatpush1.bf16.msra.mxu0 0
        %706 = vmatprep.subr.bf16.mxu0 0
        %707 = vmatpush1.bf16.msra.mxu0 0
        %708 = vmatprep.subr.bf16.mxu0 0
        %709 = vmatpush1.bf16.msra.mxu0 0
        %710 = vmatprep.mubr.bf16.mxu0 0
        %711 = vmatmul.mubr.bf16.gmra.mrb[0].mxu0 %v598
        %v712 = vpop.f32.mrb[0].mxu0
        %v713 = vadd.f32 0.0, %v712
        %v714 = vpop.f32.mrb[0].mxu0
        %v715 = vpop.f32.mrb[0].mxu0
        %v716 = vadd.f32 0.0, %v715
        %v717 = vpop.f32.mrb[0].mxu0
        %718 = vmatprep.mubr.bf16.mxu0 0
        %719 = vmatmul.mubr.bf16.gmra.mrb[0].mxu0 %v599
        %v720 = vpop.f32.mrb[0].mxu0
        %v721 = vadd.f32 0.0, %v720
        %v722 = vpop.f32.mrb[0].mxu0
        %v723 = vpop.f32.mrb[0].mxu0
        %v724 = vadd.f32 0.0, %v723
        %v725 = vpop.f32.mrb[0].mxu0
        %726 = vmatprep.mubr.bf16.mxu0 0
        %727 = vmatmul.mubr.bf16.gmra.mrb[0].mxu0 %v600
        %v728 = vpop.f32.mrb[0].mxu0
        %v729 = vadd.f32 0.0, %v728
        %v730 = vpop.f32.mrb[0].mxu0
        %v731 = vpop.f32.mrb[0].mxu0
        %v732 = vadd.f32 0.0, %v731
        %v733 = vpop.f32.mrb[0].mxu0
        %734 = vmatprep.mubr.bf16.mxu0 0
        %735 = vmatmul.mubr.bf16.gmra.mrb[0].mxu0 %v601
        %v736 = vpop.f32.mrb[0].mxu0
        %v737 = vadd.f32 0.0, %v736
        %v738 = vpop.f32.mrb[0].mxu0
        %v739 = vpop.f32.mrb[0].mxu0
        %v740 = vadd.f32 0.0, %v739
        %v741 = vpop.f32.mrb[0].mxu0
        %742 = vmatprep.mubr.bf16.mxu0 0
        %743 = vmatmul.mubr.bf16.gmra.mrb[0].mxu0 %v602
        %v744 = vpop.f32.mrb[0].mxu0
        %v745 = vadd.f32 0.0, %v744
        %v746 = vpop.f32.mrb[0].mxu0
        %v747 = vpop.f32.mrb[0].mxu0
        %v748 = vadd.f32 0.0, %v747
        %v749 = vpop.f32.mrb[0].mxu0
        %750 = vmatprep.mubr.bf16.mxu0 0
        %751 = vmatmul.mubr.bf16.gmra.mrb[0].mxu0 %v603
        %v752 = vpop.f32.mrb[0].mxu0
        %v753 = vadd.f32 0.0, %v752
        %v754 = vpop.f32.mrb[0].mxu0
        %v755 = vpop.f32.mrb[0].mxu0
        %v756 = vadd.f32 0.0, %v755
        %v757 = vpop.f32.mrb[0].mxu0
        %758 = vmatprep.mubr.bf16.mxu0 0
        %759 = vmatmul.mubr.bf16.gmra.mrb[0].mxu0 %v604
        %v760 = vpop.f32.mrb[0].mxu0
        %v761 = vadd.f32 0.0, %v760
        %v762 = vpop.f32.mrb[0].mxu0
        %v763 = vpop.f32.mrb[0].mxu0
        %v764 = vadd.f32 0.0, %v763
        %v765 = vpop.f32.mrb[0].mxu0
        %766 = vmatprep.mubr.bf16.mxu0 0
        %767 = vmatmul.mubr.bf16.gmra.mrb[0].mxu0 %v605
        %v768 = vpop.f32.mrb[0].mxu0
        %v769 = vadd.f32 0.0, %v768
        %v770 = vpop.f32.mrb[0].mxu0
        %v771 = vpop.f32.mrb[0].mxu0
        %v772 = vadd.f32 0.0, %v771
        %v773 = vpop.f32.mrb[0].mxu0
        %774 = vmatprep.mubr.bf16.mxu0 0
        %775 = vmatmul.mubr.bf16.gmra.mrb[0].mxu0 %v606
        %v776 = vpop.f32.mrb[0].mxu0
        %v777 = vadd.f32 0.0, %v776
        %v778 = vpop.f32.mrb[0].mxu0
        %v779 = vpop.f32.mrb[0].mxu0
        %v780 = vadd.f32 0.0, %v779
        %v781 = vpop.f32.mrb[0].mxu0
        %782 = vmatprep.mubr.bf16.mxu0 0
        %783 = vmatmul.mubr.bf16.gmra.mrb[0].mxu0 %v607
        %v784 = vpop.f32.mrb[0].mxu0
        %v785 = vadd.f32 0.0, %v784
        %v786 = vpop.f32.mrb[0].mxu0
        %v787 = vpop.f32.mrb[0].mxu0
        %v788 = vadd.f32 0.0, %v787
        %v789 = vpop.f32.mrb[0].mxu0
        %790 = vmatprep.mubr.bf16.mxu0 0
        %791 = vmatmul.mubr.bf16.gmra.mrb[0].mxu0 %v608
        %v792 = vpop.f32.mrb[0].mxu0
        %v793 = vadd.f32 0.0, %v792
        %v794 = vpop.f32.mrb[0].mxu0
        %v795 = vpop.f32.mrb[0].mxu0
        %v796 = vadd.f32 0.0, %v795
        %v797 = vpop.f32.mrb[0].mxu0
        %798 = vmatprep.mubr.bf16.mxu0 0
        %799 = vmatmul.mubr.bf16.gmra.mrb[0].mxu0 %v609
        %v800 = vpop.f32.mrb[0].mxu0
        %v801 = vadd.f32 0.0, %v800
        %v802 = vpop.f32.mrb[0].mxu0
        %v803 = vpop.f32.mrb[0].mxu0
        %v804 = vadd.f32 0.0, %v803
        %v805 = vpop.f32.mrb[0].mxu0
        %806 = vmatprep.mubr.bf16.mxu0 0
        %807 = vmatmul.mubr.bf16.gmra.mrb[0].mxu0 %v610
        %v808 = vpop.f32.mrb[0].mxu0
        %v809 = vadd.f32 0.0, %v808
        %v810 = vpop.f32.mrb[0].mxu0
        %v811 = vpop.f32.mrb[0].mxu0
        %v812 = vadd.f32 0.0, %v811
        %v813 = vpop.f32.mrb[0].mxu0
        %814 = vmatprep.mubr.bf16.mxu0 0
        %815 = vmatmul.mubr.bf16.gmra.mrb[0].mxu0 %v611
        %v816 = vpop.f32.mrb[0].mxu0
        %v817 = vadd.f32 0.0, %v816
        %v818 = vpop.f32.mrb[0].mxu0
        %v819 = vpop.f32.mrb[0].mxu0
        %v820 = vadd.f32 0.0, %v819
        %v821 = vpop.f32.mrb[0].mxu0
        %822 = vmatprep.mubr.bf16.mxu0 0
        %823 = vmatmul.mubr.bf16.gmra.mrb[0].mxu0 %v612
        %v824 = vpop.f32.mrb[0].mxu0
        %v825 = vadd.f32 0.0, %v824
        %v826 = vpop.f32.mrb[0].mxu0
        %v827 = vpop.f32.mrb[0].mxu0
        %v828 = vadd.f32 0.0, %v827
        %v829 = vpop.f32.mrb[0].mxu0
        %830 = vmatprep.mubr.bf16.mxu0 0
        %831 = vmatmul.mubr.bf16.gmra.mrb[0].mxu0 %v613
        %v832 = vpop.f32.mrb[0].mxu0
        %v833 = vadd.f32 0.0, %v832
        %v834 = vpop.f32.mrb[0].mxu0
        %v835 = vpop.f32.mrb[0].mxu0
        %v836 = vadd.f32 0.0, %v835
        %v837 = vpop.f32.mrb[0].mxu0
        %838 = vdwg.mxu0
        %v839 = vadd.f32 %v454, %v713
        %v840 = vadd.f32 %v455, %v716
        %v841 = vadd.f32 %v456, %v721
        %v842 = vadd.f32 %v457, %v724
        %v843 = vadd.f32 %v458, %v729
        %v844 = vadd.f32 %v459, %v732
        %v845 = vadd.f32 %v460, %v737
        %v846 = vadd.f32 %v461, %v740
        %v847 = vadd.f32 %v462, %v745
        %v848 = vadd.f32 %v463, %v748
        %v849 = vadd.f32 %v464, %v753
        %v850 = vadd.f32 %v465, %v756
        %v851 = vadd.f32 %v466, %v761
        %v852 = vadd.f32 %v467, %v764
        %v853 = vadd.f32 %v468, %v769
        %v854 = vadd.f32 %v469, %v772
        %v855 = vadd.f32 %v470, %v777
        %v856 = vadd.f32 %v471, %v780
        %v857 = vadd.f32 %v472, %v785
        %v858 = vadd.f32 %v473, %v788
        %v859 = vadd.f32 %v474, %v793
        %v860 = vadd.f32 %v475, %v796
        %v861 = vadd.f32 %v476, %v801
        %v862 = vadd.f32 %v477, %v804
        %v863 = vadd.f32 %v478, %v809
        %v864 = vadd.f32 %v479, %v812
        %v865 = vadd.f32 %v480, %v817
        %v866 = vadd.f32 %v481, %v820
        %v867 = vadd.f32 %v482, %v825
        %v868 = vadd.f32 %v483, %v828
        %v869 = vadd.f32 %v484, %v833
        %v870 = vadd.f32 %v485, %v836
        %871 = vst [vmem:[#allocation2] sm:$0xff] %v839
        %872 = vst [vmem:[#allocation2 + $0x8] sm:$0xff] %v840
        %873 = vst [vmem:[#allocation2 + $0x10] sm:$0xff] %v841
        %874 = vst [vmem:[#allocation2 + $0x18] sm:$0xff] %v842
        %875 = vst [vmem:[#allocation2 + $0x20] sm:$0xff] %v843
        %876 = vst [vmem:[#allocation2 + $0x28] sm:$0xff] %v844
        %877 = vst [vmem:[#allocation2 + $0x30] sm:$0xff] %v845
        %878 = vst [vmem:[#allocation2 + $0x38] sm:$0xff] %v846
        %879 = vst [vmem:[#allocation2 + $0x40] sm:$0xff] %v847
        %880 = vst [vmem:[#allocation2 + $0x48] sm:$0xff] %v848
        %881 = vst [vmem:[#allocation2 + $0x50] sm:$0xff] %v849
        %882 = vst [vmem:[#allocation2 + $0x58] sm:$0xff] %v850
        %883 = vst [vmem:[#allocation2 + $0x60] sm:$0xff] %v851
        %884 = vst [vmem:[#allocation2 + $0x68] sm:$0xff] %v852
        %885 = vst [vmem:[#allocation2 + $0x70] sm:$0xff] %v853
        %886 = vst [vmem:[#allocation2 + $0x78] sm:$0xff] %v854
        %887 = vst [vmem:[#allocation2 + $0x80] sm:$0xff] %v855
        %888 = vst [vmem:[#allocation2 + $0x88] sm:$0xff] %v856
        %889 = vst [vmem:[#allocation2 + $0x90] sm:$0xff] %v857
        %890 = vst [vmem:[#allocation2 + $0x98] sm:$0xff] %v858
        %891 = vst [vmem:[#allocation2 + $0xa0] sm:$0xff] %v859
        %892 = vst [vmem:[#allocation2 + $0xa8] sm:$0xff] %v860
        %893 = vst [vmem:[#allocation2 + $0xb0] sm:$0xff] %v861
        %894 = vst [vmem:[#allocation2 + $0xb8] sm:$0xff] %v862
        %895 = vst [vmem:[#allocation2 + $0xc0] sm:$0xff] %v863
        %896 = vst [vmem:[#allocation2 + $0xc8] sm:$0xff] %v864
        %897 = vst [vmem:[#allocation2 + $0xd0] sm:$0xff] %v865
        %898 = vst [vmem:[#allocation2 + $0xd8] sm:$0xff] %v866
        %899 = vst [vmem:[#allocation2 + $0xe0] sm:$0xff] %v867
        %900 = vst [vmem:[#allocation2 + $0xe8] sm:$0xff] %v868
        %901 = vst [vmem:[#allocation2 + $0xf0] sm:$0xff] %v869
        %902 = vst [vmem:[#allocation2 + $0xf8] sm:$0xff] %v870
        %p903 = scmp.eq.s32.totalorder %s21, 6
        // Predicated region
        $region78: #{inception_a.12} parent=68 // pred_check
          %p904 = pneg %p903
        $region79: #{inception_a.12} parent=68 // pred_check_branch
          %906 = sbr.rel (%p904) target = $region81
        $region80: #{inception_a.12} parent=68 // pred_region
          %v907 = vld [vmem:[#allocation2] sm:$0xff]
          %v908 = vld [vmem:[#allocation2 + $0x8] sm:$0xff]
          %v909 = vld [vmem:[#allocation2 + $0x10] sm:$0xff]
          %v910 = vld [vmem:[#allocation2 + $0x18] sm:$0xff]
          %v911 = vld [vmem:[#allocation2 + $0x20] sm:$0xff]
          %v912 = vld [vmem:[#allocation2 + $0x28] sm:$0xff]
          %v913 = vld [vmem:[#allocation2 + $0x30] sm:$0xff]
          %v914 = vld [vmem:[#allocation2 + $0x38] sm:$0xff]
          %v915 = vld [vmem:[#allocation2 + $0x40] sm:$0xff]
          %v916 = vld [vmem:[#allocation2 + $0x48] sm:$0xff]
          %v917 = vld [vmem:[#allocation2 + $0x50] sm:$0xff]
          %v918 = vld [vmem:[#allocation2 + $0x58] sm:$0xff]
          %v919 = vld [vmem:[#allocation2 + $0x60] sm:$0xff]
          %v920 = vld [vmem:[#allocation2 + $0x68] sm:$0xff]
          %v921 = vld [vmem:[#allocation2 + $0x70] sm:$0xff]
          %v922 = vld [vmem:[#allocation2 + $0x78] sm:$0xff]
          %v923 = vld [vmem:[#allocation2 + $0x80] sm:$0xff]
          %v924 = vld [vmem:[#allocation2 + $0x88] sm:$0xff]
          %v925 = vld [vmem:[#allocation2 + $0x90] sm:$0xff]
          %v926 = vld [vmem:[#allocation2 + $0x98] sm:$0xff]
          %v927 = vld [vmem:[#allocation2 + $0xa0] sm:$0xff]
          %v928 = vld [vmem:[#allocation2 + $0xa8] sm:$0xff]
          %v929 = vld [vmem:[#allocation2 + $0xb0] sm:$0xff]
          %v930 = vld [vmem:[#allocation2 + $0xb8] sm:$0xff]
          %v931 = vld [vmem:[#allocation2 + $0xc0] sm:$0xff]
          %v932 = vld [vmem:[#allocation2 + $0xc8] sm:$0xff]
          %v933 = vld [vmem:[#allocation2 + $0xd0] sm:$0xff]
          %v934 = vld [vmem:[#allocation2 + $0xd8] sm:$0xff]
          %v935 = vld [vmem:[#allocation2 + $0xe0] sm:$0xff]
          %v936 = vld [vmem:[#allocation2 + $0xe8] sm:$0xff]
          %v937 = vld [vmem:[#allocation2 + $0xf0] sm:$0xff]
          %v938 = vld [vmem:[#allocation2 + $0xf8] sm:$0xff]
          %v939 = vld [vmem:[%s407] sm:$0x1]
          %v941 = vlaneseq
          %v942 = vshrl.u32 %v941, 7
          %v943 = vsub.s32 0, %v942
          %v944 = vrot.slane %v939, %v943
          %v946 = vadd.f32 %v907, %v944
          %v947 = vadd.f32 %v908, %v944
          %v948 = vadd.f32 %v909, %v944
          %v949 = vadd.f32 %v910, %v944
          %v950 = vadd.f32 %v911, %v944
          %v951 = vadd.f32 %v912, %v944
          %v952 = vadd.f32 %v913, %v944
          %v953 = vadd.f32 %v914, %v944
          %v954 = vadd.f32 %v915, %v944
          %v955 = vadd.f32 %v916, %v944
          %v956 = vadd.f32 %v917, %v944
          %v957 = vadd.f32 %v918, %v944
          %v958 = vadd.f32 %v919, %v944
          %v959 = vadd.f32 %v920, %v944
          %v960 = vadd.f32 %v921, %v944
          %v961 = vadd.f32 %v922, %v944
          %v962 = vadd.f32 %v923, %v944
          %v963 = vadd.f32 %v924, %v944
          %v964 = vadd.f32 %v925, %v944
          %v965 = vadd.f32 %v926, %v944
          %v966 = vadd.f32 %v927, %v944
          %v967 = vadd.f32 %v928, %v944
          %v968 = vadd.f32 %v929, %v944
          %v969 = vadd.f32 %v930, %v944
          %v970 = vadd.f32 %v931, %v944
          %v971 = vadd.f32 %v932, %v944
          %v972 = vadd.f32 %v933, %v944
          %v973 = vadd.f32 %v934, %v944
          %v974 = vadd.f32 %v935, %v944
          %v975 = vadd.f32 %v936, %v944
          %v976 = vadd.f32 %v937, %v944
          %v977 = vadd.f32 %v938, %v944
          %v978 = vmax.f32 %v946, 0.0
          %v979 = vmax.f32 %v947, 0.0
          %v980 = vmax.f32 %v948, 0.0
          %v981 = vmax.f32 %v949, 0.0
          %v982 = vmax.f32 %v950, 0.0
          %v983 = vmax.f32 %v951, 0.0
          %v984 = vmax.f32 %v952, 0.0
          %v985 = vmax.f32 %v953, 0.0
          %v986 = vmax.f32 %v954, 0.0
          %v987 = vmax.f32 %v955, 0.0
          %v988 = vmax.f32 %v956, 0.0
          %v989 = vmax.f32 %v957, 0.0
          %v990 = vmax.f32 %v958, 0.0
          %v991 = vmax.f32 %v959, 0.0
          %v992 = vmax.f32 %v960, 0.0
          %v993 = vmax.f32 %v961, 0.0
          %v994 = vmax.f32 %v962, 0.0
          %v995 = vmax.f32 %v963, 0.0
          %v996 = vmax.f32 %v964, 0.0
          %v997 = vmax.f32 %v965, 0.0
          %v998 = vmax.f32 %v966, 0.0
          %v999 = vmax.f32 %v967, 0.0
          %v1000 = vmax.f32 %v968, 0.0
          %v1001 = vmax.f32 %v969, 0.0
          %v1002 = vmax.f32 %v970, 0.0
          %v1003 = vmax.f32 %v971, 0.0
          %v1004 = vmax.f32 %v972, 0.0
          %v1005 = vmax.f32 %v973, 0.0
          %v1006 = vmax.f32 %v974, 0.0
          %v1007 = vmax.f32 %v975, 0.0
          %v1008 = vmax.f32 %v976, 0.0
          %v1009 = vmax.f32 %v977, 0.0
          %1010 = vst [vmem:[%s415] sm:$0xff] %v978
          %1011 = vst [vmem:[%s415 + $0x8] sm:$0xff] %v979
          %1012 = vst [vmem:[%s415 + $0x10] sm:$0xff] %v980
          %1013 = vst [vmem:[%s415 + $0x18] sm:$0xff] %v981
          %1014 = vst [vmem:[%s415 + $0x20] sm:$0xff] %v982
          %1015 = vst [vmem:[%s415 + $0x28] sm:$0xff] %v983
          %1016 = vst [vmem:[%s415 + $0x30] sm:$0xff] %v984
          %1017 = vst [vmem:[%s415 + $0x38] sm:$0xff] %v985
          %1018 = vst [vmem:[%s415 + $0x40] sm:$0xff] %v986
          %1019 = vst [vmem:[%s415 + $0x48] sm:$0xff] %v987
          %1020 = vst [vmem:[%s415 + $0x50] sm:$0xff] %v988
          %1021 = vst [vmem:[%s415 + $0x58] sm:$0xff] %v989
          %1022 = vst [vmem:[%s415 + $0x60] sm:$0xff] %v990
          %1023 = vst [vmem:[%s415 + $0x68] sm:$0xff] %v991
          %1024 = vst [vmem:[%s415 + $0x70] sm:$0xff] %v992
          %1025 = vst [vmem:[%s415 + $0x78] sm:$0xff] %v993
          %1026 = vst [vmem:[%s415 + $0x80] sm:$0xff] %v994
          %1027 = vst [vmem:[%s415 + $0x88] sm:$0xff] %v995
          %1028 = vst [vmem:[%s415 + $0x90] sm:$0xff] %v996
          %1029 = vst [vmem:[%s415 + $0x98] sm:$0xff] %v997
          %1030 = vst [vmem:[%s415 + $0xa0] sm:$0xff] %v998
          %1031 = vst [vmem:[%s415 + $0xa8] sm:$0xff] %v999
          %1032 = vst [vmem:[%s415 + $0xb0] sm:$0xff] %v1000
          %1033 = vst [vmem:[%s415 + $0xb8] sm:$0xff] %v1001
          %1034 = vst [vmem:[%s415 + $0xc0] sm:$0xff] %v1002
          %1035 = vst [vmem:[%s415 + $0xc8] sm:$0xff] %v1003
          %1036 = vst [vmem:[%s415 + $0xd0] sm:$0xff] %v1004
          %1037 = vst [vmem:[%s415 + $0xd8] sm:$0xff] %v1005
          %1038 = vst [vmem:[%s415 + $0xe0] sm:$0xff] %v1006
          %1039 = vst [vmem:[%s415 + $0xe8] sm:$0xff] %v1007
          %1040 = vst [vmem:[%s415 + $0xf0] sm:$0xff] %v1008
          %1041 = vst [vmem:[%s415 + $0xf8] sm:$0xff] %v1009
        $region81: #{inception_a.12} parent=68 // pred_fallthru
          _
        %s1042 = smul.u32 32, %s19
        %p1043 = scmp.lt.s32.totalorder %s1042, 63
        %s1044 = scalar_select %p1043, %s1042, 63
        %p1045 = scmp.lt.s32.totalorder %s20, 0
        %s1046 = scalar_select %p1045, %s20, 0
        %s1047 = sadd.s32 %s1046, %s1044
        %s1048 = smul.addr %s1047, 8
        %s1049 = scalar_lea.vmem %s3, %s1048
        // Predicated region
        $region82: #{inception_a.12} parent=68 // pred_check
          %p1050 = pneg %p135
        $region83: #{inception_a.12} parent=68 // pred_check_branch
          %1052 = sbr.rel (%p1050) target = $region85
        $region84: #{inception_a.12} parent=68 // pred_region
          %s1053 = smul.u32 32, %s19
        $region85: #{inception_a.12} parent=68 // pred_fallthru
          _
      $region69: #{inception_a.12} parent=5 // pred_fallthru
        _
      %p1054 = scmp.le.s32.totalorder 2, %s9
      // Predicated region
      $region86: #{inception_a.12} parent=5 // pred_check
        %p1055 = pneg %p1054
      $region87: #{inception_a.12} parent=5 // pred_check_branch
        %1057 = sbr.rel (%p1055) target = $region89
      $region88: #{inception_a.12} parent=5 // pred_region
        %s1058 = ssub.s32 %s9, 2
        // Predicated region
        $region90: #{inception_a.12} parent=88 // pred_check
          %p1059 = pneg %p141
        $region91: #{inception_a.12} parent=88 // pred_check_branch
          %1061 = sbr.rel (%p1059) target = $region93
        $region92: #{inception_a.12} parent=88 // pred_region
          %s1062 = smul.u32 32, %s22
          %p1063 = scmp.lt.s32.totalorder %s1062, 63
          %s1064 = scalar_select %p1063, %s1062, 63
          %p1065 = scmp.lt.s32.totalorder %s23, 0
          %s1066 = scalar_select %p1065, %s23, 0
          %s1067 = sadd.s32 %s1066, %s1064
          %s1068 = smul.addr %s1067, 8
          %s1069 = scalar_lea.vmem %s3, %s1068
        $region93: #{inception_a.12} parent=88 // pred_fallthru
          _
      $region89: #{inception_a.12} parent=5 // pred_fallthru
        _
    $region6: #{inception_a.12} parent=1 // loop_footer
      %s13 = sadd.s32 1, %s9
    $region7: #{inception_a.12} parent=1 // loop_footer_branch
      %8 = sbr.rel target = $region3
    $region8: #{inception_a.12} parent=1 // loop_exit
      _

</llo_original>
